<compile_context>
chip_gen: v5e
topology: v5e:2x2
jax: 0.10.0
libtpu: 0.0.40
codegen_flags: <defaults>
</compile_context>

<pallas_src>
import math
import functools

import jax
import jax.numpy as jnp
from jax import lax
from jax.experimental import pallas as pl
from jax.experimental.pallas import tpu as pltpu


def _layer_norm(v, g, b, eps=1e-5):
    mu = jnp.mean(v, axis=-1, keepdims=True)
    var = jnp.mean((v - mu) ** 2, axis=-1, keepdims=True)
    return (v - mu) * lax.rsqrt(var + eps) * g + b


def _encoder_kernel(n_heads,
                    x_ref, y_ref, ymask_ref,
                    ln1_g, ln1_b, wq, bq, wk, bk, wv, bv, wo, bo,
                    ffw, ffb, ln2_g, ln2_b, lnf_g, lnf_b,
                    o_ref, x_acc, ctx_ref):
    l = pl.program_id(1)
    n_layers = pl.num_programs(1)

    Bb, Sx, D = x_ref.shape
    Sy = y_ref.shape[1]
    dh = D // n_heads
    scale = 1.0 / math.sqrt(dh)
    cdt = wq.dtype                       # matmul compute dtype (f32 or bf16)

    # --- carry init (first layer of this batch block) ---
    @pl.when(l == 0)
    def _():
        x_acc[...] = x_ref[...].reshape(Bb * Sx, D).astype(jnp.float32)

    mask = ymask_ref[...]                                    # (Bb, 1, Sy)
    bias = jnp.where(mask > 0, 0.0, -1e9).astype(jnp.float32)

    x = x_acc[...]                                           # (Bb*Sx, D) f32
    y = y_ref[...].reshape(Bb * Sy, D)                       # (Bb*Sy, D)

    # --- attention block ---
    h2 = _layer_norm(x, ln1_g[...], ln1_b[...])
    # 1/sqrt(dh) folded into q (one Sx*D multiply instead of H*Sx*Sy).
    q = (jnp.dot(h2.astype(cdt), wq[...], preferred_element_type=jnp.float32)
         + bq[...]) * scale
    k = jnp.dot(y.astype(cdt), wk[...], preferred_element_type=jnp.float32) + bk[...]
    v = jnp.dot(y.astype(cdt), wv[...], preferred_element_type=jnp.float32) + bv[...]

    q3 = q.reshape(Bb, Sx, D)
    k3 = k.reshape(Bb, Sy, D)
    v3 = v.reshape(Bb, Sy, D)

    for h in range(n_heads):             # static unroll over heads
        lo = h * dh
        qh = q3[:, :, lo:lo + dh].astype(cdt)
        kh = k3[:, :, lo:lo + dh].astype(cdt)
        vh = v3[:, :, lo:lo + dh].astype(cdt)
        s = jnp.einsum('bqd,bkd->bqk', qh, kh,
                       preferred_element_type=jnp.float32)
        s = s + bias                                         # (Bb,Sx,Sy)+(Bb,1,Sy)
        p = jnp.exp(s - jnp.max(s, axis=-1, keepdims=True))
        inv = pl.reciprocal(jnp.sum(p, axis=-1, keepdims=True), approx=True)
        ctx_h = jnp.einsum('bqk,bkd->bqd', p.astype(cdt), vh,
                           preferred_element_type=jnp.float32) * inv
        # write head slice in place (no lane-dim concatenate relayout)
        ctx_ref[:, :, lo:lo + dh] = ctx_h

    ctx = ctx_ref[...].reshape(Bb * Sx, D)
    att = jnp.dot(ctx.astype(cdt), wo[...],
                  preferred_element_type=jnp.float32) + bo[...]
    h2r = att + x                        # dropout == identity; residual

    # --- feed-forward block ---
    h3 = _layer_norm(h2r, ln2_g[...], ln2_b[...])
    ff = jnp.maximum(
        jnp.dot(h3.astype(cdt), ffw[...],
                preferred_element_type=jnp.float32) + ffb[...], 0.0)
    x_new = ff + h2r                     # dropout == identity; residual
    x_acc[...] = x_new

    # --- finalize (last layer): final LayerNorm + store ---
    @pl.when(l == n_layers - 1)
    def _():
        out = _layer_norm(x_new, lnf_g[...], lnf_b[...])
        o_ref[...] = out.reshape(Bb, Sx, D).astype(o_ref.dtype)


_PARAM_ORDER = ("ln1_g", "ln1_b", "wq", "bq", "wk", "bk", "wv", "bv",
                "wo", "bo", "ffw", "ffb", "ln2_g", "ln2_b", "lnf_g", "lnf_b")
_WEIGHTS = ("wq", "wk", "wv", "wo", "ffw")      # big (D,D) mats; castable to bf16
_FINAL = ("lnf_g", "lnf_b")                     # not per-layer


def disentangled_cross_encoder(x, x_mask, y, y_mask, params, n_heads=8,
                               block_b=1, param_dtype=None):
    """x: (B,Sx,D), y: (B,Sy,D), masks: (B,S) with 1.0 = valid token."""
    # x_mask is accepted for interface parity but is unused in the PyTorch forward.
    del x_mask
    B, Sx, D = x.shape
    _, Sy, _ = y.shape
    L = int(params["wq"].shape[0])
    assert B % block_b == 0, "block_b must divide batch"
    nb = B // block_b
    if param_dtype is None:
        param_dtype = x.dtype

    y_mask3 = y_mask.reshape(B, 1, Sy).astype(jnp.float32)

    # Weights streamed per layer in param_dtype (bf16 halves DMA bytes & VMEM);
    # biases / LayerNorm params stay f32 (softmax / LN math is kept in f32).
    cast_params = {}
    for name in _PARAM_ORDER:
        a = params[name]
        cast_params[name] = a.astype(param_dtype) if name in _WEIGHTS \
            else a.astype(jnp.float32)
    param_arrays = [cast_params[name] for name in _PARAM_ORDER]

    def layer_spec(shape):
        # shape = (L, *rest): stream one layer's slice per inner grid step
        nrest = len(shape) - 1
        return pl.BlockSpec((None,) + tuple(shape[1:]),
                            lambda b, l, _n=nrest: (l,) + (0,) * _n)

    def const_spec(shape):
        nd = len(shape)
        return pl.BlockSpec(tuple(shape), lambda b, l, _n=nd: (0,) * _n)

    param_specs = [const_spec(cast_params[n].shape) if n in _FINAL
                   else layer_spec(cast_params[n].shape)
                   for n in _PARAM_ORDER]

    in_specs = [
        pl.BlockSpec((block_b, Sx, D), lambda b, l: (b, 0, 0)),   # x
        pl.BlockSpec((block_b, Sy, D), lambda b, l: (b, 0, 0)),   # y
        pl.BlockSpec((block_b, 1, Sy), lambda b, l: (b, 0, 0)),   # y_mask
    ] + param_specs
    out_specs = pl.BlockSpec((block_b, Sx, D), lambda b, l: (b, 0, 0))

    # VMEM budget: one layer's weights (double-buffered) + activation blocks + scratch.
    bw = jnp.dtype(param_dtype).itemsize
    act_b = jnp.dtype(x.dtype).itemsize
    est = 2 * (5 * D * D * bw + 9 * D * 4)                 # per-layer params, x2 buf
    est += 2 * 2 * D * 4                                   # final LN params
    est += 2 * block_b * (Sx + Sy) * D * act_b             # x, y blocks
    est += 2 * block_b * Sy * 4                            # mask
    est += 2 * block_b * Sx * D * act_b                    # output block
    est += 2 * block_b * Sx * D * 4                        # scratch (carry + ctx)
    vmem_limit = int(min(max(2 * est, 32 * 1024 * 1024), 100 * 1024 * 1024))

    kernel = functools.partial(_encoder_kernel, n_heads)

    return pl.pallas_call(
        kernel,
        out_shape=jax.ShapeDtypeStruct((B, Sx, D), x.dtype),
        grid=(nb, L),
        in_specs=in_specs,
        out_specs=out_specs,
        scratch_shapes=[
            pltpu.VMEM((block_b * Sx, D), jnp.float32),    # layer-carry activation
            pltpu.VMEM((block_b, Sx, D), jnp.float32),     # attention context
        ],
        compiler_params=pltpu.CompilerParams(
            dimension_semantics=("parallel", "arbitrary"),
            vmem_limit_bytes=vmem_limit),
    )(x, y, y_mask3, *param_arrays)


def init_params(key, n_layers, size):
    """Deterministic synthetic parameters (shapes follow the PyTorch module)."""
    D, L = size, n_layers
    keys = jax.random.split(key, L * 10)
    ki = iter(keys)

    def w():
        return 0.05 * jax.random.normal(next(ki), (D, D), jnp.float32)

    def b():
        return 0.02 * jax.random.normal(next(ki), (1, D), jnp.float32)

    p = {name: [] for name in _PARAM_ORDER if name not in _FINAL}
    for _ in range(L):
        p["ln1_g"].append(jnp.ones((1, D), jnp.float32))
        p["ln1_b"].append(jnp.zeros((1, D), jnp.float32))
        p["wq"].append(w()); p["bq"].append(b())
        p["wk"].append(w()); p["bk"].append(b())
        p["wv"].append(w()); p["bv"].append(b())
        p["wo"].append(w()); p["bo"].append(b())
        p["ffw"].append(w()); p["ffb"].append(b())
        p["ln2_g"].append(jnp.ones((1, D), jnp.float32))
        p["ln2_b"].append(jnp.zeros((1, D), jnp.float32))
    stacked = {k: jnp.stack(v, axis=0) for k, v in p.items()}
    stacked["lnf_g"] = jnp.ones((1, D), jnp.float32)
    stacked["lnf_b"] = jnp.zeros((1, D), jnp.float32)
    return stacked


def reference(x, y, y_mask, params, n_heads):
    """Pure-JAX reference implementation (same math, no Pallas)."""
    B, Sx, D = x.shape
    L = params["wq"].shape[0]
    dh = D // n_heads
    scale = 1.0 / math.sqrt(dh)
    outs = []
    for bidx in range(B):
        xb, yb = x[bidx], y[bidx]
        bias = jnp.where(y_mask[bidx][None, :] > 0, 0.0, -1e9)
        for l in range(L):
            h1 = xb
            h2 = _layer_norm(h1, params["ln1_g"][l], params["ln1_b"][l])
            q = h2 @ params["wq"][l] + params["bq"][l]
            k = yb @ params["wk"][l] + params["bk"][l]
            v = yb @ params["wv"][l] + params["bv"][l]
            heads = []
            for h in range(n_heads):
                lo = h * dh
                s = q[:, lo:lo + dh] @ k[:, lo:lo + dh].T * scale + bias
                p = jax.nn.softmax(s, axis=-1)
                heads.append(p @ v[:, lo:lo + dh])
            ctx = jnp.concatenate(heads, axis=-1)
            h2r = ctx @ params["wo"][l] + params["bo"][l] + h1
            h3 = _layer_norm(h2r, params["ln2_g"][l], params["ln2_b"][l])
            h3 = jnp.maximum(h3 @ params["ffw"][l] + params["ffb"][l], 0.0)
            xb = h3 + h2r
        outs.append(_layer_norm(xb, params["lnf_g"], params["lnf_b"]))
    return jnp.stack(outs, axis=0)


if __name__ == "__main__":
    B, Sx, Sy, D, H, L = 2, 8, 8, 32, 8, 2
    key = jax.random.PRNGKey(0)
    kx, ky, kp = jax.random.split(key, 3)
    x = jax.random.normal(kx, (B, Sx, D), jnp.float32)
    y = jax.random.normal(ky, (B, Sy, D), jnp.float32)
    x_mask = jnp.ones((B, Sx), jnp.float32)
    y_mask = jnp.ones((B, Sy), jnp.float32).at[1, -2:].set(0.0)

    params = init_params(kp, L, D)
    ref = reference(x, y, y_mask, params, H)

    # f32 compute path; whole batch fused into one grid step (MXU row filling).
    out_f32 = disentangled_cross_encoder(x, x_mask, y, y_mask, params,
                                         n_heads=H, block_b=2,
                                         param_dtype=jnp.float32)
    out_f32 = jax.block_until_ready(out_f32)
    err32 = float(jnp.max(jnp.abs(out_f32 - ref)))
    assert out_f32.shape == (B, Sx, D)
    # approx reciprocal on the EUP introduces ~1e-4-level relative error
    assert err32 < 5e-3, f"f32 path max abs error vs reference: {err32}"

    # bf16 weight/matmul path (f32 accumulation); one batch element per grid step
    # so the batch grid axis exposes 2 parallel slices (v7x dual-TC).
    out_bf16 = disentangled_cross_encoder(x, x_mask, y, y_mask, params,
                                          n_heads=H, block_b=1,
                                          param_dtype=jnp.bfloat16)
    out_bf16 = jax.block_until_ready(out_bf16)
    err16 = float(jnp.max(jnp.abs(out_bf16.astype(jnp.float32) - ref)))
    assert err16 < 2.5e-1, f"bf16 path max abs error vs reference: {err16}"

    print("KERNEL_OK")
</pallas_src>

<mosaic_0001>
module attributes {stable_mosaic.version = 11 : i64} {
  func.func @_encoder_kernel(%arg0: i32, %arg1: i32, %arg2: memref<2x8x32xf32, #tpu.memory_space<vmem>>, %arg3: memref<2x8x32xf32, #tpu.memory_space<vmem>>, %arg4: memref<2x1x8xf32, #tpu.memory_space<vmem>>, %arg5: memref<1x1x32xf32, #tpu.memory_space<vmem>>, %arg6: memref<1x1x32xf32, #tpu.memory_space<vmem>>, %arg7: memref<1x32x32xf32, #tpu.memory_space<vmem>>, %arg8: memref<1x1x32xf32, #tpu.memory_space<vmem>>, %arg9: memref<1x32x32xf32, #tpu.memory_space<vmem>>, %arg10: memref<1x1x32xf32, #tpu.memory_space<vmem>>, %arg11: memref<1x32x32xf32, #tpu.memory_space<vmem>>, %arg12: memref<1x1x32xf32, #tpu.memory_space<vmem>>, %arg13: memref<1x32x32xf32, #tpu.memory_space<vmem>>, %arg14: memref<1x1x32xf32, #tpu.memory_space<vmem>>, %arg15: memref<1x32x32xf32, #tpu.memory_space<vmem>>, %arg16: memref<1x1x32xf32, #tpu.memory_space<vmem>>, %arg17: memref<1x1x32xf32, #tpu.memory_space<vmem>>, %arg18: memref<1x1x32xf32, #tpu.memory_space<vmem>>, %arg19: memref<1x32xf32, #tpu.memory_space<vmem>>, %arg20: memref<1x32xf32, #tpu.memory_space<vmem>>, %arg21: memref<2x8x32xf32, #tpu.memory_space<vmem>>, %arg22: memref<16x32xf32, #tpu.memory_space<vmem>>, %arg23: memref<2x8x32xf32, #tpu.memory_space<vmem>>) attributes {dimension_semantics = [#tpu.dimension_semantics<parallel>, #tpu.dimension_semantics<arbitrary>], iteration_bounds = array<i64: 1, 2>, scalar_prefetch = 0 : i64, scratch_operands = 2 : i64, tpu.core_type = #tpu.core_type<tc>, window_params = [{transform_indices = @transform_0, window_bounds = array<i64: 2, 8, 32>}, {transform_indices = @transform_1, window_bounds = array<i64: 2, 8, 32>}, {transform_indices = @transform_2, window_bounds = array<i64: 2, 1, 8>}, {transform_indices = @transform_3, window_bounds = array<i64: 1, 1, 32>}, {transform_indices = @transform_4, window_bounds = array<i64: 1, 1, 32>}, {transform_indices = @transform_5, window_bounds = array<i64: 1, 32, 32>}, {transform_indices = @transform_6, window_bounds = array<i64: 1, 1, 32>}, {transform_indices = @transform_7, window_bounds = array<i64: 1, 32, 32>}, {transform_indices = @transform_8, window_bounds = array<i64: 1, 1, 32>}, {transform_indices = @transform_9, window_bounds = array<i64: 1, 32, 32>}, {transform_indices = @transform_10, window_bounds = array<i64: 1, 1, 32>}, {transform_indices = @transform_11, window_bounds = array<i64: 1, 32, 32>}, {transform_indices = @transform_12, window_bounds = array<i64: 1, 1, 32>}, {transform_indices = @transform_13, window_bounds = array<i64: 1, 32, 32>}, {transform_indices = @transform_14, window_bounds = array<i64: 1, 1, 32>}, {transform_indices = @transform_15, window_bounds = array<i64: 1, 1, 32>}, {transform_indices = @transform_16, window_bounds = array<i64: 1, 1, 32>}, {pipeline_mode = #tpu.pipeline_mode<synchronous>, transform_indices = @transform_17, window_bounds = array<i64: 1, 32>}, {pipeline_mode = #tpu.pipeline_mode<synchronous>, transform_indices = @transform_18, window_bounds = array<i64: 1, 32>}, {transform_indices = @transform_19, window_bounds = array<i64: 2, 8, 32>}]} {
    %c0_i32 = arith.constant 0 : i32
    %0 = arith.cmpi eq, %arg1, %c0_i32 : i32
    %1 = arith.extui %0 : i1 to i32
    %c0_i32_0 = arith.constant 0 : i32
    %2 = arith.cmpi ne, %1, %c0_i32_0 : i32
    scf.if %2 {
      %c0_124 = arith.constant 0 : index
      %c0_125 = arith.constant 0 : index
      %c0_126 = arith.constant 0 : index
      %258 = vector.load %arg2[%c0_124, %c0_125, %c0_126] : memref<2x8x32xf32, #tpu.memory_space<vmem>>, vector<2x8x32xf32>
      %259 = vector.shape_cast %258 : vector<2x8x32xf32> to vector<16x32xf32>
      %c0_127 = arith.constant 0 : index
      %c0_128 = arith.constant 0 : index
      %260 = vector.load %arg22[%c0_127, %c0_128] : memref<16x32xf32, #tpu.memory_space<vmem>>, vector<16x32xf32>
      tpu.vector_store %arg22[%c0_127, %c0_128], %259 {strides = array<i32>} : memref<16x32xf32, #tpu.memory_space<vmem>>, vector<16x32xf32>,
    } else {
    }
    %c0 = arith.constant 0 : index
    %c0_1 = arith.constant 0 : index
    %c0_2 = arith.constant 0 : index
    %3 = vector.load %arg4[%c0, %c0_1, %c0_2] : memref<2x1x8xf32, #tpu.memory_space<vmem>>, vector<2x1x8xf32>
    %cst = arith.constant 0.000000e+00 : f32
    %4 = vector.broadcast %cst : f32 to vector<2x1x8xf32>
    %5 = arith.cmpf ogt, %3, %4 : vector<2x1x8xf32>
    %cst_3 = arith.constant 0.000000e+00 : f32
    %cst_4 = arith.constant -1.000000e+09 : f32
    %6 = vector.broadcast %cst_3 : f32 to vector<2x1x8xf32>
    %7 = vector.broadcast %cst_4 : f32 to vector<2x1x8xf32>
    %8 = arith.select %5, %6, %7 : vector<2x1x8xi1>, vector<2x1x8xf32>
    %c0_5 = arith.constant 0 : index
    %c0_6 = arith.constant 0 : index
    %9 = vector.load %arg22[%c0_5, %c0_6] : memref<16x32xf32, #tpu.memory_space<vmem>>, vector<16x32xf32>
    %c0_7 = arith.constant 0 : index
    %c0_8 = arith.constant 0 : index
    %c0_9 = arith.constant 0 : index
    %10 = vector.load %arg3[%c0_7, %c0_8, %c0_9] : memref<2x8x32xf32, #tpu.memory_space<vmem>>, vector<2x8x32xf32>
    %11 = vector.shape_cast %10 : vector<2x8x32xf32> to vector<16x32xf32>
    %c0_10 = arith.constant 0 : index
    %c0_11 = arith.constant 0 : index
    %c0_12 = arith.constant 0 : index
    %12 = vector.load %arg5[%c0_10, %c0_11, %c0_12] : memref<1x1x32xf32, #tpu.memory_space<vmem>>, vector<1x1x32xf32>
    %13 = vector.shape_cast %12 : vector<1x1x32xf32> to vector<1x32xf32>
    %c0_13 = arith.constant 0 : index
    %c0_14 = arith.constant 0 : index
    %c0_15 = arith.constant 0 : index
    %14 = vector.load %arg6[%c0_13, %c0_14, %c0_15] : memref<1x1x32xf32, #tpu.memory_space<vmem>>, vector<1x1x32xf32>
    %15 = vector.shape_cast %14 : vector<1x1x32xf32> to vector<1x32xf32>
    %cst_16 = arith.constant dense<0.000000e+00> : vector<16xf32>
    %16 = vector.multi_reduction <add>, %9, %cst_16 [1] : vector<16x32xf32> to vector<16xf32>
    %17 = vector.shape_cast %16 : vector<16xf32> to vector<16x1xf32>
    %cst_17 = arith.constant 3.200000e+01 : f32
    %18 = vector.broadcast %cst_17 : f32 to vector<16x1xf32>
    %19 = arith.divf %17, %18 : vector<16x1xf32>
    %20 = vector.broadcast %19 : vector<16x1xf32> to vector<16x32xf32>
    %21 = arith.subf %9, %20 : vector<16x32xf32>
    %22 = arith.mulf %21, %21 : vector<16x32xf32>
    %cst_18 = arith.constant dense<0.000000e+00> : vector<16xf32>
    %23 = vector.multi_reduction <add>, %22, %cst_18 [1] : vector<16x32xf32> to vector<16xf32>
    %24 = vector.shape_cast %23 : vector<16xf32> to vector<16x1xf32>
    %cst_19 = arith.constant 3.200000e+01 : f32
    %25 = vector.broadcast %cst_19 : f32 to vector<16x1xf32>
    %26 = arith.divf %24, %25 : vector<16x1xf32>
    %27 = vector.broadcast %19 : vector<16x1xf32> to vector<16x32xf32>
    %28 = arith.subf %9, %27 : vector<16x32xf32>
    %cst_20 = arith.constant 9.99999974E-6 : f32
    %29 = vector.broadcast %cst_20 : f32 to vector<16x1xf32>
    %30 = arith.addf %26, %29 : vector<16x1xf32>
    %31 = math.rsqrt %30 : vector<16x1xf32>
    %32 = vector.broadcast %31 : vector<16x1xf32> to vector<16x32xf32>
    %33 = arith.mulf %28, %32 : vector<16x32xf32>
    %34 = vector.broadcast %13 : vector<1x32xf32> to vector<16x32xf32>
    %35 = arith.mulf %33, %34 : vector<16x32xf32>
    %36 = vector.broadcast %15 : vector<1x32xf32> to vector<16x32xf32>
    %37 = arith.addf %35, %36 : vector<16x32xf32>
    %c0_21 = arith.constant 0 : index
    %c0_22 = arith.constant 0 : index
    %c0_23 = arith.constant 0 : index
    %38 = vector.load %arg7[%c0_21, %c0_22, %c0_23] : memref<1x32x32xf32, #tpu.memory_space<vmem>>, vector<1x32x32xf32>
    %39 = vector.shape_cast %38 : vector<1x32x32xf32> to vector<32x32xf32>
    %cst_24 = arith.constant dense<0.000000e+00> : vector<16x32xf32>
    %40 = tpu.matmul %37, %39, %cst_24 {dimension_numbers = #tpu.dot_dimension_numbers<[1], [0], [0], [1], [0, 0, 1, 1], [], []>} : vector<16x32xf32>, vector<32x32xf32>, vector<16x32xf32> -> vector<16x32xf32>
    %c0_25 = arith.constant 0 : index
    %c0_26 = arith.constant 0 : index
    %c0_27 = arith.constant 0 : index
    %41 = vector.load %arg8[%c0_25, %c0_26, %c0_27] : memref<1x1x32xf32, #tpu.memory_space<vmem>>, vector<1x1x32xf32>
    %42 = vector.shape_cast %41 : vector<1x1x32xf32> to vector<1x32xf32>
    %43 = vector.broadcast %42 : vector<1x32xf32> to vector<16x32xf32>
    %44 = arith.addf %40, %43 : vector<16x32xf32>
    %cst_28 = arith.constant 5.000000e-01 : f32
    %45 = vector.broadcast %cst_28 : f32 to vector<16x32xf32>
    %46 = arith.mulf %44, %45 : vector<16x32xf32>
    %c0_29 = arith.constant 0 : index
    %c0_30 = arith.constant 0 : index
    %c0_31 = arith.constant 0 : index
    %47 = vector.load %arg9[%c0_29, %c0_30, %c0_31] : memref<1x32x32xf32, #tpu.memory_space<vmem>>, vector<1x32x32xf32>
    %48 = vector.shape_cast %47 : vector<1x32x32xf32> to vector<32x32xf32>
    %cst_32 = arith.constant dense<0.000000e+00> : vector<16x32xf32>
    %49 = tpu.matmul %11, %48, %cst_32 {dimension_numbers = #tpu.dot_dimension_numbers<[1], [0], [0], [1], [0, 0, 1, 1], [], []>} : vector<16x32xf32>, vector<32x32xf32>, vector<16x32xf32> -> vector<16x32xf32>
    %c0_33 = arith.constant 0 : index
    %c0_34 = arith.constant 0 : index
    %c0_35 = arith.constant 0 : index
    %50 = vector.load %arg10[%c0_33, %c0_34, %c0_35] : memref<1x1x32xf32, #tpu.memory_space<vmem>>, vector<1x1x32xf32>
    %51 = vector.shape_cast %50 : vector<1x1x32xf32> to vector<1x32xf32>
    %52 = vector.broadcast %51 : vector<1x32xf32> to vector<16x32xf32>
    %53 = arith.addf %49, %52 : vector<16x32xf32>
    %c0_36 = arith.constant 0 : index
    %c0_37 = arith.constant 0 : index
    %c0_38 = arith.constant 0 : index
    %54 = vector.load %arg11[%c0_36, %c0_37, %c0_38] : memref<1x32x32xf32, #tpu.memory_space<vmem>>, vector<1x32x32xf32>
    %55 = vector.shape_cast %54 : vector<1x32x32xf32> to vector<32x32xf32>
    %cst_39 = arith.constant dense<0.000000e+00> : vector<16x32xf32>
    %56 = tpu.matmul %11, %55, %cst_39 {dimension_numbers = #tpu.dot_dimension_numbers<[1], [0], [0], [1], [0, 0, 1, 1], [], []>} : vector<16x32xf32>, vector<32x32xf32>, vector<16x32xf32> -> vector<16x32xf32>
    %c0_40 = arith.constant 0 : index
    %c0_41 = arith.constant 0 : index
    %c0_42 = arith.constant 0 : index
    %57 = vector.load %arg12[%c0_40, %c0_41, %c0_42] : memref<1x1x32xf32, #tpu.memory_space<vmem>>, vector<1x1x32xf32>
    %58 = vector.shape_cast %57 : vector<1x1x32xf32> to vector<1x32xf32>
    %59 = vector.broadcast %58 : vector<1x32xf32> to vector<16x32xf32>
    %60 = arith.addf %56, %59 : vector<16x32xf32>
    %61 = vector.shape_cast %46 : vector<16x32xf32> to vector<2x8x32xf32>
    %62 = vector.shape_cast %53 : vector<16x32xf32> to vector<2x8x32xf32>
    %63 = vector.shape_cast %60 : vector<16x32xf32> to vector<2x8x32xf32>
    %64 = vector.extract_strided_slice %61 {offsets = [0, 0, 0], sizes = [2, 8, 4], strides = [1, 1, 1]} : vector<2x8x32xf32> to vector<2x8x4xf32>
    %65 = vector.extract_strided_slice %62 {offsets = [0, 0, 0], sizes = [2, 8, 4], strides = [1, 1, 1]} : vector<2x8x32xf32> to vector<2x8x4xf32>
    %66 = vector.extract_strided_slice %63 {offsets = [0, 0, 0], sizes = [2, 8, 4], strides = [1, 1, 1]} : vector<2x8x32xf32> to vector<2x8x4xf32>
    "tpu.trace_start"() <{level = 10 : i32, message = "bqd,bkd->bqk"}> : () -> ()
    %cst_43 = arith.constant dense<0.000000e+00> : vector<2x8x8xf32>
    %67 = tpu.matmul %64, %65, %cst_43 {dimension_numbers = #tpu.dot_dimension_numbers<[2], [2], [1], [1], [0, 0, 0, 1, 1, 1], [0], [0]>} : vector<2x8x4xf32>, vector<2x8x4xf32>, vector<2x8x8xf32> -> vector<2x8x8xf32>
    "tpu.trace_stop"() : () -> ()
    %68 = vector.broadcast %8 : vector<2x1x8xf32> to vector<2x8x8xf32>
    %69 = arith.addf %67, %68 : vector<2x8x8xf32>
    %cst_44 = arith.constant dense<0xFF800000> : vector<2x8xf32>
    %70 = vector.multi_reduction <maximumf>, %69, %cst_44 [2] : vector<2x8x8xf32> to vector<2x8xf32>
    %71 = vector.shape_cast %70 : vector<2x8xf32> to vector<2x8x1xf32>
    %72 = vector.broadcast %71 : vector<2x8x1xf32> to vector<2x8x8xf32>
    %73 = arith.subf %69, %72 : vector<2x8x8xf32>
    %74 = math.exp %73 : vector<2x8x8xf32>
    %cst_45 = arith.constant dense<0.000000e+00> : vector<2x8xf32>
    %75 = vector.multi_reduction <add>, %74, %cst_45 [2] : vector<2x8x8xf32> to vector<2x8xf32>
    %76 = vector.shape_cast %75 : vector<2x8xf32> to vector<2x8x1xf32>
    %77 = tpu.reciprocal %76 {approx = true} : vector<2x8x1xf32> -> vector<2x8x1xf32>
    "tpu.trace_start"() <{level = 10 : i32, message = "bqk,bkd->bqd"}> : () -> ()
    %cst_46 = arith.constant dense<0.000000e+00> : vector<2x8x4xf32>
    %78 = tpu.matmul %74, %66, %cst_46 {dimension_numbers = #tpu.dot_dimension_numbers<[2], [1], [1], [2], [0, 0, 0, 1, 1, 2], [0], [0]>} : vector<2x8x8xf32>, vector<2x8x4xf32>, vector<2x8x4xf32> -> vector<2x8x4xf32>
    "tpu.trace_stop"() : () -> ()
    %79 = vector.broadcast %77 : vector<2x8x1xf32> to vector<2x8x4xf32>
    %80 = arith.mulf %78, %79 : vector<2x8x4xf32>
    %c0_47 = arith.constant 0 : index
    %c0_48 = arith.constant 0 : index
    %c0_49 = arith.constant 0 : index
    %81 = vector.load %arg23[%c0_47, %c0_48, %c0_49] : memref<2x8x32xf32, #tpu.memory_space<vmem>>, vector<2x8x4xf32>
    tpu.vector_store %arg23[%c0_47, %c0_48, %c0_49], %80 {strides = array<i32>} : memref<2x8x32xf32, #tpu.memory_space<vmem>>, vector<2x8x4xf32>,
    %82 = vector.extract_strided_slice %61 {offsets = [0, 0, 4], sizes = [2, 8, 4], strides = [1, 1, 1]} : vector<2x8x32xf32> to vector<2x8x4xf32>
    %83 = vector.extract_strided_slice %62 {offsets = [0, 0, 4], sizes = [2, 8, 4], strides = [1, 1, 1]} : vector<2x8x32xf32> to vector<2x8x4xf32>
    %84 = vector.extract_strided_slice %63 {offsets = [0, 0, 4], sizes = [2, 8, 4], strides = [1, 1, 1]} : vector<2x8x32xf32> to vector<2x8x4xf32>
    "tpu.trace_start"() <{level = 10 : i32, message = "bqd,bkd->bqk"}> : () -> ()
    %cst_50 = arith.constant dense<0.000000e+00> : vector<2x8x8xf32>
    %85 = tpu.matmul %82, %83, %cst_50 {dimension_numbers = #tpu.dot_dimension_numbers<[2], [2], [1], [1], [0, 0, 0, 1, 1, 1], [0], [0]>} : vector<2x8x4xf32>, vector<2x8x4xf32>, vector<2x8x8xf32> -> vector<2x8x8xf32>
    "tpu.trace_stop"() : () -> ()
    %86 = vector.broadcast %8 : vector<2x1x8xf32> to vector<2x8x8xf32>
    %87 = arith.addf %85, %86 : vector<2x8x8xf32>
    %cst_51 = arith.constant dense<0xFF800000> : vector<2x8xf32>
    %88 = vector.multi_reduction <maximumf>, %87, %cst_51 [2] : vector<2x8x8xf32> to vector<2x8xf32>
    %89 = vector.shape_cast %88 : vector<2x8xf32> to vector<2x8x1xf32>
    %90 = vector.broadcast %89 : vector<2x8x1xf32> to vector<2x8x8xf32>
    %91 = arith.subf %87, %90 : vector<2x8x8xf32>
    %92 = math.exp %91 : vector<2x8x8xf32>
    %cst_52 = arith.constant dense<0.000000e+00> : vector<2x8xf32>
    %93 = vector.multi_reduction <add>, %92, %cst_52 [2] : vector<2x8x8xf32> to vector<2x8xf32>
    %94 = vector.shape_cast %93 : vector<2x8xf32> to vector<2x8x1xf32>
    %95 = tpu.reciprocal %94 {approx = true} : vector<2x8x1xf32> -> vector<2x8x1xf32>
    "tpu.trace_start"() <{level = 10 : i32, message = "bqk,bkd->bqd"}> : () -> ()
    %cst_53 = arith.constant dense<0.000000e+00> : vector<2x8x4xf32>
    %96 = tpu.matmul %92, %84, %cst_53 {dimension_numbers = #tpu.dot_dimension_numbers<[2], [1], [1], [2], [0, 0, 0, 1, 1, 2], [0], [0]>} : vector<2x8x8xf32>, vector<2x8x4xf32>, vector<2x8x4xf32> -> vector<2x8x4xf32>
    "tpu.trace_stop"() : () -> ()
    %97 = vector.broadcast %95 : vector<2x8x1xf32> to vector<2x8x4xf32>
    %98 = arith.mulf %96, %97 : vector<2x8x4xf32>
    %c0_54 = arith.constant 0 : index
    %c0_55 = arith.constant 0 : index
    %c4 = arith.constant 4 : index
    %99 = vector.load %arg23[%c0_54, %c0_55, %c4] : memref<2x8x32xf32, #tpu.memory_space<vmem>>, vector<2x8x4xf32>
    tpu.vector_store %arg23[%c0_54, %c0_55, %c4], %98 {strides = array<i32>} : memref<2x8x32xf32, #tpu.memory_space<vmem>>, vector<2x8x4xf32>,
    %100 = vector.extract_strided_slice %61 {offsets = [0, 0, 8], sizes = [2, 8, 4], strides = [1, 1, 1]} : vector<2x8x32xf32> to vector<2x8x4xf32>
    %101 = vector.extract_strided_slice %62 {offsets = [0, 0, 8], sizes = [2, 8, 4], strides = [1, 1, 1]} : vector<2x8x32xf32> to vector<2x8x4xf32>
    %102 = vector.extract_strided_slice %63 {offsets = [0, 0, 8], sizes = [2, 8, 4], strides = [1, 1, 1]} : vector<2x8x32xf32> to vector<2x8x4xf32>
    "tpu.trace_start"() <{level = 10 : i32, message = "bqd,bkd->bqk"}> : () -> ()
    %cst_56 = arith.constant dense<0.000000e+00> : vector<2x8x8xf32>
    %103 = tpu.matmul %100, %101, %cst_56 {dimension_numbers = #tpu.dot_dimension_numbers<[2], [2], [1], [1], [0, 0, 0, 1, 1, 1], [0], [0]>} : vector<2x8x4xf32>, vector<2x8x4xf32>, vector<2x8x8xf32> -> vector<2x8x8xf32>
    "tpu.trace_stop"() : () -> ()
    %104 = vector.broadcast %8 : vector<2x1x8xf32> to vector<2x8x8xf32>
    %105 = arith.addf %103, %104 : vector<2x8x8xf32>
    %cst_57 = arith.constant dense<0xFF800000> : vector<2x8xf32>
    %106 = vector.multi_reduction <maximumf>, %105, %cst_57 [2] : vector<2x8x8xf32> to vector<2x8xf32>
    %107 = vector.shape_cast %106 : vector<2x8xf32> to vector<2x8x1xf32>
    %108 = vector.broadcast %107 : vector<2x8x1xf32> to vector<2x8x8xf32>
    %109 = arith.subf %105, %108 : vector<2x8x8xf32>
    %110 = math.exp %109 : vector<2x8x8xf32>
    %cst_58 = arith.constant dense<0.000000e+00> : vector<2x8xf32>
    %111 = vector.multi_reduction <add>, %110, %cst_58 [2] : vector<2x8x8xf32> to vector<2x8xf32>
    %112 = vector.shape_cast %111 : vector<2x8xf32> to vector<2x8x1xf32>
    %113 = tpu.reciprocal %112 {approx = true} : vector<2x8x1xf32> -> vector<2x8x1xf32>
    "tpu.trace_start"() <{level = 10 : i32, message = "bqk,bkd->bqd"}> : () -> ()
    %cst_59 = arith.constant dense<0.000000e+00> : vector<2x8x4xf32>
    %114 = tpu.matmul %110, %102, %cst_59 {dimension_numbers = #tpu.dot_dimension_numbers<[2], [1], [1], [2], [0, 0, 0, 1, 1, 2], [0], [0]>} : vector<2x8x8xf32>, vector<2x8x4xf32>, vector<2x8x4xf32> -> vector<2x8x4xf32>
    "tpu.trace_stop"() : () -> ()
    %115 = vector.broadcast %113 : vector<2x8x1xf32> to vector<2x8x4xf32>
    %116 = arith.mulf %114, %115 : vector<2x8x4xf32>
    %c0_60 = arith.constant 0 : index
    %c0_61 = arith.constant 0 : index
    %c8 = arith.constant 8 : index
    %117 = vector.load %arg23[%c0_60, %c0_61, %c8] : memref<2x8x32xf32, #tpu.memory_space<vmem>>, vector<2x8x4xf32>
    tpu.vector_store %arg23[%c0_60, %c0_61, %c8], %116 {strides = array<i32>} : memref<2x8x32xf32, #tpu.memory_space<vmem>>, vector<2x8x4xf32>,
    %118 = vector.extract_strided_slice %61 {offsets = [0, 0, 12], sizes = [2, 8, 4], strides = [1, 1, 1]} : vector<2x8x32xf32> to vector<2x8x4xf32>
    %119 = vector.extract_strided_slice %62 {offsets = [0, 0, 12], sizes = [2, 8, 4], strides = [1, 1, 1]} : vector<2x8x32xf32> to vector<2x8x4xf32>
    %120 = vector.extract_strided_slice %63 {offsets = [0, 0, 12], sizes = [2, 8, 4], strides = [1, 1, 1]} : vector<2x8x32xf32> to vector<2x8x4xf32>
    "tpu.trace_start"() <{level = 10 : i32, message = "bqd,bkd->bqk"}> : () -> ()
    %cst_62 = arith.constant dense<0.000000e+00> : vector<2x8x8xf32>
    %121 = tpu.matmul %118, %119, %cst_62 {dimension_numbers = #tpu.dot_dimension_numbers<[2], [2], [1], [1], [0, 0, 0, 1, 1, 1], [0], [0]>} : vector<2x8x4xf32>, vector<2x8x4xf32>, vector<2x8x8xf32> -> vector<2x8x8xf32>
    "tpu.trace_stop"() : () -> ()
    %122 = vector.broadcast %8 : vector<2x1x8xf32> to vector<2x8x8xf32>
    %123 = arith.addf %121, %122 : vector<2x8x8xf32>
    %cst_63 = arith.constant dense<0xFF800000> : vector<2x8xf32>
    %124 = vector.multi_reduction <maximumf>, %123, %cst_63 [2] : vector<2x8x8xf32> to vector<2x8xf32>
    %125 = vector.shape_cast %124 : vector<2x8xf32> to vector<2x8x1xf32>
    %126 = vector.broadcast %125 : vector<2x8x1xf32> to vector<2x8x8xf32>
    %127 = arith.subf %123, %126 : vector<2x8x8xf32>
    %128 = math.exp %127 : vector<2x8x8xf32>
    %cst_64 = arith.constant dense<0.000000e+00> : vector<2x8xf32>
    %129 = vector.multi_reduction <add>, %128, %cst_64 [2] : vector<2x8x8xf32> to vector<2x8xf32>
    %130 = vector.shape_cast %129 : vector<2x8xf32> to vector<2x8x1xf32>
    %131 = tpu.reciprocal %130 {approx = true} : vector<2x8x1xf32> -> vector<2x8x1xf32>
    "tpu.trace_start"() <{level = 10 : i32, message = "bqk,bkd->bqd"}> : () -> ()
    %cst_65 = arith.constant dense<0.000000e+00> : vector<2x8x4xf32>
    %132 = tpu.matmul %128, %120, %cst_65 {dimension_numbers = #tpu.dot_dimension_numbers<[2], [1], [1], [2], [0, 0, 0, 1, 1, 2], [0], [0]>} : vector<2x8x8xf32>, vector<2x8x4xf32>, vector<2x8x4xf32> -> vector<2x8x4xf32>
    "tpu.trace_stop"() : () -> ()
    %133 = vector.broadcast %131 : vector<2x8x1xf32> to vector<2x8x4xf32>
    %134 = arith.mulf %132, %133 : vector<2x8x4xf32>
    %c0_66 = arith.constant 0 : index
    %c0_67 = arith.constant 0 : index
    %c12 = arith.constant 12 : index
    %135 = vector.load %arg23[%c0_66, %c0_67, %c12] : memref<2x8x32xf32, #tpu.memory_space<vmem>>, vector<2x8x4xf32>
    tpu.vector_store %arg23[%c0_66, %c0_67, %c12], %134 {strides = array<i32>} : memref<2x8x32xf32, #tpu.memory_space<vmem>>, vector<2x8x4xf32>,
    %136 = vector.extract_strided_slice %61 {offsets = [0, 0, 16], sizes = [2, 8, 4], strides = [1, 1, 1]} : vector<2x8x32xf32> to vector<2x8x4xf32>
    %137 = vector.extract_strided_slice %62 {offsets = [0, 0, 16], sizes = [2, 8, 4], strides = [1, 1, 1]} : vector<2x8x32xf32> to vector<2x8x4xf32>
    %138 = vector.extract_strided_slice %63 {offsets = [0, 0, 16], sizes = [2, 8, 4], strides = [1, 1, 1]} : vector<2x8x32xf32> to vector<2x8x4xf32>
    "tpu.trace_start"() <{level = 10 : i32, message = "bqd,bkd->bqk"}> : () -> ()
    %cst_68 = arith.constant dense<0.000000e+00> : vector<2x8x8xf32>
    %139 = tpu.matmul %136, %137, %cst_68 {dimension_numbers = #tpu.dot_dimension_numbers<[2], [2], [1], [1], [0, 0, 0, 1, 1, 1], [0], [0]>} : vector<2x8x4xf32>, vector<2x8x4xf32>, vector<2x8x8xf32> -> vector<2x8x8xf32>
    "tpu.trace_stop"() : () -> ()
    %140 = vector.broadcast %8 : vector<2x1x8xf32> to vector<2x8x8xf32>
    %141 = arith.addf %139, %140 : vector<2x8x8xf32>
    %cst_69 = arith.constant dense<0xFF800000> : vector<2x8xf32>
    %142 = vector.multi_reduction <maximumf>, %141, %cst_69 [2] : vector<2x8x8xf32> to vector<2x8xf32>
    %143 = vector.shape_cast %142 : vector<2x8xf32> to vector<2x8x1xf32>
    %144 = vector.broadcast %143 : vector<2x8x1xf32> to vector<2x8x8xf32>
    %145 = arith.subf %141, %144 : vector<2x8x8xf32>
    %146 = math.exp %145 : vector<2x8x8xf32>
    %cst_70 = arith.constant dense<0.000000e+00> : vector<2x8xf32>
    %147 = vector.multi_reduction <add>, %146, %cst_70 [2] : vector<2x8x8xf32> to vector<2x8xf32>
    %148 = vector.shape_cast %147 : vector<2x8xf32> to vector<2x8x1xf32>
    %149 = tpu.reciprocal %148 {approx = true} : vector<2x8x1xf32> -> vector<2x8x1xf32>
    "tpu.trace_start"() <{level = 10 : i32, message = "bqk,bkd->bqd"}> : () -> ()
    %cst_71 = arith.constant dense<0.000000e+00> : vector<2x8x4xf32>
    %150 = tpu.matmul %146, %138, %cst_71 {dimension_numbers = #tpu.dot_dimension_numbers<[2], [1], [1], [2], [0, 0, 0, 1, 1, 2], [0], [0]>} : vector<2x8x8xf32>, vector<2x8x4xf32>, vector<2x8x4xf32> -> vector<2x8x4xf32>
    "tpu.trace_stop"() : () -> ()
    %151 = vector.broadcast %149 : vector<2x8x1xf32> to vector<2x8x4xf32>
    %152 = arith.mulf %150, %151 : vector<2x8x4xf32>
    %c0_72 = arith.constant 0 : index
    %c0_73 = arith.constant 0 : index
    %c16 = arith.constant 16 : index
    %153 = vector.load %arg23[%c0_72, %c0_73, %c16] : memref<2x8x32xf32, #tpu.memory_space<vmem>>, vector<2x8x4xf32>
    tpu.vector_store %arg23[%c0_72, %c0_73, %c16], %152 {strides = array<i32>} : memref<2x8x32xf32, #tpu.memory_space<vmem>>, vector<2x8x4xf32>,
    %154 = vector.extract_strided_slice %61 {offsets = [0, 0, 20], sizes = [2, 8, 4], strides = [1, 1, 1]} : vector<2x8x32xf32> to vector<2x8x4xf32>
    %155 = vector.extract_strided_slice %62 {offsets = [0, 0, 20], sizes = [2, 8, 4], strides = [1, 1, 1]} : vector<2x8x32xf32> to vector<2x8x4xf32>
    %156 = vector.extract_strided_slice %63 {offsets = [0, 0, 20], sizes = [2, 8, 4], strides = [1, 1, 1]} : vector<2x8x32xf32> to vector<2x8x4xf32>
    "tpu.trace_start"() <{level = 10 : i32, message = "bqd,bkd->bqk"}> : () -> ()
    %cst_74 = arith.constant dense<0.000000e+00> : vector<2x8x8xf32>
    %157 = tpu.matmul %154, %155, %cst_74 {dimension_numbers = #tpu.dot_dimension_numbers<[2], [2], [1], [1], [0, 0, 0, 1, 1, 1], [0], [0]>} : vector<2x8x4xf32>, vector<2x8x4xf32>, vector<2x8x8xf32> -> vector<2x8x8xf32>
    "tpu.trace_stop"() : () -> ()
    %158 = vector.broadcast %8 : vector<2x1x8xf32> to vector<2x8x8xf32>
    %159 = arith.addf %157, %158 : vector<2x8x8xf32>
    %cst_75 = arith.constant dense<0xFF800000> : vector<2x8xf32>
    %160 = vector.multi_reduction <maximumf>, %159, %cst_75 [2] : vector<2x8x8xf32> to vector<2x8xf32>
    %161 = vector.shape_cast %160 : vector<2x8xf32> to vector<2x8x1xf32>
    %162 = vector.broadcast %161 : vector<2x8x1xf32> to vector<2x8x8xf32>
    %163 = arith.subf %159, %162 : vector<2x8x8xf32>
    %164 = math.exp %163 : vector<2x8x8xf32>
    %cst_76 = arith.constant dense<0.000000e+00> : vector<2x8xf32>
    %165 = vector.multi_reduction <add>, %164, %cst_76 [2] : vector<2x8x8xf32> to vector<2x8xf32>
    %166 = vector.shape_cast %165 : vector<2x8xf32> to vector<2x8x1xf32>
    %167 = tpu.reciprocal %166 {approx = true} : vector<2x8x1xf32> -> vector<2x8x1xf32>
    "tpu.trace_start"() <{level = 10 : i32, message = "bqk,bkd->bqd"}> : () -> ()
    %cst_77 = arith.constant dense<0.000000e+00> : vector<2x8x4xf32>
    %168 = tpu.matmul %164, %156, %cst_77 {dimension_numbers = #tpu.dot_dimension_numbers<[2], [1], [1], [2], [0, 0, 0, 1, 1, 2], [0], [0]>} : vector<2x8x8xf32>, vector<2x8x4xf32>, vector<2x8x4xf32> -> vector<2x8x4xf32>
    "tpu.trace_stop"() : () -> ()
    %169 = vector.broadcast %167 : vector<2x8x1xf32> to vector<2x8x4xf32>
    %170 = arith.mulf %168, %169 : vector<2x8x4xf32>
    %c0_78 = arith.constant 0 : index
    %c0_79 = arith.constant 0 : index
    %c20 = arith.constant 20 : index
    %171 = vector.load %arg23[%c0_78, %c0_79, %c20] : memref<2x8x32xf32, #tpu.memory_space<vmem>>, vector<2x8x4xf32>
    tpu.vector_store %arg23[%c0_78, %c0_79, %c20], %170 {strides = array<i32>} : memref<2x8x32xf32, #tpu.memory_space<vmem>>, vector<2x8x4xf32>,
    %172 = vector.extract_strided_slice %61 {offsets = [0, 0, 24], sizes = [2, 8, 4], strides = [1, 1, 1]} : vector<2x8x32xf32> to vector<2x8x4xf32>
    %173 = vector.extract_strided_slice %62 {offsets = [0, 0, 24], sizes = [2, 8, 4], strides = [1, 1, 1]} : vector<2x8x32xf32> to vector<2x8x4xf32>
    %174 = vector.extract_strided_slice %63 {offsets = [0, 0, 24], sizes = [2, 8, 4], strides = [1, 1, 1]} : vector<2x8x32xf32> to vector<2x8x4xf32>
    "tpu.trace_start"() <{level = 10 : i32, message = "bqd,bkd->bqk"}> : () -> ()
    %cst_80 = arith.constant dense<0.000000e+00> : vector<2x8x8xf32>
    %175 = tpu.matmul %172, %173, %cst_80 {dimension_numbers = #tpu.dot_dimension_numbers<[2], [2], [1], [1], [0, 0, 0, 1, 1, 1], [0], [0]>} : vector<2x8x4xf32>, vector<2x8x4xf32>, vector<2x8x8xf32> -> vector<2x8x8xf32>
    "tpu.trace_stop"() : () -> ()
    %176 = vector.broadcast %8 : vector<2x1x8xf32> to vector<2x8x8xf32>
    %177 = arith.addf %175, %176 : vector<2x8x8xf32>
    %cst_81 = arith.constant dense<0xFF800000> : vector<2x8xf32>
    %178 = vector.multi_reduction <maximumf>, %177, %cst_81 [2] : vector<2x8x8xf32> to vector<2x8xf32>
    %179 = vector.shape_cast %178 : vector<2x8xf32> to vector<2x8x1xf32>
    %180 = vector.broadcast %179 : vector<2x8x1xf32> to vector<2x8x8xf32>
    %181 = arith.subf %177, %180 : vector<2x8x8xf32>
    %182 = math.exp %181 : vector<2x8x8xf32>
    %cst_82 = arith.constant dense<0.000000e+00> : vector<2x8xf32>
    %183 = vector.multi_reduction <add>, %182, %cst_82 [2] : vector<2x8x8xf32> to vector<2x8xf32>
    %184 = vector.shape_cast %183 : vector<2x8xf32> to vector<2x8x1xf32>
    %185 = tpu.reciprocal %184 {approx = true} : vector<2x8x1xf32> -> vector<2x8x1xf32>
    "tpu.trace_start"() <{level = 10 : i32, message = "bqk,bkd->bqd"}> : () -> ()
    %cst_83 = arith.constant dense<0.000000e+00> : vector<2x8x4xf32>
    %186 = tpu.matmul %182, %174, %cst_83 {dimension_numbers = #tpu.dot_dimension_numbers<[2], [1], [1], [2], [0, 0, 0, 1, 1, 2], [0], [0]>} : vector<2x8x8xf32>, vector<2x8x4xf32>, vector<2x8x4xf32> -> vector<2x8x4xf32>
    "tpu.trace_stop"() : () -> ()
    %187 = vector.broadcast %185 : vector<2x8x1xf32> to vector<2x8x4xf32>
    %188 = arith.mulf %186, %187 : vector<2x8x4xf32>
    %c0_84 = arith.constant 0 : index
    %c0_85 = arith.constant 0 : index
    %c24 = arith.constant 24 : index
    %189 = vector.load %arg23[%c0_84, %c0_85, %c24] : memref<2x8x32xf32, #tpu.memory_space<vmem>>, vector<2x8x4xf32>
    tpu.vector_store %arg23[%c0_84, %c0_85, %c24], %188 {strides = array<i32>} : memref<2x8x32xf32, #tpu.memory_space<vmem>>, vector<2x8x4xf32>,
    %190 = vector.extract_strided_slice %61 {offsets = [0, 0, 28], sizes = [2, 8, 4], strides = [1, 1, 1]} : vector<2x8x32xf32> to vector<2x8x4xf32>
    %191 = vector.extract_strided_slice %62 {offsets = [0, 0, 28], sizes = [2, 8, 4], strides = [1, 1, 1]} : vector<2x8x32xf32> to vector<2x8x4xf32>
    %192 = vector.extract_strided_slice %63 {offsets = [0, 0, 28], sizes = [2, 8, 4], strides = [1, 1, 1]} : vector<2x8x32xf32> to vector<2x8x4xf32>
    "tpu.trace_start"() <{level = 10 : i32, message = "bqd,bkd->bqk"}> : () -> ()
    %cst_86 = arith.constant dense<0.000000e+00> : vector<2x8x8xf32>
    %193 = tpu.matmul %190, %191, %cst_86 {dimension_numbers = #tpu.dot_dimension_numbers<[2], [2], [1], [1], [0, 0, 0, 1, 1, 1], [0], [0]>} : vector<2x8x4xf32>, vector<2x8x4xf32>, vector<2x8x8xf32> -> vector<2x8x8xf32>
    "tpu.trace_stop"() : () -> ()
    %194 = vector.broadcast %8 : vector<2x1x8xf32> to vector<2x8x8xf32>
    %195 = arith.addf %193, %194 : vector<2x8x8xf32>
    %cst_87 = arith.constant dense<0xFF800000> : vector<2x8xf32>
    %196 = vector.multi_reduction <maximumf>, %195, %cst_87 [2] : vector<2x8x8xf32> to vector<2x8xf32>
    %197 = vector.shape_cast %196 : vector<2x8xf32> to vector<2x8x1xf32>
    %198 = vector.broadcast %197 : vector<2x8x1xf32> to vector<2x8x8xf32>
    %199 = arith.subf %195, %198 : vector<2x8x8xf32>
    %200 = math.exp %199 : vector<2x8x8xf32>
    %cst_88 = arith.constant dense<0.000000e+00> : vector<2x8xf32>
    %201 = vector.multi_reduction <add>, %200, %cst_88 [2] : vector<2x8x8xf32> to vector<2x8xf32>
    %202 = vector.shape_cast %201 : vector<2x8xf32> to vector<2x8x1xf32>
    %203 = tpu.reciprocal %202 {approx = true} : vector<2x8x1xf32> -> vector<2x8x1xf32>
    "tpu.trace_start"() <{level = 10 : i32, message = "bqk,bkd->bqd"}> : () -> ()
    %cst_89 = arith.constant dense<0.000000e+00> : vector<2x8x4xf32>
    %204 = tpu.matmul %200, %192, %cst_89 {dimension_numbers = #tpu.dot_dimension_numbers<[2], [1], [1], [2], [0, 0, 0, 1, 1, 2], [0], [0]>} : vector<2x8x8xf32>, vector<2x8x4xf32>, vector<2x8x4xf32> -> vector<2x8x4xf32>
    "tpu.trace_stop"() : () -> ()
    %205 = vector.broadcast %203 : vector<2x8x1xf32> to vector<2x8x4xf32>
    %206 = arith.mulf %204, %205 : vector<2x8x4xf32>
    %c0_90 = arith.constant 0 : index
    %c0_91 = arith.constant 0 : index
    %c28 = arith.constant 28 : index
    %207 = vector.load %arg23[%c0_90, %c0_91, %c28] : memref<2x8x32xf32, #tpu.memory_space<vmem>>, vector<2x8x4xf32>
    tpu.vector_store %arg23[%c0_90, %c0_91, %c28], %206 {strides = array<i32>} : memref<2x8x32xf32, #tpu.memory_space<vmem>>, vector<2x8x4xf32>,
    %c0_92 = arith.constant 0 : index
    %c0_93 = arith.constant 0 : index
    %c0_94 = arith.constant 0 : index
    %208 = vector.load %arg23[%c0_92, %c0_93, %c0_94] : memref<2x8x32xf32, #tpu.memory_space<vmem>>, vector<2x8x32xf32>
    %209 = vector.shape_cast %208 : vector<2x8x32xf32> to vector<16x32xf32>
    %c0_95 = arith.constant 0 : index
    %c0_96 = arith.constant 0 : index
    %c0_97 = arith.constant 0 : index
    %210 = vector.load %arg13[%c0_95, %c0_96, %c0_97] : memref<1x32x32xf32, #tpu.memory_space<vmem>>, vector<1x32x32xf32>
    %211 = vector.shape_cast %210 : vector<1x32x32xf32> to vector<32x32xf32>
    %cst_98 = arith.constant dense<0.000000e+00> : vector<16x32xf32>
    %212 = tpu.matmul %209, %211, %cst_98 {dimension_numbers = #tpu.dot_dimension_numbers<[1], [0], [0], [1], [0, 0, 1, 1], [], []>} : vector<16x32xf32>, vector<32x32xf32>, vector<16x32xf32> -> vector<16x32xf32>
    %c0_99 = arith.constant 0 : index
    %c0_100 = arith.constant 0 : index
    %c0_101 = arith.constant 0 : index
    %213 = vector.load %arg14[%c0_99, %c0_100, %c0_101] : memref<1x1x32xf32, #tpu.memory_space<vmem>>, vector<1x1x32xf32>
    %214 = vector.shape_cast %213 : vector<1x1x32xf32> to vector<1x32xf32>
    %215 = vector.broadcast %214 : vector<1x32xf32> to vector<16x32xf32>
    %216 = arith.addf %212, %215 : vector<16x32xf32>
    %217 = arith.addf %216, %9 : vector<16x32xf32>
    %c0_102 = arith.constant 0 : index
    %c0_103 = arith.constant 0 : index
    %c0_104 = arith.constant 0 : index
    %218 = vector.load %arg17[%c0_102, %c0_103, %c0_104] : memref<1x1x32xf32, #tpu.memory_space<vmem>>, vector<1x1x32xf32>
    %219 = vector.shape_cast %218 : vector<1x1x32xf32> to vector<1x32xf32>
    %c0_105 = arith.constant 0 : index
    %c0_106 = arith.constant 0 : index
    %c0_107 = arith.constant 0 : index
    %220 = vector.load %arg18[%c0_105, %c0_106, %c0_107] : memref<1x1x32xf32, #tpu.memory_space<vmem>>, vector<1x1x32xf32>
    %221 = vector.shape_cast %220 : vector<1x1x32xf32> to vector<1x32xf32>
    %cst_108 = arith.constant dense<0.000000e+00> : vector<16xf32>
    %222 = vector.multi_reduction <add>, %217, %cst_108 [1] : vector<16x32xf32> to vector<16xf32>
    %223 = vector.shape_cast %222 : vector<16xf32> to vector<16x1xf32>
    %cst_109 = arith.constant 3.200000e+01 : f32
    %224 = vector.broadcast %cst_109 : f32 to vector<16x1xf32>
    %225 = arith.divf %223, %224 : vector<16x1xf32>
    %226 = vector.broadcast %225 : vector<16x1xf32> to vector<16x32xf32>
    %227 = arith.subf %217, %226 : vector<16x32xf32>
    %228 = arith.mulf %227, %227 : vector<16x32xf32>
    %cst_110 = arith.constant dense<0.000000e+00> : vector<16xf32>
    %229 = vector.multi_reduction <add>, %228, %cst_110 [1] : vector<16x32xf32> to vector<16xf32>
    %230 = vector.shape_cast %229 : vector<16xf32> to vector<16x1xf32>
    %cst_111 = arith.constant 3.200000e+01 : f32
    %231 = vector.broadcast %cst_111 : f32 to vector<16x1xf32>
    %232 = arith.divf %230, %231 : vector<16x1xf32>
    %233 = vector.broadcast %225 : vector<16x1xf32> to vector<16x32xf32>
    %234 = arith.subf %217, %233 : vector<16x32xf32>
    %cst_112 = arith.constant 9.99999974E-6 : f32
    %235 = vector.broadcast %cst_112 : f32 to vector<16x1xf32>
    %236 = arith.addf %232, %235 : vector<16x1xf32>
    %237 = math.rsqrt %236 : vector<16x1xf32>
    %238 = vector.broadcast %237 : vector<16x1xf32> to vector<16x32xf32>
    %239 = arith.mulf %234, %238 : vector<16x32xf32>
    %240 = vector.broadcast %219 : vector<1x32xf32> to vector<16x32xf32>
    %241 = arith.mulf %239, %240 : vector<16x32xf32>
    %242 = vector.broadcast %221 : vector<1x32xf32> to vector<16x32xf32>
    %243 = arith.addf %241, %242 : vector<16x32xf32>
    %c0_113 = arith.constant 0 : index
    %c0_114 = arith.constant 0 : index
    %c0_115 = arith.constant 0 : index
    %244 = vector.load %arg15[%c0_113, %c0_114, %c0_115] : memref<1x32x32xf32, #tpu.memory_space<vmem>>, vector<1x32x32xf32>
    %245 = vector.shape_cast %244 : vector<1x32x32xf32> to vector<32x32xf32>
    %cst_116 = arith.constant dense<0.000000e+00> : vector<16x32xf32>
    %246 = tpu.matmul %243, %245, %cst_116 {dimension_numbers = #tpu.dot_dimension_numbers<[1], [0], [0], [1], [0, 0, 1, 1], [], []>} : vector<16x32xf32>, vector<32x32xf32>, vector<16x32xf32> -> vector<16x32xf32>
    %c0_117 = arith.constant 0 : index
    %c0_118 = arith.constant 0 : index
    %c0_119 = arith.constant 0 : index
    %247 = vector.load %arg16[%c0_117, %c0_118, %c0_119] : memref<1x1x32xf32, #tpu.memory_space<vmem>>, vector<1x1x32xf32>
    %248 = vector.shape_cast %247 : vector<1x1x32xf32> to vector<1x32xf32>
    %249 = vector.broadcast %248 : vector<1x32xf32> to vector<16x32xf32>
    %250 = arith.addf %246, %249 : vector<16x32xf32>
    %cst_120 = arith.constant 0.000000e+00 : f32
    %251 = vector.broadcast %cst_120 : f32 to vector<16x32xf32>
    %252 = arith.maximumf %250, %251 : vector<16x32xf32>
    %253 = arith.addf %252, %217 : vector<16x32xf32>
    %c0_121 = arith.constant 0 : index
    %c0_122 = arith.constant 0 : index
    %254 = vector.load %arg22[%c0_121, %c0_122] : memref<16x32xf32, #tpu.memory_space<vmem>>, vector<16x32xf32>
    tpu.vector_store %arg22[%c0_121, %c0_122], %253 {strides = array<i32>} : memref<16x32xf32, #tpu.memory_space<vmem>>, vector<16x32xf32>,
    %c1_i32 = arith.constant 1 : i32
    %255 = arith.cmpi eq, %arg1, %c1_i32 : i32
    %256 = arith.extui %255 : i1 to i32
    %c0_i32_123 = arith.constant 0 : i32
    %257 = arith.cmpi ne, %256, %c0_i32_123 : i32
    scf.if %257 {
      %c0_124 = arith.constant 0 : index
      %c0_125 = arith.constant 0 : index
      %258 = vector.load %arg19[%c0_124, %c0_125] : memref<1x32xf32, #tpu.memory_space<vmem>>, vector<1x32xf32>
      %c0_126 = arith.constant 0 : index
      %c0_127 = arith.constant 0 : index
      %259 = vector.load %arg20[%c0_126, %c0_127] : memref<1x32xf32, #tpu.memory_space<vmem>>, vector<1x32xf32>
      %cst_128 = arith.constant dense<0.000000e+00> : vector<16xf32>
      %260 = vector.multi_reduction <add>, %253, %cst_128 [1] : vector<16x32xf32> to vector<16xf32>
      %261 = vector.shape_cast %260 : vector<16xf32> to vector<16x1xf32>
      %cst_129 = arith.constant 3.200000e+01 : f32
      %262 = vector.broadcast %cst_129 : f32 to vector<16x1xf32>
      %263 = arith.divf %261, %262 : vector<16x1xf32>
      %264 = vector.broadcast %263 : vector<16x1xf32> to vector<16x32xf32>
      %265 = arith.subf %253, %264 : vector<16x32xf32>
      %266 = arith.mulf %265, %265 : vector<16x32xf32>
      %cst_130 = arith.constant dense<0.000000e+00> : vector<16xf32>
      %267 = vector.multi_reduction <add>, %266, %cst_130 [1] : vector<16x32xf32> to vector<16xf32>
      %268 = vector.shape_cast %267 : vector<16xf32> to vector<16x1xf32>
      %cst_131 = arith.constant 3.200000e+01 : f32
      %269 = vector.broadcast %cst_131 : f32 to vector<16x1xf32>
      %270 = arith.divf %268, %269 : vector<16x1xf32>
      %271 = vector.broadcast %263 : vector<16x1xf32> to vector<16x32xf32>
      %272 = arith.subf %253, %271 : vector<16x32xf32>
      %cst_132 = arith.constant 9.99999974E-6 : f32
      %273 = vector.broadcast %cst_132 : f32 to vector<16x1xf32>
      %274 = arith.addf %270, %273 : vector<16x1xf32>
      %275 = math.rsqrt %274 : vector<16x1xf32>
      %276 = vector.broadcast %275 : vector<16x1xf32> to vector<16x32xf32>
      %277 = arith.mulf %272, %276 : vector<16x32xf32>
      %278 = vector.broadcast %258 : vector<1x32xf32> to vector<16x32xf32>
      %279 = arith.mulf %277, %278 : vector<16x32xf32>
      %280 = vector.broadcast %259 : vector<1x32xf32> to vector<16x32xf32>
      %281 = arith.addf %279, %280 : vector<16x32xf32>
      %282 = vector.shape_cast %281 : vector<16x32xf32> to vector<2x8x32xf32>
      %c0_133 = arith.constant 0 : index
      %c0_134 = arith.constant 0 : index
      %c0_135 = arith.constant 0 : index
      %283 = vector.load %arg21[%c0_133, %c0_134, %c0_135] : memref<2x8x32xf32, #tpu.memory_space<vmem>>, vector<2x8x32xf32>
      tpu.vector_store %arg21[%c0_133, %c0_134, %c0_135], %282 {strides = array<i32>} : memref<2x8x32xf32, #tpu.memory_space<vmem>>, vector<2x8x32xf32>,
    } else {
    }
    return
  }
  func.func @transform_0(%arg0: i32, %arg1: i32) -> (i32, i32, i32) {
    %c0_i32 = arith.constant 0 : i32
    %c0_i32_0 = arith.constant 0 : i32
    %c0_i32_1 = arith.constant 0 : i32
    return %arg0, %c0_i32, %c0_i32_0 : i32, i32, i32
  }
  func.func @transform_1(%arg0: i32, %arg1: i32) -> (i32, i32, i32) {
    %c0_i32 = arith.constant 0 : i32
    %c0_i32_0 = arith.constant 0 : i32
    %c0_i32_1 = arith.constant 0 : i32
    return %arg0, %c0_i32, %c0_i32_0 : i32, i32, i32
  }
  func.func @transform_2(%arg0: i32, %arg1: i32) -> (i32, i32, i32) {
    %c0_i32 = arith.constant 0 : i32
    %c0_i32_0 = arith.constant 0 : i32
    %c0_i32_1 = arith.constant 0 : i32
    return %arg0, %c0_i32, %c0_i32_0 : i32, i32, i32
  }
  func.func @transform_3(%arg0: i32, %arg1: i32) -> (i32, i32, i32) {
    %c0_i32 = arith.constant 0 : i32
    %c0_i32_0 = arith.constant 0 : i32
    %c0_i32_1 = arith.constant 0 : i32
    return %arg1, %c0_i32, %c0_i32_0 : i32, i32, i32
  }
  func.func @transform_4(%arg0: i32, %arg1: i32) -> (i32, i32, i32) {
    %c0_i32 = arith.constant 0 : i32
    %c0_i32_0 = arith.constant 0 : i32
    %c0_i32_1 = arith.constant 0 : i32
    return %arg1, %c0_i32, %c0_i32_0 : i32, i32, i32
  }
  func.func @transform_5(%arg0: i32, %arg1: i32) -> (i32, i32, i32) {
    %c0_i32 = arith.constant 0 : i32
    %c0_i32_0 = arith.constant 0 : i32
    %c0_i32_1 = arith.constant 0 : i32
    return %arg1, %c0_i32, %c0_i32_0 : i32, i32, i32
  }
  func.func @transform_6(%arg0: i32, %arg1: i32) -> (i32, i32, i32) {
    %c0_i32 = arith.constant 0 : i32
    %c0_i32_0 = arith.constant 0 : i32
    %c0_i32_1 = arith.constant 0 : i32
    return %arg1, %c0_i32, %c0_i32_0 : i32, i32, i32
  }
  func.func @transform_7(%arg0: i32, %arg1: i32) -> (i32, i32, i32) {
    %c0_i32 = arith.constant 0 : i32
    %c0_i32_0 = arith.constant 0 : i32
    %c0_i32_1 = arith.constant 0 : i32
    return %arg1, %c0_i32, %c0_i32_0 : i32, i32, i32
  }
  func.func @transform_8(%arg0: i32, %arg1: i32) -> (i32, i32, i32) {
    %c0_i32 = arith.constant 0 : i32
    %c0_i32_0 = arith.constant 0 : i32
    %c0_i32_1 = arith.constant 0 : i32
    return %arg1, %c0_i32, %c0_i32_0 : i32, i32, i32
  }
  func.func @transform_9(%arg0: i32, %arg1: i32) -> (i32, i32, i32) {
    %c0_i32 = arith.constant 0 : i32
    %c0_i32_0 = arith.constant 0 : i32
    %c0_i32_1 = arith.constant 0 : i32
    return %arg1, %c0_i32, %c0_i32_0 : i32, i32, i32
  }
  func.func @transform_10(%arg0: i32, %arg1: i32) -> (i32, i32, i32) {
    %c0_i32 = arith.constant 0 : i32
    %c0_i32_0 = arith.constant 0 : i32
    %c0_i32_1 = arith.constant 0 : i32
    return %arg1, %c0_i32, %c0_i32_0 : i32, i32, i32
  }
  func.func @transform_11(%arg0: i32, %arg1: i32) -> (i32, i32, i32) {
    %c0_i32 = arith.constant 0 : i32
    %c0_i32_0 = arith.constant 0 : i32
    %c0_i32_1 = arith.constant 0 : i32
    return %arg1, %c0_i32, %c0_i32_0 : i32, i32, i32
  }
  func.func @transform_12(%arg0: i32, %arg1: i32) -> (i32, i32, i32) {
    %c0_i32 = arith.constant 0 : i32
    %c0_i32_0 = arith.constant 0 : i32
    %c0_i32_1 = arith.constant 0 : i32
    return %arg1, %c0_i32, %c0_i32_0 : i32, i32, i32
  }
  func.func @transform_13(%arg0: i32, %arg1: i32) -> (i32, i32, i32) {
    %c0_i32 = arith.constant 0 : i32
    %c0_i32_0 = arith.constant 0 : i32
    %c0_i32_1 = arith.constant 0 : i32
    return %arg1, %c0_i32, %c0_i32_0 : i32, i32, i32
  }
  func.func @transform_14(%arg0: i32, %arg1: i32) -> (i32, i32, i32) {
    %c0_i32 = arith.constant 0 : i32
    %c0_i32_0 = arith.constant 0 : i32
    %c0_i32_1 = arith.constant 0 : i32
    return %arg1, %c0_i32, %c0_i32_0 : i32, i32, i32
  }
  func.func @transform_15(%arg0: i32, %arg1: i32) -> (i32, i32, i32) {
    %c0_i32 = arith.constant 0 : i32
    %c0_i32_0 = arith.constant 0 : i32
    %c0_i32_1 = arith.constant 0 : i32
    return %arg1, %c0_i32, %c0_i32_0 : i32, i32, i32
  }
  func.func @transform_16(%arg0: i32, %arg1: i32) -> (i32, i32, i32) {
    %c0_i32 = arith.constant 0 : i32
    %c0_i32_0 = arith.constant 0 : i32
    %c0_i32_1 = arith.constant 0 : i32
    return %arg1, %c0_i32, %c0_i32_0 : i32, i32, i32
  }
  func.func @transform_17(%arg0: i32, %arg1: i32) -> (i32, i32) {
    %c0_i32 = arith.constant 0 : i32
    %c0_i32_0 = arith.constant 0 : i32
    %c0_i32_1 = arith.constant 0 : i32
    return %c0_i32, %c0_i32_0 : i32, i32
  }
  func.func @transform_18(%arg0: i32, %arg1: i32) -> (i32, i32) {
    %c0_i32 = arith.constant 0 : i32
    %c0_i32_0 = arith.constant 0 : i32
    %c0_i32_1 = arith.constant 0 : i32
    return %c0_i32, %c0_i32_0 : i32, i32
  }
  func.func @transform_19(%arg0: i32, %arg1: i32) -> (i32, i32, i32) {
    %c0_i32 = arith.constant 0 : i32
    %c0_i32_0 = arith.constant 0 : i32
    %c0_i32_1 = arith.constant 0 : i32
    return %arg0, %c0_i32, %c0_i32_0 : i32, i32, i32
  }
}

</mosaic_0001>

<llo_original>
// kernel: tpu_custom_call.1
$region0: #{tpu_custom_call.1}
  #allocation0 [shape = 'u32[]', space=smem, size = 0x4, offset = 0x4, fixed_abs, tag = 'smem constant byte address 0x4 - core index']
  #allocation1 [shape = 'u32[72,128]{1,0:T(1,128)}', space=vmem, size = 0x9000, scoped, tag = 'internal scratch']
  #allocation2 [shape = 'f32[16,32]{1,0:T(8,128)}', space=vmem, size = 0x2000, scoped, tag = 'scratch operand']
  #allocation3 [shape = 'f32[2,8,32]{2,1,0:T(8,128)}', space=vmem, size = 0x2000, scoped, tag = 'scratch operand']
  %s0 = inlined_call_operand.hbm [shape: f32[2,8,32], index: 0, kind: input, shape index: {}]
  %s1 = inlined_call_operand.hbm [shape: f32[2,8,32], index: 1, kind: input, shape index: {}]
  %s2 = inlined_call_operand.hbm [shape: f32[2,1,8], index: 2, kind: input, shape index: {}]
  %s3 = inlined_call_operand.vmem [shape: f32[2,1,32], index: 3, kind: input, shape index: {}]
  %s4 = inlined_call_operand.hbm [shape: f32[2,1,32], index: 4, kind: input, shape index: {}]
  %s5 = inlined_call_operand.hbm [shape: f32[2,32,32], index: 5, kind: input, shape index: {}]
  %s6 = inlined_call_operand.vmem [shape: f32[2,1,32], index: 6, kind: input, shape index: {}]
  %s7 = inlined_call_operand.hbm [shape: f32[2,32,32], index: 7, kind: input, shape index: {}]
  %s8 = inlined_call_operand.vmem [shape: f32[2,1,32], index: 8, kind: input, shape index: {}]
  %s9 = inlined_call_operand.hbm [shape: f32[2,32,32], index: 9, kind: input, shape index: {}]
  %s10 = inlined_call_operand.vmem [shape: f32[2,1,32], index: 10, kind: input, shape index: {}]
  %s11 = inlined_call_operand.hbm [shape: f32[2,32,32], index: 11, kind: input, shape index: {}]
  %s12 = inlined_call_operand.vmem [shape: f32[2,1,32], index: 12, kind: input, shape index: {}]
  %s13 = inlined_call_operand.hbm [shape: f32[2,32,32], index: 13, kind: input, shape index: {}]
  %s14 = inlined_call_operand.vmem [shape: f32[2,1,32], index: 14, kind: input, shape index: {}]
  %s15 = inlined_call_operand.vmem [shape: f32[2,1,32], index: 15, kind: input, shape index: {}]
  %s16 = inlined_call_operand.hbm [shape: f32[2,1,32], index: 16, kind: input, shape index: {}]
  %s17 = inlined_call_operand.vmem [shape: f32[1,32], index: 17, kind: input, shape index: {}]
  %s18 = inlined_call_operand.vmem [shape: f32[1,32], index: 18, kind: input, shape index: {}]
  %s19 = inlined_call_operand.hbm [shape: f32[2,8,32], index: 19, kind: output, shape index: {}]
  %s20 = sld [smem:[#allocation0]]
  $region157: #{tpu_custom_call.1} parent=0
    _
  %s22 = ssub.s32 1, %s20
  %s23 = scalar_select 0, %s22, %s20
  $region1: #{tpu_custom_call.1} parent=0
    #allocation4 [shape = 'u8[8192]{0}', space=vmem, size = 0x2000, scoped, tag = 'input window, operand 0, single buffered']
    #allocation5 [shape = 's32[2]{0}', space=sflag, size = 0x8, scoped, tag = 'scoped memory for tpu_custom_call.1']
    #allocation6 [shape = 's32[2]{0}', space=sflag, size = 0x8, scoped, tag = 'scoped memory for tpu_custom_call.1']
    #allocation7 [shape = 'u8[8192]{0}', space=vmem, size = 0x2000, scoped, tag = 'input window, operand 1, single buffered']
    #allocation8 [shape = 's32[1]{0}', space=sflag, size = 0x4, scoped, tag = 'scoped memory for tpu_custom_call.1']
    #allocation9 [shape = 'u8[1024]{0}', space=vmem, size = 0x400, scoped, tag = 'input window, operand 2, single buffered']
    #allocation10 [shape = 'u8[1024]{0}', space=vmem, size = 0x400, scoped, tag = 'input window, operand 4']
    #allocation11 [shape = 's32[2]{0}', space=sflag, size = 0x8, scoped, tag = 'scoped memory for tpu_custom_call.1']
    #allocation12 [shape = 'u8[32768]{0}', space=vmem, size = 0x8000, scoped, tag = 'input window, operand 5']
    #allocation13 [shape = 'u8[32768]{0}', space=vmem, size = 0x8000, scoped, tag = 'input window, operand 7']
    #allocation14 [shape = 's32[2]{0}', space=sflag, size = 0x8, scoped, tag = 'scoped memory for tpu_custom_call.1']
    #allocation15 [shape = 'u8[32768]{0}', space=vmem, size = 0x8000, scoped, tag = 'input window, operand 9']
    #allocation16 [shape = 'u8[32768]{0}', space=vmem, size = 0x8000, scoped, tag = 'input window, operand 11']
    #allocation17 [shape = 's32[2]{0}', space=sflag, size = 0x8, scoped, tag = 'scoped memory for tpu_custom_call.1']
    #allocation18 [shape = 'u8[32768]{0}', space=vmem, size = 0x8000, scoped, tag = 'input window, operand 13']
    #allocation19 [shape = 'u8[1024]{0}', space=vmem, size = 0x400, scoped, tag = 'input window, operand 16']
    #allocation20 [shape = 's32[2]{0}', space=sflag, size = 0x8, scoped, tag = 'scoped memory for tpu_custom_call.1']
    #allocation21 [shape = 'u8[8192]{0}', space=vmem, size = 0x2000, scoped, tag = 'output window, operand 0, single buffered']
    %24 = vsyncpa [#allocation5], 0
    %25 = vsyncpa [#allocation8], 0
    %26 = vsyncpa [#allocation11], 0
    %s27 = scalar_lea.sflag [#allocation11], 1
    %28 = vsyncpa %s27, 0
    %29 = vsyncpa [#allocation14], 0
    %s30 = scalar_lea.sflag [#allocation14], 1
    %31 = vsyncpa %s30, 0
    %32 = vsyncpa [#allocation17], 0
    %s33 = scalar_lea.sflag [#allocation17], 1
    %34 = vsyncpa %s33, 0
    %35 = vsyncpa [#allocation20], 0
    %s36 = scalar_lea.sflag [#allocation20], 1
    %37 = vsyncpa %s36, 0
    %38 = vsyncpa [#allocation6], 0
    loop: start=0, step=1, limit=4
    $region2: #{tpu_custom_call.1} parent=1 // loop_pre_header
      _
    $region3: #{tpu_custom_call.1} parent=1 // loop_header
      %s40 = sphi 0, %s44
      %p41 = scmp.ge.s32.totalorder %s40, 4
      %s47 = sphi 0, %s59
      %s48 = sphi 0, %s55
      %s49 = sphi 0, %s47
      %s50 = sphi 0, %s48
      %s51 = sphi 0, %s49
      %s52 = sphi 0, %s50
      %s62 = sphi 0, %s64
      %s65 = sphi 0, %s62
      %s66 = sphi 0, %s65
      %s82 = sphi 0, %s66
      %s88 = sphi 0, %s90
      %s91 = sphi 0, %s88
      %s92 = sphi 0, %s91
      %s108 = sphi 0, %s92
      %s114 = sphi 0, %s116
      %s117 = sphi 0, %s114
      %s118 = sphi 0, %s117
      %s134 = sphi 0, %s118
      %s140 = sphi 0, %s142
      %s143 = sphi 0, %s140
      %s144 = sphi 0, %s143
      %s160 = sphi 0, %s144
      %s166 = sphi 0, %s168
      %s169 = sphi 0, %s166
      %s170 = sphi 0, %s169
      %s186 = sphi 0, %s170
      %s192 = sphi 0, %s194
      %s195 = sphi 0, %s192
      %s196 = sphi 0, %s195
      %s212 = sphi 0, %s196
      %s218 = sphi 0, %s220
      %s221 = sphi 0, %s218
      %s222 = sphi 0, %s221
      %s238 = sphi 0, %s222
      %s244 = sphi 0, %s246
      %s247 = sphi 0, %s244
      %s248 = sphi 0, %s247
      %s264 = sphi 0, %s248
      %s270 = sphi 0, %s272
      %s273 = sphi 0, %s270
      %s274 = sphi 0, %s273
      %s290 = sphi 0, %s274
      %s296 = sphi 0, %s298
      %s299 = sphi 0, %s296
      %s300 = sphi 0, %s299
      %s316 = sphi 0, %s300
      %s322 = sphi 0, %s324
      %s325 = sphi 0, %s322
      %s326 = sphi 0, %s325
      %s342 = sphi 0, %s326
      %s348 = sphi 0, %s350
      %s351 = sphi 0, %s348
      %s352 = sphi 0, %s351
      %s368 = sphi 0, %s352
      %s374 = sphi 0, %s376
      %s377 = sphi 0, %s374
      %s378 = sphi 0, %s377
      %s394 = sphi 0, %s378
      %s400 = sphi 0, %s402
      %s403 = sphi 0, %s400
      %s404 = sphi 0, %s403
      %s420 = sphi 0, %s404
      %s426 = sphi 0, %s428
      %s429 = sphi 0, %s426
      %s430 = sphi 0, %s429
      %s446 = sphi 0, %s430
      %s452 = sphi 0, %s454
      %s455 = sphi 0, %s452
      %s456 = sphi 0, %s455
      %s472 = sphi 0, %s456
      %s478 = sphi 0, %s480
      %s481 = sphi 0, %s478
      %s482 = sphi 0, %s481
      %s498 = sphi 0, %s482
      %s502 = sphi 0, %s502
      %s504 = sphi 0, %s502
      %s505 = sphi 0, %s504
      %s519 = sphi 0, %s505
      %s523 = sphi 0, %s523
      %s525 = sphi 0, %s523
      %s526 = sphi 0, %s525
      %s540 = sphi 0, %s526
      %s546 = sphi 0, %s548
      %s549 = sphi 0, %s546
      %s550 = sphi 0, %s549
      %s566 = sphi 0, %s550
    $region4: #{tpu_custom_call.1} parent=1 // loop_header_branch
      %43 = sbr.rel (%p41) target = $region8
    $region5: #{tpu_custom_call.1} parent=1 // loop_body
      %s45 = ssub.s32 %s40, 1
      %s46 = ssub.s32 %s40, 2
      %s53 = sadd.s32 1, %s48
      %p54 = scmp.ge.s32.totalorder %s53, 2
      %s55 = scalar_select %p54, 0, %s53
      %s56 = sadd.s32 1, %s47
      %s57 = scalar_select %p54, %s56, %s47
      %p58 = scmp.ge.s32.totalorder %s57, 1
      %s59 = scalar_select %p58, 0, %s57
      %s60 = ssub.s32 %s47, %s59
      %p61 = scmp.eq.s32.totalorder %s60, 0
      %s63 = sadd.s32 %s62, 1
      %s64 = scalar_select %p61, %s62, %s63
      %p67 = pneg %p61
      %p68 = scmp.eq.s32.totalorder %s40, 1
      %p69 = por %p67, %p68
      %p70 = scmp.ne.s32.totalorder %s62, %s65
      %p71 = scmp.eq.s32.totalorder %s40, 0
      %p72 = por %p70, %p71
      %p73 = scmp.ne.s32.totalorder %s62, %s65
      %p74 = scmp.eq.s32.totalorder %s45, 1
      %p75 = por %p73, %p74
      %p76 = scmp.ne.s32.totalorder %s65, %s66
      %p77 = scmp.eq.s32.totalorder %s45, 0
      %p78 = por %p76, %p77
      %p79 = scmp.ne.s32.totalorder %s65, %s66
      %p80 = scmp.eq.s32.totalorder %s46, 1
      %p81 = por %p79, %p80
      %p83 = scmp.ne.s32.totalorder %s66, %s82
      %p84 = scmp.eq.s32.totalorder %s46, 0
      %p85 = por %p83, %p84
      %s86 = ssub.s32 %s47, %s59
      %p87 = scmp.eq.s32.totalorder %s86, 0
      %s89 = sadd.s32 %s88, 1
      %s90 = scalar_select %p87, %s88, %s89
      %p93 = pneg %p87
      %p94 = scmp.eq.s32.totalorder %s40, 1
      %p95 = por %p93, %p94
      %p96 = scmp.ne.s32.totalorder %s88, %s91
      %p97 = scmp.eq.s32.totalorder %s40, 0
      %p98 = por %p96, %p97
      %p99 = scmp.ne.s32.totalorder %s88, %s91
      %p100 = scmp.eq.s32.totalorder %s45, 1
      %p101 = por %p99, %p100
      %p102 = scmp.ne.s32.totalorder %s91, %s92
      %p103 = scmp.eq.s32.totalorder %s45, 0
      %p104 = por %p102, %p103
      %p105 = scmp.ne.s32.totalorder %s91, %s92
      %p106 = scmp.eq.s32.totalorder %s46, 1
      %p107 = por %p105, %p106
      %p109 = scmp.ne.s32.totalorder %s92, %s108
      %p110 = scmp.eq.s32.totalorder %s46, 0
      %p111 = por %p109, %p110
      %s112 = ssub.s32 %s47, %s59
      %p113 = scmp.eq.s32.totalorder %s112, 0
      %s115 = sadd.s32 %s114, 1
      %s116 = scalar_select %p113, %s114, %s115
      %p119 = pneg %p113
      %p120 = scmp.eq.s32.totalorder %s40, 1
      %p121 = por %p119, %p120
      %p122 = scmp.ne.s32.totalorder %s114, %s117
      %p123 = scmp.eq.s32.totalorder %s40, 0
      %p124 = por %p122, %p123
      %p125 = scmp.ne.s32.totalorder %s114, %s117
      %p126 = scmp.eq.s32.totalorder %s45, 1
      %p127 = por %p125, %p126
      %p128 = scmp.ne.s32.totalorder %s117, %s118
      %p129 = scmp.eq.s32.totalorder %s45, 0
      %p130 = por %p128, %p129
      %p131 = scmp.ne.s32.totalorder %s117, %s118
      %p132 = scmp.eq.s32.totalorder %s46, 1
      %p133 = por %p131, %p132
      %p135 = scmp.ne.s32.totalorder %s118, %s134
      %p136 = scmp.eq.s32.totalorder %s46, 0
      %p137 = por %p135, %p136
      %s138 = ssub.s32 %s48, %s55
      %p139 = scmp.eq.s32.totalorder %s138, 0
      %s141 = sadd.s32 %s140, 1
      %s142 = scalar_select %p139, %s140, %s141
      %p145 = pneg %p139
      %p146 = scmp.eq.s32.totalorder %s40, 1
      %p147 = por %p145, %p146
      %p148 = scmp.ne.s32.totalorder %s140, %s143
      %p149 = scmp.eq.s32.totalorder %s40, 0
      %p150 = por %p148, %p149
      %p151 = scmp.ne.s32.totalorder %s140, %s143
      %p152 = scmp.eq.s32.totalorder %s45, 1
      %p153 = por %p151, %p152
      %p154 = scmp.ne.s32.totalorder %s143, %s144
      %p155 = scmp.eq.s32.totalorder %s45, 0
      %p156 = por %p154, %p155
      %p157 = scmp.ne.s32.totalorder %s143, %s144
      %p158 = scmp.eq.s32.totalorder %s46, 1
      %p159 = por %p157, %p158
      %p161 = scmp.ne.s32.totalorder %s144, %s160
      %p162 = scmp.eq.s32.totalorder %s46, 0
      %p163 = por %p161, %p162
      %s164 = ssub.s32 %s48, %s55
      %p165 = scmp.eq.s32.totalorder %s164, 0
      %s167 = sadd.s32 %s166, 1
      %s168 = scalar_select %p165, %s166, %s167
      %p171 = pneg %p165
      %p172 = scmp.eq.s32.totalorder %s40, 1
      %p173 = por %p171, %p172
      %p174 = scmp.ne.s32.totalorder %s166, %s169
      %p175 = scmp.eq.s32.totalorder %s40, 0
      %p176 = por %p174, %p175
      %p177 = scmp.ne.s32.totalorder %s166, %s169
      %p178 = scmp.eq.s32.totalorder %s45, 1
      %p179 = por %p177, %p178
      %p180 = scmp.ne.s32.totalorder %s169, %s170
      %p181 = scmp.eq.s32.totalorder %s45, 0
      %p182 = por %p180, %p181
      %p183 = scmp.ne.s32.totalorder %s169, %s170
      %p184 = scmp.eq.s32.totalorder %s46, 1
      %p185 = por %p183, %p184
      %p187 = scmp.ne.s32.totalorder %s170, %s186
      %p188 = scmp.eq.s32.totalorder %s46, 0
      %p189 = por %p187, %p188
      %s190 = ssub.s32 %s48, %s55
      %p191 = scmp.eq.s32.totalorder %s190, 0
      %s193 = sadd.s32 %s192, 1
      %s194 = scalar_select %p191, %s192, %s193
      %p197 = pneg %p191
      %p198 = scmp.eq.s32.totalorder %s40, 1
      %p199 = por %p197, %p198
      %p200 = scmp.ne.s32.totalorder %s192, %s195
      %p201 = scmp.eq.s32.totalorder %s40, 0
      %p202 = por %p200, %p201
      %p203 = scmp.ne.s32.totalorder %s192, %s195
      %p204 = scmp.eq.s32.totalorder %s45, 1
      %p205 = por %p203, %p204
      %p206 = scmp.ne.s32.totalorder %s195, %s196
      %p207 = scmp.eq.s32.totalorder %s45, 0
      %p208 = por %p206, %p207
      %p209 = scmp.ne.s32.totalorder %s195, %s196
      %p210 = scmp.eq.s32.totalorder %s46, 1
      %p211 = por %p209, %p210
      %p213 = scmp.ne.s32.totalorder %s196, %s212
      %p214 = scmp.eq.s32.totalorder %s46, 0
      %p215 = por %p213, %p214
      %s216 = ssub.s32 %s48, %s55
      %p217 = scmp.eq.s32.totalorder %s216, 0
      %s219 = sadd.s32 %s218, 1
      %s220 = scalar_select %p217, %s218, %s219
      %p223 = pneg %p217
      %p224 = scmp.eq.s32.totalorder %s40, 1
      %p225 = por %p223, %p224
      %p226 = scmp.ne.s32.totalorder %s218, %s221
      %p227 = scmp.eq.s32.totalorder %s40, 0
      %p228 = por %p226, %p227
      %p229 = scmp.ne.s32.totalorder %s218, %s221
      %p230 = scmp.eq.s32.totalorder %s45, 1
      %p231 = por %p229, %p230
      %p232 = scmp.ne.s32.totalorder %s221, %s222
      %p233 = scmp.eq.s32.totalorder %s45, 0
      %p234 = por %p232, %p233
      %p235 = scmp.ne.s32.totalorder %s221, %s222
      %p236 = scmp.eq.s32.totalorder %s46, 1
      %p237 = por %p235, %p236
      %p239 = scmp.ne.s32.totalorder %s222, %s238
      %p240 = scmp.eq.s32.totalorder %s46, 0
      %p241 = por %p239, %p240
      %s242 = ssub.s32 %s48, %s55
      %p243 = scmp.eq.s32.totalorder %s242, 0
      %s245 = sadd.s32 %s244, 1
      %s246 = scalar_select %p243, %s244, %s245
      %p249 = pneg %p243
      %p250 = scmp.eq.s32.totalorder %s40, 1
      %p251 = por %p249, %p250
      %p252 = scmp.ne.s32.totalorder %s244, %s247
      %p253 = scmp.eq.s32.totalorder %s40, 0
      %p254 = por %p252, %p253
      %p255 = scmp.ne.s32.totalorder %s244, %s247
      %p256 = scmp.eq.s32.totalorder %s45, 1
      %p257 = por %p255, %p256
      %p258 = scmp.ne.s32.totalorder %s247, %s248
      %p259 = scmp.eq.s32.totalorder %s45, 0
      %p260 = por %p258, %p259
      %p261 = scmp.ne.s32.totalorder %s247, %s248
      %p262 = scmp.eq.s32.totalorder %s46, 1
      %p263 = por %p261, %p262
      %p265 = scmp.ne.s32.totalorder %s248, %s264
      %p266 = scmp.eq.s32.totalorder %s46, 0
      %p267 = por %p265, %p266
      %s268 = ssub.s32 %s48, %s55
      %p269 = scmp.eq.s32.totalorder %s268, 0
      %s271 = sadd.s32 %s270, 1
      %s272 = scalar_select %p269, %s270, %s271
      %p275 = pneg %p269
      %p276 = scmp.eq.s32.totalorder %s40, 1
      %p277 = por %p275, %p276
      %p278 = scmp.ne.s32.totalorder %s270, %s273
      %p279 = scmp.eq.s32.totalorder %s40, 0
      %p280 = por %p278, %p279
      %p281 = scmp.ne.s32.totalorder %s270, %s273
      %p282 = scmp.eq.s32.totalorder %s45, 1
      %p283 = por %p281, %p282
      %p284 = scmp.ne.s32.totalorder %s273, %s274
      %p285 = scmp.eq.s32.totalorder %s45, 0
      %p286 = por %p284, %p285
      %p287 = scmp.ne.s32.totalorder %s273, %s274
      %p288 = scmp.eq.s32.totalorder %s46, 1
      %p289 = por %p287, %p288
      %p291 = scmp.ne.s32.totalorder %s274, %s290
      %p292 = scmp.eq.s32.totalorder %s46, 0
      %p293 = por %p291, %p292
      %s294 = ssub.s32 %s48, %s55
      %p295 = scmp.eq.s32.totalorder %s294, 0
      %s297 = sadd.s32 %s296, 1
      %s298 = scalar_select %p295, %s296, %s297
      %p301 = pneg %p295
      %p302 = scmp.eq.s32.totalorder %s40, 1
      %p303 = por %p301, %p302
      %p304 = scmp.ne.s32.totalorder %s296, %s299
      %p305 = scmp.eq.s32.totalorder %s40, 0
      %p306 = por %p304, %p305
      %p307 = scmp.ne.s32.totalorder %s296, %s299
      %p308 = scmp.eq.s32.totalorder %s45, 1
      %p309 = por %p307, %p308
      %p310 = scmp.ne.s32.totalorder %s299, %s300
      %p311 = scmp.eq.s32.totalorder %s45, 0
      %p312 = por %p310, %p311
      %p313 = scmp.ne.s32.totalorder %s299, %s300
      %p314 = scmp.eq.s32.totalorder %s46, 1
      %p315 = por %p313, %p314
      %p317 = scmp.ne.s32.totalorder %s300, %s316
      %p318 = scmp.eq.s32.totalorder %s46, 0
      %p319 = por %p317, %p318
      %s320 = ssub.s32 %s48, %s55
      %p321 = scmp.eq.s32.totalorder %s320, 0
      %s323 = sadd.s32 %s322, 1
      %s324 = scalar_select %p321, %s322, %s323
      %p327 = pneg %p321
      %p328 = scmp.eq.s32.totalorder %s40, 1
      %p329 = por %p327, %p328
      %p330 = scmp.ne.s32.totalorder %s322, %s325
      %p331 = scmp.eq.s32.totalorder %s40, 0
      %p332 = por %p330, %p331
      %p333 = scmp.ne.s32.totalorder %s322, %s325
      %p334 = scmp.eq.s32.totalorder %s45, 1
      %p335 = por %p333, %p334
      %p336 = scmp.ne.s32.totalorder %s325, %s326
      %p337 = scmp.eq.s32.totalorder %s45, 0
      %p338 = por %p336, %p337
      %p339 = scmp.ne.s32.totalorder %s325, %s326
      %p340 = scmp.eq.s32.totalorder %s46, 1
      %p341 = por %p339, %p340
      %p343 = scmp.ne.s32.totalorder %s326, %s342
      %p344 = scmp.eq.s32.totalorder %s46, 0
      %p345 = por %p343, %p344
      %s346 = ssub.s32 %s48, %s55
      %p347 = scmp.eq.s32.totalorder %s346, 0
      %s349 = sadd.s32 %s348, 1
      %s350 = scalar_select %p347, %s348, %s349
      %p353 = pneg %p347
      %p354 = scmp.eq.s32.totalorder %s40, 1
      %p355 = por %p353, %p354
      %p356 = scmp.ne.s32.totalorder %s348, %s351
      %p357 = scmp.eq.s32.totalorder %s40, 0
      %p358 = por %p356, %p357
      %p359 = scmp.ne.s32.totalorder %s348, %s351
      %p360 = scmp.eq.s32.totalorder %s45, 1
      %p361 = por %p359, %p360
      %p362 = scmp.ne.s32.totalorder %s351, %s352
      %p363 = scmp.eq.s32.totalorder %s45, 0
      %p364 = por %p362, %p363
      %p365 = scmp.ne.s32.totalorder %s351, %s352
      %p366 = scmp.eq.s32.totalorder %s46, 1
      %p367 = por %p365, %p366
      %p369 = scmp.ne.s32.totalorder %s352, %s368
      %p370 = scmp.eq.s32.totalorder %s46, 0
      %p371 = por %p369, %p370
      %s372 = ssub.s32 %s48, %s55
      %p373 = scmp.eq.s32.totalorder %s372, 0
      %s375 = sadd.s32 %s374, 1
      %s376 = scalar_select %p373, %s374, %s375
      %p379 = pneg %p373
      %p380 = scmp.eq.s32.totalorder %s40, 1
      %p381 = por %p379, %p380
      %p382 = scmp.ne.s32.totalorder %s374, %s377
      %p383 = scmp.eq.s32.totalorder %s40, 0
      %p384 = por %p382, %p383
      %p385 = scmp.ne.s32.totalorder %s374, %s377
      %p386 = scmp.eq.s32.totalorder %s45, 1
      %p387 = por %p385, %p386
      %p388 = scmp.ne.s32.totalorder %s377, %s378
      %p389 = scmp.eq.s32.totalorder %s45, 0
      %p390 = por %p388, %p389
      %p391 = scmp.ne.s32.totalorder %s377, %s378
      %p392 = scmp.eq.s32.totalorder %s46, 1
      %p393 = por %p391, %p392
      %p395 = scmp.ne.s32.totalorder %s378, %s394
      %p396 = scmp.eq.s32.totalorder %s46, 0
      %p397 = por %p395, %p396
      %s398 = ssub.s32 %s48, %s55
      %p399 = scmp.eq.s32.totalorder %s398, 0
      %s401 = sadd.s32 %s400, 1
      %s402 = scalar_select %p399, %s400, %s401
      %p405 = pneg %p399
      %p406 = scmp.eq.s32.totalorder %s40, 1
      %p407 = por %p405, %p406
      %p408 = scmp.ne.s32.totalorder %s400, %s403
      %p409 = scmp.eq.s32.totalorder %s40, 0
      %p410 = por %p408, %p409
      %p411 = scmp.ne.s32.totalorder %s400, %s403
      %p412 = scmp.eq.s32.totalorder %s45, 1
      %p413 = por %p411, %p412
      %p414 = scmp.ne.s32.totalorder %s403, %s404
      %p415 = scmp.eq.s32.totalorder %s45, 0
      %p416 = por %p414, %p415
      %p417 = scmp.ne.s32.totalorder %s403, %s404
      %p418 = scmp.eq.s32.totalorder %s46, 1
      %p419 = por %p417, %p418
      %p421 = scmp.ne.s32.totalorder %s404, %s420
      %p422 = scmp.eq.s32.totalorder %s46, 0
      %p423 = por %p421, %p422
      %s424 = ssub.s32 %s48, %s55
      %p425 = scmp.eq.s32.totalorder %s424, 0
      %s427 = sadd.s32 %s426, 1
      %s428 = scalar_select %p425, %s426, %s427
      %p431 = pneg %p425
      %p432 = scmp.eq.s32.totalorder %s40, 1
      %p433 = por %p431, %p432
      %p434 = scmp.ne.s32.totalorder %s426, %s429
      %p435 = scmp.eq.s32.totalorder %s40, 0
      %p436 = por %p434, %p435
      %p437 = scmp.ne.s32.totalorder %s426, %s429
      %p438 = scmp.eq.s32.totalorder %s45, 1
      %p439 = por %p437, %p438
      %p440 = scmp.ne.s32.totalorder %s429, %s430
      %p441 = scmp.eq.s32.totalorder %s45, 0
      %p442 = por %p440, %p441
      %p443 = scmp.ne.s32.totalorder %s429, %s430
      %p444 = scmp.eq.s32.totalorder %s46, 1
      %p445 = por %p443, %p444
      %p447 = scmp.ne.s32.totalorder %s430, %s446
      %p448 = scmp.eq.s32.totalorder %s46, 0
      %p449 = por %p447, %p448
      %s450 = ssub.s32 %s48, %s55
      %p451 = scmp.eq.s32.totalorder %s450, 0
      %s453 = sadd.s32 %s452, 1
      %s454 = scalar_select %p451, %s452, %s453
      %p457 = pneg %p451
      %p458 = scmp.eq.s32.totalorder %s40, 1
      %p459 = por %p457, %p458
      %p460 = scmp.ne.s32.totalorder %s452, %s455
      %p461 = scmp.eq.s32.totalorder %s40, 0
      %p462 = por %p460, %p461
      %p463 = scmp.ne.s32.totalorder %s452, %s455
      %p464 = scmp.eq.s32.totalorder %s45, 1
      %p465 = por %p463, %p464
      %p466 = scmp.ne.s32.totalorder %s455, %s456
      %p467 = scmp.eq.s32.totalorder %s45, 0
      %p468 = por %p466, %p467
      %p469 = scmp.ne.s32.totalorder %s455, %s456
      %p470 = scmp.eq.s32.totalorder %s46, 1
      %p471 = por %p469, %p470
      %p473 = scmp.ne.s32.totalorder %s456, %s472
      %p474 = scmp.eq.s32.totalorder %s46, 0
      %p475 = por %p473, %p474
      %s476 = ssub.s32 %s48, %s55
      %p477 = scmp.eq.s32.totalorder %s476, 0
      %s479 = sadd.s32 %s478, 1
      %s480 = scalar_select %p477, %s478, %s479
      %p483 = pneg %p477
      %p484 = scmp.eq.s32.totalorder %s40, 1
      %p485 = por %p483, %p484
      %p486 = scmp.ne.s32.totalorder %s478, %s481
      %p487 = scmp.eq.s32.totalorder %s40, 0
      %p488 = por %p486, %p487
      %p489 = scmp.ne.s32.totalorder %s478, %s481
      %p490 = scmp.eq.s32.totalorder %s45, 1
      %p491 = por %p489, %p490
      %p492 = scmp.ne.s32.totalorder %s481, %s482
      %p493 = scmp.eq.s32.totalorder %s45, 0
      %p494 = por %p492, %p493
      %p495 = scmp.ne.s32.totalorder %s481, %s482
      %p496 = scmp.eq.s32.totalorder %s46, 1
      %p497 = por %p495, %p496
      %p499 = scmp.ne.s32.totalorder %s482, %s498
      %p500 = scmp.eq.s32.totalorder %s46, 0
      %p501 = por %p499, %p500
      %s503 = sadd.s32 %s502, 1
      %p506 = scmp.eq.s32.totalorder %s40, 1
      %p507 = scmp.ne.s32.totalorder %s502, %s504
      %p508 = scmp.eq.s32.totalorder %s40, 0
      %p509 = por %p507, %p508
      %p510 = scmp.ne.s32.totalorder %s502, %s504
      %p511 = scmp.eq.s32.totalorder %s45, 1
      %p512 = por %p510, %p511
      %p513 = scmp.ne.s32.totalorder %s504, %s505
      %p514 = scmp.eq.s32.totalorder %s45, 0
      %p515 = por %p513, %p514
      %p516 = scmp.ne.s32.totalorder %s504, %s505
      %p517 = scmp.eq.s32.totalorder %s46, 1
      %p518 = por %p516, %p517
      %p520 = scmp.ne.s32.totalorder %s505, %s519
      %p521 = scmp.eq.s32.totalorder %s46, 0
      %p522 = por %p520, %p521
      %s524 = sadd.s32 %s523, 1
      %p527 = scmp.eq.s32.totalorder %s40, 1
      %p528 = scmp.ne.s32.totalorder %s523, %s525
      %p529 = scmp.eq.s32.totalorder %s40, 0
      %p530 = por %p528, %p529
      %p531 = scmp.ne.s32.totalorder %s523, %s525
      %p532 = scmp.eq.s32.totalorder %s45, 1
      %p533 = por %p531, %p532
      %p534 = scmp.ne.s32.totalorder %s525, %s526
      %p535 = scmp.eq.s32.totalorder %s45, 0
      %p536 = por %p534, %p535
      %p537 = scmp.ne.s32.totalorder %s525, %s526
      %p538 = scmp.eq.s32.totalorder %s46, 1
      %p539 = por %p537, %p538
      %p541 = scmp.ne.s32.totalorder %s526, %s540
      %p542 = scmp.eq.s32.totalorder %s46, 0
      %p543 = por %p541, %p542
      %s544 = ssub.s32 %s47, %s59
      %p545 = scmp.eq.s32.totalorder %s544, 0
      %s547 = sadd.s32 %s546, 1
      %s548 = scalar_select %p545, %s546, %s547
      %p551 = pneg %p545
      %p552 = scmp.eq.s32.totalorder %s40, 1
      %p553 = por %p551, %p552
      %p554 = scmp.ne.s32.totalorder %s546, %s549
      %p555 = scmp.eq.s32.totalorder %s40, 0
      %p556 = por %p554, %p555
      %p557 = scmp.ne.s32.totalorder %s546, %s549
      %p558 = scmp.eq.s32.totalorder %s45, 1
      %p559 = por %p557, %p558
      %p560 = scmp.ne.s32.totalorder %s549, %s550
      %p561 = scmp.eq.s32.totalorder %s45, 0
      %p562 = por %p560, %p561
      %p563 = scmp.ne.s32.totalorder %s549, %s550
      %p564 = scmp.eq.s32.totalorder %s46, 1
      %p565 = por %p563, %p564
      %p567 = scmp.ne.s32.totalorder %s550, %s566
      %p568 = scmp.eq.s32.totalorder %s46, 0
      %p569 = por %p567, %p568
      %p570 = scmp.le.s32.totalorder 1, %s40
      %p571 = scmp.lt.s32.totalorder %s40, 3
      %p572 = pnand %p570, %p571
      %p573 = pneg %p572
      // Predicated region
      $region9: #{tpu_custom_call.1} parent=5 // pred_check
        _
      $region10: #{tpu_custom_call.1} parent=5 // pred_check_branch
        %575 = sbr.rel (%p572) target = $region12
      $region11: #{tpu_custom_call.1} parent=5 // pred_region
        %s576 = ssub.s32 %s40, 1
        // Predicated region
        $region13: #{tpu_custom_call.1} parent=11 // pred_check
          %p577 = pneg %p78
        $region14: #{tpu_custom_call.1} parent=11 // pred_check_branch
          %579 = sbr.rel (%p577) target = $region16
        $region15: #{tpu_custom_call.1} parent=11 // pred_region
          %s580 = smul.u32 2, %s49
          %582 = vsyncadd [#allocation5], 0
          %s583 = smul.addr %s580, 8
          %s584 = scalar_lea.hbm %s0, %s583
          %s585 = sshll.u32 %s584, 4
          %s586 = int_to_ptr.hbm [resolvable:$true] %s585
          %s587 = sshll.u32 [#allocation4], 4
          %s588 = int_to_ptr.vmem [resolvable:$true] %s587
          %593 = dma.hbm_to_vmem [thread:$0]  %s586, 256, %s588, [#allocation5], 128, 128, 8
        $region16: #{tpu_custom_call.1} parent=11 // pred_fallthru
          _
        // Predicated region
        $region17: #{tpu_custom_call.1} parent=11 // pred_check
          %p594 = pneg %p104
        $region18: #{tpu_custom_call.1} parent=11 // pred_check_branch
          %596 = sbr.rel (%p594) target = $region20
        $region19: #{tpu_custom_call.1} parent=11 // pred_region
          %s597 = smul.u32 2, %s49
          %599 = vsyncadd [#allocation8], 0
          %s600 = smul.addr %s597, 8
          %s601 = scalar_lea.hbm %s1, %s600
          %s602 = sshll.u32 %s601, 4
          %s603 = int_to_ptr.hbm [resolvable:$true] %s602
          %s604 = sshll.u32 [#allocation7], 4
          %s605 = int_to_ptr.vmem [resolvable:$true] %s604
          %610 = dma.hbm_to_vmem [thread:$0]  %s603, 256, %s605, [#allocation8], 128, 128, 8
        $region20: #{tpu_custom_call.1} parent=11 // pred_fallthru
          _
        // Predicated region
        $region21: #{tpu_custom_call.1} parent=11 // pred_check
          %p611 = pneg %p130
        $region22: #{tpu_custom_call.1} parent=11 // pred_check_branch
          %613 = sbr.rel (%p611) target = $region24
        $region23: #{tpu_custom_call.1} parent=11 // pred_region
          %s614 = smul.u32 2, %s49
          %616 = vsyncadd [#allocation8], 0
          %s617 = scalar_lea.hbm %s2, %s614
          %s618 = sshll.u32 %s617, 4
          %s619 = int_to_ptr.hbm [resolvable:$true] %s618
          %s620 = sshll.u32 [#allocation9], 4
          %s621 = int_to_ptr.vmem [resolvable:$true] %s620
          %626 = dma.hbm_to_vmem [thread:$0]  %s619, 32, %s621, [#allocation8], 16, 16, 1
        $region24: #{tpu_custom_call.1} parent=11 // pred_fallthru
          _
        // Predicated region
        $region25: #{tpu_custom_call.1} parent=11 // pred_check
          %p627 = pneg %p515
        $region26: #{tpu_custom_call.1} parent=11 // pred_check_branch
          %629 = sbr.rel (%p627) target = $region28
        $region27: #{tpu_custom_call.1} parent=11 // pred_region
          _
        $region28: #{tpu_custom_call.1} parent=11 // pred_fallthru
          _
        // Predicated region
        $region29: #{tpu_custom_call.1} parent=11 // pred_check
          %p630 = pneg %p536
        $region30: #{tpu_custom_call.1} parent=11 // pred_check_branch
          %632 = sbr.rel (%p630) target = $region32
        $region31: #{tpu_custom_call.1} parent=11 // pred_region
          _
        $region32: #{tpu_custom_call.1} parent=11 // pred_fallthru
          _
      $region12: #{tpu_custom_call.1} parent=5 // pred_fallthru
        _
      %p633 = scmp.lt.s32.totalorder %s40, 2
      // Predicated region
      $region33: #{tpu_custom_call.1} parent=5 // pred_check
        %p634 = pneg %p633
      $region34: #{tpu_custom_call.1} parent=5 // pred_check_branch
        %636 = sbr.rel (%p634) target = $region36
      $region35: #{tpu_custom_call.1} parent=5 // pred_region
        // Predicated region
        $region37: #{tpu_custom_call.1} parent=35 // pred_check
          %p637 = pneg %p150
        $region38: #{tpu_custom_call.1} parent=35 // pred_check_branch
          %639 = sbr.rel (%p637) target = $region40
        $region39: #{tpu_custom_call.1} parent=35 // pred_region
          %p640 = scmp.lt.s32.totalorder %s48, 1
          %s641 = scalar_select %p640, %s48, 1
          %s642 = scalar_lea.vmem %s3, %s641
        $region40: #{tpu_custom_call.1} parent=35 // pred_fallthru
          _
        // Predicated region
        $region41: #{tpu_custom_call.1} parent=35 // pred_check
          %p643 = pneg %p176
        $region42: #{tpu_custom_call.1} parent=35 // pred_check_branch
          %645 = sbr.rel (%p643) target = $region44
        $region43: #{tpu_custom_call.1} parent=35 // pred_region
          %s646 = sand.u32 %s40, 1
          %s647 = scalar_lea.sflag [#allocation11], %s646
          %s648 = sand.u32 %s166, 1
          %s649 = scalar_lea.vmem [#allocation10], %s648
          %651 = vsyncadd %s647, 0
          %s652 = scalar_lea.hbm %s4, %s48
          %s654 = sshll.u32 %s652, 4
          %s655 = int_to_ptr.hbm [resolvable:$true] %s654
          %s656 = sshll.u32 %s649, 4
          %s657 = int_to_ptr.vmem [resolvable:$true] %s656
          %659 = dma.hbm_to_vmem [thread:$0]  %s655, 16, %s657, %s647
        $region44: #{tpu_custom_call.1} parent=35 // pred_fallthru
          _
        // Predicated region
        $region45: #{tpu_custom_call.1} parent=35 // pred_check
          %p660 = pneg %p202
        $region46: #{tpu_custom_call.1} parent=35 // pred_check_branch
          %662 = sbr.rel (%p660) target = $region48
        $region47: #{tpu_custom_call.1} parent=35 // pred_region
          %s663 = sand.u32 %s40, 1
          %s664 = scalar_lea.sflag [#allocation11], %s663
          %s665 = sand.u32 %s192, 1
          %s666 = smul.addr %s665, 32
          %s667 = scalar_lea.vmem [#allocation12], %s666
          %669 = vsyncadd %s664, 0
          %s670 = smul.addr %s48, 4
          %s671 = smul.addr %s670, 8
          %s672 = scalar_lea.hbm %s5, %s671
          %s673 = sshll.u32 %s672, 4
          %s674 = int_to_ptr.hbm [resolvable:$true] %s673
          %s675 = sshll.u32 %s667, 4
          %s676 = int_to_ptr.vmem [resolvable:$true] %s675
          %681 = dma.hbm_to_vmem [thread:$0]  %s674, 512, %s676, %s664, 128, 128, 8
        $region48: #{tpu_custom_call.1} parent=35 // pred_fallthru
          _
        // Predicated region
        $region49: #{tpu_custom_call.1} parent=35 // pred_check
          %p682 = pneg %p228
        $region50: #{tpu_custom_call.1} parent=35 // pred_check_branch
          %684 = sbr.rel (%p682) target = $region52
        $region51: #{tpu_custom_call.1} parent=35 // pred_region
          %p685 = scmp.lt.s32.totalorder %s48, 1
          %s686 = scalar_select %p685, %s48, 1
          %s687 = scalar_lea.vmem %s6, %s686
        $region52: #{tpu_custom_call.1} parent=35 // pred_fallthru
          _
        // Predicated region
        $region53: #{tpu_custom_call.1} parent=35 // pred_check
          %p688 = pneg %p254
        $region54: #{tpu_custom_call.1} parent=35 // pred_check_branch
          %690 = sbr.rel (%p688) target = $region56
        $region55: #{tpu_custom_call.1} parent=35 // pred_region
          %s691 = sand.u32 %s40, 1
          %s692 = scalar_lea.sflag [#allocation14], %s691
          %s693 = sand.u32 %s244, 1
          %s694 = smul.addr %s693, 32
          %s695 = scalar_lea.vmem [#allocation13], %s694
          %697 = vsyncadd %s692, 0
          %s698 = smul.addr %s48, 4
          %s699 = smul.addr %s698, 8
          %s700 = scalar_lea.hbm %s7, %s699
          %s701 = sshll.u32 %s700, 4
          %s702 = int_to_ptr.hbm [resolvable:$true] %s701
          %s703 = sshll.u32 %s695, 4
          %s704 = int_to_ptr.vmem [resolvable:$true] %s703
          %709 = dma.hbm_to_vmem [thread:$0]  %s702, 512, %s704, %s692, 128, 128, 8
        $region56: #{tpu_custom_call.1} parent=35 // pred_fallthru
          _
        // Predicated region
        $region57: #{tpu_custom_call.1} parent=35 // pred_check
          %p710 = pneg %p280
        $region58: #{tpu_custom_call.1} parent=35 // pred_check_branch
          %712 = sbr.rel (%p710) target = $region60
        $region59: #{tpu_custom_call.1} parent=35 // pred_region
          %p713 = scmp.lt.s32.totalorder %s48, 1
          %s714 = scalar_select %p713, %s48, 1
          %s715 = scalar_lea.vmem %s8, %s714
        $region60: #{tpu_custom_call.1} parent=35 // pred_fallthru
          _
        // Predicated region
        $region61: #{tpu_custom_call.1} parent=35 // pred_check
          %p716 = pneg %p306
        $region62: #{tpu_custom_call.1} parent=35 // pred_check_branch
          %718 = sbr.rel (%p716) target = $region64
        $region63: #{tpu_custom_call.1} parent=35 // pred_region
          %s719 = sand.u32 %s40, 1
          %s720 = scalar_lea.sflag [#allocation14], %s719
          %s721 = sand.u32 %s296, 1
          %s722 = smul.addr %s721, 32
          %s723 = scalar_lea.vmem [#allocation15], %s722
          %725 = vsyncadd %s720, 0
          %s726 = smul.addr %s48, 4
          %s727 = smul.addr %s726, 8
          %s728 = scalar_lea.hbm %s9, %s727
          %s729 = sshll.u32 %s728, 4
          %s730 = int_to_ptr.hbm [resolvable:$true] %s729
          %s731 = sshll.u32 %s723, 4
          %s732 = int_to_ptr.vmem [resolvable:$true] %s731
          %737 = dma.hbm_to_vmem [thread:$0]  %s730, 512, %s732, %s720, 128, 128, 8
        $region64: #{tpu_custom_call.1} parent=35 // pred_fallthru
          _
        // Predicated region
        $region65: #{tpu_custom_call.1} parent=35 // pred_check
          %p738 = pneg %p332
        $region66: #{tpu_custom_call.1} parent=35 // pred_check_branch
          %740 = sbr.rel (%p738) target = $region68
        $region67: #{tpu_custom_call.1} parent=35 // pred_region
          %p741 = scmp.lt.s32.totalorder %s48, 1
          %s742 = scalar_select %p741, %s48, 1
          %s743 = scalar_lea.vmem %s10, %s742
        $region68: #{tpu_custom_call.1} parent=35 // pred_fallthru
          _
        // Predicated region
        $region69: #{tpu_custom_call.1} parent=35 // pred_check
          %p744 = pneg %p358
        $region70: #{tpu_custom_call.1} parent=35 // pred_check_branch
          %746 = sbr.rel (%p744) target = $region72
        $region71: #{tpu_custom_call.1} parent=35 // pred_region
          %s747 = sand.u32 %s40, 1
          %s748 = scalar_lea.sflag [#allocation17], %s747
          %s749 = sand.u32 %s348, 1
          %s750 = smul.addr %s749, 32
          %s751 = scalar_lea.vmem [#allocation16], %s750
          %753 = vsyncadd %s748, 0
          %s754 = smul.addr %s48, 4
          %s755 = smul.addr %s754, 8
          %s756 = scalar_lea.hbm %s11, %s755
          %s757 = sshll.u32 %s756, 4
          %s758 = int_to_ptr.hbm [resolvable:$true] %s757
          %s759 = sshll.u32 %s751, 4
          %s760 = int_to_ptr.vmem [resolvable:$true] %s759
          %765 = dma.hbm_to_vmem [thread:$0]  %s758, 512, %s760, %s748, 128, 128, 8
        $region72: #{tpu_custom_call.1} parent=35 // pred_fallthru
          _
        // Predicated region
        $region73: #{tpu_custom_call.1} parent=35 // pred_check
          %p766 = pneg %p384
        $region74: #{tpu_custom_call.1} parent=35 // pred_check_branch
          %768 = sbr.rel (%p766) target = $region76
        $region75: #{tpu_custom_call.1} parent=35 // pred_region
          %p769 = scmp.lt.s32.totalorder %s48, 1
          %s770 = scalar_select %p769, %s48, 1
          %s771 = scalar_lea.vmem %s12, %s770
        $region76: #{tpu_custom_call.1} parent=35 // pred_fallthru
          _
        // Predicated region
        $region77: #{tpu_custom_call.1} parent=35 // pred_check
          %p772 = pneg %p410
        $region78: #{tpu_custom_call.1} parent=35 // pred_check_branch
          %774 = sbr.rel (%p772) target = $region80
        $region79: #{tpu_custom_call.1} parent=35 // pred_region
          %s775 = sand.u32 %s40, 1
          %s776 = scalar_lea.sflag [#allocation17], %s775
          %s777 = sand.u32 %s400, 1
          %s778 = smul.addr %s777, 32
          %s779 = scalar_lea.vmem [#allocation18], %s778
          %781 = vsyncadd %s776, 0
          %s782 = smul.addr %s48, 4
          %s783 = smul.addr %s782, 8
          %s784 = scalar_lea.hbm %s13, %s783
          %s785 = sshll.u32 %s784, 4
          %s786 = int_to_ptr.hbm [resolvable:$true] %s785
          %s787 = sshll.u32 %s779, 4
          %s788 = int_to_ptr.vmem [resolvable:$true] %s787
          %793 = dma.hbm_to_vmem [thread:$0]  %s786, 512, %s788, %s776, 128, 128, 8
        $region80: #{tpu_custom_call.1} parent=35 // pred_fallthru
          _
        // Predicated region
        $region81: #{tpu_custom_call.1} parent=35 // pred_check
          %p794 = pneg %p436
        $region82: #{tpu_custom_call.1} parent=35 // pred_check_branch
          %796 = sbr.rel (%p794) target = $region84
        $region83: #{tpu_custom_call.1} parent=35 // pred_region
          %p797 = scmp.lt.s32.totalorder %s48, 1
          %s798 = scalar_select %p797, %s48, 1
          %s799 = scalar_lea.vmem %s14, %s798
        $region84: #{tpu_custom_call.1} parent=35 // pred_fallthru
          _
        // Predicated region
        $region85: #{tpu_custom_call.1} parent=35 // pred_check
          %p800 = pneg %p462
        $region86: #{tpu_custom_call.1} parent=35 // pred_check_branch
          %802 = sbr.rel (%p800) target = $region88
        $region87: #{tpu_custom_call.1} parent=35 // pred_region
          %p803 = scmp.lt.s32.totalorder %s48, 1
          %s804 = scalar_select %p803, %s48, 1
          %s805 = scalar_lea.vmem %s15, %s804
        $region88: #{tpu_custom_call.1} parent=35 // pred_fallthru
          _
        // Predicated region
        $region89: #{tpu_custom_call.1} parent=35 // pred_check
          %p806 = pneg %p488
        $region90: #{tpu_custom_call.1} parent=35 // pred_check_branch
          %808 = sbr.rel (%p806) target = $region92
        $region91: #{tpu_custom_call.1} parent=35 // pred_region
          %s809 = sand.u32 %s478, 1
          %s810 = scalar_lea.sflag [#allocation20], %s809
          %s811 = sand.u32 %s478, 1
          %s812 = scalar_lea.vmem [#allocation19], %s811
          %814 = vsyncadd %s810, 0
          %s815 = scalar_lea.hbm %s16, %s48
          %s817 = sshll.u32 %s815, 4
          %s818 = int_to_ptr.hbm [resolvable:$true] %s817
          %s819 = sshll.u32 %s812, 4
          %s820 = int_to_ptr.vmem [resolvable:$true] %s819
          %822 = dma.hbm_to_vmem [thread:$0]  %s818, 16, %s820, %s810
        $region92: #{tpu_custom_call.1} parent=35 // pred_fallthru
          _
      $region36: #{tpu_custom_call.1} parent=5 // pred_fallthru
        _
      %p823 = scmp.le.s32.totalorder 1, %s40
      %p824 = scmp.lt.s32.totalorder %s40, 3
      %p825 = pnand %p823, %p824
      %p826 = pneg %p825
      // Predicated region
      $region93: #{tpu_custom_call.1} parent=5 // pred_check
        _
      $region94: #{tpu_custom_call.1} parent=5 // pred_check_branch
        %828 = sbr.rel (%p825) target = $region96
      $region95: #{tpu_custom_call.1} parent=5 // pred_region
        %s829 = ssub.s32 %s40, 1
        // Predicated region
        $region97: #{tpu_custom_call.1} parent=95 // pred_check
          %p830 = pneg %p78
        $region98: #{tpu_custom_call.1} parent=95 // pred_check_branch
          %832 = sbr.rel (%p830) target = $region100
        $region99: #{tpu_custom_call.1} parent=95 // pred_region
          %834 = dma.done [#allocation5], 256
        $region100: #{tpu_custom_call.1} parent=95 // pred_fallthru
          _
        // Predicated region
        $region101: #{tpu_custom_call.1} parent=95 // pred_check
          %p835 = pneg %p104
        $region102: #{tpu_custom_call.1} parent=95 // pred_check_branch
          %837 = sbr.rel (%p835) target = $region104
        $region103: #{tpu_custom_call.1} parent=95 // pred_region
          %839 = dma.done [#allocation8], 256
        $region104: #{tpu_custom_call.1} parent=95 // pred_fallthru
          _
        // Predicated region
        $region105: #{tpu_custom_call.1} parent=95 // pred_check
          %p840 = pneg %p130
        $region106: #{tpu_custom_call.1} parent=95 // pred_check_branch
          %842 = sbr.rel (%p840) target = $region108
        $region107: #{tpu_custom_call.1} parent=95 // pred_region
          %844 = dma.done [#allocation8], 32
        $region108: #{tpu_custom_call.1} parent=95 // pred_fallthru
          _
        %s845 = sand.u32 %s45, 1
        %s846 = scalar_lea.sflag [#allocation11], %s845
        %s847 = sand.u32 %s169, 1
        %s848 = scalar_lea.vmem [#allocation10], %s847
        // Predicated region
        $region109: #{tpu_custom_call.1} parent=95 // pred_check
          %p849 = pneg %p182
        $region110: #{tpu_custom_call.1} parent=95 // pred_check_branch
          %851 = sbr.rel (%p849) target = $region112
        $region111: #{tpu_custom_call.1} parent=95 // pred_region
          %853 = dma.done %s846, 16
        $region112: #{tpu_custom_call.1} parent=95 // pred_fallthru
          _
        %s854 = sand.u32 %s45, 1
        %s855 = scalar_lea.sflag [#allocation11], %s854
        %s856 = sand.u32 %s195, 1
        %s857 = smul.addr %s856, 32
        %s858 = scalar_lea.vmem [#allocation12], %s857
        // Predicated region
        $region113: #{tpu_custom_call.1} parent=95 // pred_check
          %p859 = pneg %p208
        $region114: #{tpu_custom_call.1} parent=95 // pred_check_branch
          %861 = sbr.rel (%p859) target = $region116
        $region115: #{tpu_custom_call.1} parent=95 // pred_region
          %863 = dma.done %s855, 512
        $region116: #{tpu_custom_call.1} parent=95 // pred_fallthru
          _
        %s864 = sand.u32 %s45, 1
        %s865 = scalar_lea.sflag [#allocation14], %s864
        %s866 = sand.u32 %s247, 1
        %s867 = smul.addr %s866, 32
        %s868 = scalar_lea.vmem [#allocation13], %s867
        // Predicated region
        $region117: #{tpu_custom_call.1} parent=95 // pred_check
          %p869 = pneg %p260
        $region118: #{tpu_custom_call.1} parent=95 // pred_check_branch
          %871 = sbr.rel (%p869) target = $region120
        $region119: #{tpu_custom_call.1} parent=95 // pred_region
          %873 = dma.done %s865, 512
        $region120: #{tpu_custom_call.1} parent=95 // pred_fallthru
          _
        %s874 = sand.u32 %s45, 1
        %s875 = scalar_lea.sflag [#allocation14], %s874
        %s876 = sand.u32 %s299, 1
        %s877 = smul.addr %s876, 32
        %s878 = scalar_lea.vmem [#allocation15], %s877
        // Predicated region
        $region121: #{tpu_custom_call.1} parent=95 // pred_check
          %p879 = pneg %p312
        $region122: #{tpu_custom_call.1} parent=95 // pred_check_branch
          %881 = sbr.rel (%p879) target = $region124
        $region123: #{tpu_custom_call.1} parent=95 // pred_region
          %883 = dma.done %s875, 512
        $region124: #{tpu_custom_call.1} parent=95 // pred_fallthru
          _
        %s884 = sand.u32 %s45, 1
        %s885 = scalar_lea.sflag [#allocation17], %s884
        %s886 = sand.u32 %s351, 1
        %s887 = smul.addr %s886, 32
        %s888 = scalar_lea.vmem [#allocation16], %s887
        // Predicated region
        $region125: #{tpu_custom_call.1} parent=95 // pred_check
          %p889 = pneg %p364
        $region126: #{tpu_custom_call.1} parent=95 // pred_check_branch
          %891 = sbr.rel (%p889) target = $region128
        $region127: #{tpu_custom_call.1} parent=95 // pred_region
          %893 = dma.done %s885, 512
        $region128: #{tpu_custom_call.1} parent=95 // pred_fallthru
          _
        %s894 = sand.u32 %s45, 1
        %s895 = scalar_lea.sflag [#allocation17], %s894
        %s896 = sand.u32 %s403, 1
        %s897 = smul.addr %s896, 32
        %s898 = scalar_lea.vmem [#allocation18], %s897
        // Predicated region
        $region129: #{tpu_custom_call.1} parent=95 // pred_check
          %p899 = pneg %p416
        $region130: #{tpu_custom_call.1} parent=95 // pred_check_branch
          %901 = sbr.rel (%p899) target = $region132
        $region131: #{tpu_custom_call.1} parent=95 // pred_region
          %903 = dma.done %s895, 512
        $region132: #{tpu_custom_call.1} parent=95 // pred_fallthru
          _
        %s904 = sand.u32 %s481, 1
        %s905 = scalar_lea.sflag [#allocation20], %s904
        %s906 = sand.u32 %s481, 1
        %s907 = scalar_lea.vmem [#allocation19], %s906
        // Predicated region
        $region133: #{tpu_custom_call.1} parent=95 // pred_check
          %p908 = pneg %p494
        $region134: #{tpu_custom_call.1} parent=95 // pred_check_branch
          %910 = sbr.rel (%p908) target = $region136
        $region135: #{tpu_custom_call.1} parent=95 // pred_region
          %912 = dma.done %s905, 16
        $region136: #{tpu_custom_call.1} parent=95 // pred_fallthru
          _
        %p913 = pneg %p78
        %p914 = pneg %p75
        %p915 = pneg %p104
        %p916 = pneg %p101
        %p917 = pneg %p130
        %p918 = pneg %p127
        %p919 = scmp.lt.s32.totalorder %s50, 1
        %s920 = scalar_select %p919, %s50, 1
        %s921 = scalar_lea.vmem %s3, %s920
        %p922 = pneg %p156
        %p923 = pneg %p153
        %s924 = sand.u32 %s45, 1
        %s925 = scalar_lea.sflag [#allocation11], %s924
        %s926 = sand.u32 %s169, 1
        %s927 = scalar_lea.vmem [#allocation10], %s926
        %p928 = pneg %p182
        %p929 = pneg %p179
        %s930 = sand.u32 %s45, 1
        %s931 = scalar_lea.sflag [#allocation11], %s930
        %s932 = sand.u32 %s195, 1
        %s933 = smul.addr %s932, 32
        %s934 = scalar_lea.vmem [#allocation12], %s933
        %p935 = pneg %p208
        %p936 = pneg %p205
        %p937 = scmp.lt.s32.totalorder %s50, 1
        %s938 = scalar_select %p937, %s50, 1
        %s939 = scalar_lea.vmem %s6, %s938
        %p940 = pneg %p234
        %p941 = pneg %p231
        %s942 = sand.u32 %s45, 1
        %s943 = scalar_lea.sflag [#allocation14], %s942
        %s944 = sand.u32 %s247, 1
        %s945 = smul.addr %s944, 32
        %s946 = scalar_lea.vmem [#allocation13], %s945
        %p947 = pneg %p260
        %p948 = pneg %p257
        %p949 = scmp.lt.s32.totalorder %s50, 1
        %s950 = scalar_select %p949, %s50, 1
        %s951 = scalar_lea.vmem %s8, %s950
        %p952 = pneg %p286
        %p953 = pneg %p283
        %s954 = sand.u32 %s45, 1
        %s955 = scalar_lea.sflag [#allocation14], %s954
        %s956 = sand.u32 %s299, 1
        %s957 = smul.addr %s956, 32
        %s958 = scalar_lea.vmem [#allocation15], %s957
        %p959 = pneg %p312
        %p960 = pneg %p309
        %p961 = scmp.lt.s32.totalorder %s50, 1
        %s962 = scalar_select %p961, %s50, 1
        %s963 = scalar_lea.vmem %s10, %s962
        %p964 = pneg %p338
        %p965 = pneg %p335
        %s966 = sand.u32 %s45, 1
        %s967 = scalar_lea.sflag [#allocation17], %s966
        %s968 = sand.u32 %s351, 1
        %s969 = smul.addr %s968, 32
        %s970 = scalar_lea.vmem [#allocation16], %s969
        %p971 = pneg %p364
        %p972 = pneg %p361
        %p973 = scmp.lt.s32.totalorder %s50, 1
        %s974 = scalar_select %p973, %s50, 1
        %s975 = scalar_lea.vmem %s12, %s974
        %p976 = pneg %p390
        %p977 = pneg %p387
        %s978 = sand.u32 %s45, 1
        %s979 = scalar_lea.sflag [#allocation17], %s978
        %s980 = sand.u32 %s403, 1
        %s981 = smul.addr %s980, 32
        %s982 = scalar_lea.vmem [#allocation18], %s981
        %p983 = pneg %p416
        %p984 = pneg %p413
        %p985 = scmp.lt.s32.totalorder %s50, 1
        %s986 = scalar_select %p985, %s50, 1
        %s987 = scalar_lea.vmem %s14, %s986
        %p988 = pneg %p442
        %p989 = pneg %p439
        %p990 = scmp.lt.s32.totalorder %s50, 1
        %s991 = scalar_select %p990, %s50, 1
        %s992 = scalar_lea.vmem %s15, %s991
        %p993 = pneg %p468
        %p994 = pneg %p465
        %s995 = sand.u32 %s481, 1
        %s996 = scalar_lea.sflag [#allocation20], %s995
        %s997 = sand.u32 %s481, 1
        %s998 = scalar_lea.vmem [#allocation19], %s997
        %p999 = pneg %p494
        %p1000 = pneg %p491
        %p1001 = pneg %p515
        %p1002 = pneg %p512
        %p1003 = pneg %p536
        %p1004 = pneg %p533
        %p1005 = pneg %p562
        %p1006 = pneg %p559
        %s1007 = smul.u32 2, %s49
        %s1008 = smul.u32 2, %s49
        %s1009 = smul.u32 2, %s49
        %p1010 = scmp.lt.s32.totalorder %s50, 1
        %s1011 = scalar_select %p1010, %s50, 1
        %s1012 = scalar_lea.vmem %s3, %s1011
        %p1013 = scmp.lt.s32.totalorder %s50, 1
        %s1014 = scalar_select %p1013, %s50, 1
        %s1015 = scalar_lea.vmem %s6, %s1014
        %p1016 = scmp.lt.s32.totalorder %s50, 1
        %s1017 = scalar_select %p1016, %s50, 1
        %s1018 = scalar_lea.vmem %s8, %s1017
        %p1019 = scmp.lt.s32.totalorder %s50, 1
        %s1020 = scalar_select %p1019, %s50, 1
        %s1021 = scalar_lea.vmem %s10, %s1020
        %p1022 = scmp.lt.s32.totalorder %s50, 1
        %s1023 = scalar_select %p1022, %s50, 1
        %s1024 = scalar_lea.vmem %s12, %s1023
        %p1025 = scmp.lt.s32.totalorder %s50, 1
        %s1026 = scalar_select %p1025, %s50, 1
        %s1027 = scalar_lea.vmem %s14, %s1026
        %p1028 = scmp.lt.s32.totalorder %s50, 1
        %s1029 = scalar_select %p1028, %s50, 1
        %s1030 = scalar_lea.vmem %s15, %s1029
        %s1031 = smul.u32 2, %s49
        %p1032 = scmp.eq.s32.totalorder %s50, 0
        // Predicated region
        $region137: #{tpu_custom_call.1} parent=95 // pred_check
          %p1033 = pneg %p1032
        $region138: #{tpu_custom_call.1} parent=95 // pred_check_branch
          %1035 = sbr.rel (%p1033) target = $region140
        $region139: #{tpu_custom_call.1} parent=95 // pred_region
          %v1036 = vld [vmem:[#allocation4] sm:$0xff]
          %v1037 = vld [vmem:[#allocation4 + $0x8] sm:$0xff]
          %vm1038 = vcmask 261120
          %1039 = vst.msk [vmem:[#allocation2] sm:$0xff] %vm1038, %v1036
          %1040 = vst.msk [vmem:[#allocation2 + $0x8] sm:$0xff] %vm1038, %v1037
        $region140: #{tpu_custom_call.1} parent=95 // pred_fallthru
          _
        %v1041 = vld [vmem:[#allocation9] sm:$0x1]
        %v1042 = vld [vmem:[#allocation9 + $0x1] sm:$0x1]
        %vm1043 = vcmp.gt.f32.partialorder %v1041, 0.0
        %vm1044 = vcmp.gt.f32.partialorder %v1042, 0.0
        %v1045 = vsel %vm1043, 0.0, -1e+09
        %v1046 = vsel %vm1044, 0.0, -1e+09
        %v1047 = vld [vmem:[#allocation2] sm:$0xff]
        %v1048 = vld [vmem:[#allocation2 + $0x8] sm:$0xff]
        %v1049 = vld [vmem:[#allocation7] sm:$0xff]
        %v1050 = vld [vmem:[#allocation7 + $0x8] sm:$0xff]
        %v1051 = vld [vmem:[%s1012] sm:$0x1]
        %v1052 = vld [vmem:[%s848] sm:$0x1]
        %vm1053 = vcmask 261120
        %v1054 = vsel %vm1053, %v1047, 0.0
        %1055 = vadd.xlane.f32.xlu0 %v1054
        %v1056 = vpop.xlane.xlu0 %1055
        %v1057 = vsel %vm1053, %v1048, 0.0
        %1058 = vadd.xlane.f32.xlu0 %v1057
        %v1059 = vpop.xlane.xlu0 %1058
        %v1060 = vrcp.pop 32.0
        %v1061 = vmul.f32 32.0, %v1060
        %v1062 = vsub.f32 1.0, %v1061
        %v1063 = vmul.f32 %v1060, %v1062
        %v1064 = vadd.f32 %v1060, %v1063
        %vm1065 = vweird.f32 %v1060
        %v1066 = vsel %vm1065, %v1060, %v1064
        %v1067 = vmul.f32 %v1056, %v1066
        %v1068 = vmul.f32 %v1059, %v1066
        %v1069 = vsub.f32 %v1047, %v1067
        %v1070 = vsub.f32 %v1048, %v1068
        %v1071 = vmul.f32 %v1069, %v1069
        %v1072 = vmul.f32 %v1070, %v1070
        %v1073 = vsel %vm1053, %v1071, 0.0
        %1074 = vadd.xlane.f32.xlu0 %v1073
        %v1075 = vpop.xlane.xlu0 %1074
        %v1076 = vsel %vm1053, %v1072, 0.0
        %1077 = vadd.xlane.f32.xlu0 %v1076
        %v1078 = vpop.xlane.xlu0 %1077
        %v1079 = vmul.f32 %v1075, %v1066
        %v1080 = vmul.f32 %v1078, %v1066
        %v1081 = vadd.f32 %v1079, 1e-05
        %v1082 = vadd.f32 %v1080, 1e-05
        %v1083 = vrsqrt.pop %v1081
        %v1084 = vmul.f32 %v1083, %v1081
        %v1085 = vmul.f32 %v1084, %v1083
        %v1086 = vmul.f32 0.5, %v1085
        %v1087 = vsub.f32 1.5, %v1086
        %v1088 = vmul.f32 %v1083, %v1087
        %vm1089 = vweird.f32 %v1081
        %vm1090 = vweird.f32 %v1083
        %vm1091 = vmor %vm1089, %vm1090
        %v1092 = vsel %vm1091, %v1083, %v1088
        %v1093 = vrsqrt.pop %v1082
        %v1094 = vmul.f32 %v1093, %v1082
        %v1095 = vmul.f32 %v1094, %v1093
        %v1096 = vmul.f32 0.5, %v1095
        %v1097 = vsub.f32 1.5, %v1096
        %v1098 = vmul.f32 %v1093, %v1097
        %vm1099 = vweird.f32 %v1082
        %vm1100 = vweird.f32 %v1093
        %vm1101 = vmor %vm1099, %vm1100
        %v1102 = vsel %vm1101, %v1093, %v1098
        %v1103 = vmul.f32 %v1069, %v1092
        %v1104 = vmul.f32 %v1070, %v1102
        %v1106 = vperm.slane %v1051, 0
        %v1108 = vmul.f32 %v1103, %v1106
        %v1109 = vmul.f32 %v1104, %v1106
        %v1111 = vperm.slane %v1052, 0
        %v1113 = vadd.f32 %v1108, %v1111
        %v1114 = vadd.f32 %v1109, %v1111
        %v1115 = vld [vmem:[%s858] sm:$0xff]
        %v1116 = vld [vmem:[%s858 + $0x8] sm:$0xff]
        %v1117 = vld [vmem:[%s858 + $0x10] sm:$0xff]
        %v1118 = vld [vmem:[%s858 + $0x18] sm:$0xff]
        %v1119 = vld [vmem:[%s1015] sm:$0x1]
        %v1121 = vperm.slane %v1119, 0
        %v1124 = vsel %vm1053, %v1113, 0
        %v1127 = vsel %vm1053, %v1114, 0
        %1129 = vmatpush.msra.mxu0 0.0
        %1130 = vmatpush.msra.mxu0 0.0
        %1131 = vmatpush.msra.mxu0 0.0
        %1132 = vmatpush.msra.mxu0 0.0
        %1133 = vmatpush.msra.mxu0 0.0
        %1134 = vmatpush.msra.mxu0 0.0
        %1135 = vmatpush.msra.mxu0 0.0
        %1136 = vmatpush.msra.mxu0 0.0
        %1137 = vmatpush.msra.mxu0 0.0
        %1138 = vmatpush.msra.mxu0 0.0
        %1139 = vmatpush.msra.mxu0 0.0
        %1140 = vmatpush.msra.mxu0 0.0
        %1141 = vmatpush.msra.mxu0 %v1118
        %1142 = vmatpush.msra.mxu0 %v1117
        %1143 = vmatpush.msra.mxu0 %v1116
        %1144 = vmatpush.msra.mxu0 %v1115
        %1145 = vmatmul.f32.gmra.mxu0 %v1124
        %v1146 = vpop.f32.mrf.mxu0
        %v1147 = vadd.f32 %v1121, %v1146
        %1148 = vmatmul.f32.gmra.mxu0 %v1127
        %v1149 = vpop.f32.mrf.mxu0
        %v1150 = vadd.f32 %v1121, %v1149
        %1151 = vdwg.mxu0
        %v1152 = vmul.f32 %v1147, 0.5
        %v1153 = vmul.f32 %v1150, 0.5
        %v1154 = vld [vmem:[%s868] sm:$0xff]
        %v1155 = vld [vmem:[%s868 + $0x8] sm:$0xff]
        %v1156 = vld [vmem:[%s868 + $0x10] sm:$0xff]
        %v1157 = vld [vmem:[%s868 + $0x18] sm:$0xff]
        %v1158 = vld [vmem:[%s1018] sm:$0x1]
        %v1160 = vperm.slane %v1158, 0
        %v1163 = vsel %vm1053, %v1049, 0
        %v1166 = vsel %vm1053, %v1050, 0
        %1168 = vmatpush.msra.mxu0 0.0
        %1169 = vmatpush.msra.mxu0 0.0
        %1170 = vmatpush.msra.mxu0 0.0
        %1171 = vmatpush.msra.mxu0 0.0
        %1172 = vmatpush.msra.mxu0 0.0
        %1173 = vmatpush.msra.mxu0 0.0
        %1174 = vmatpush.msra.mxu0 0.0
        %1175 = vmatpush.msra.mxu0 0.0
        %1176 = vmatpush.msra.mxu0 0.0
        %1177 = vmatpush.msra.mxu0 0.0
        %1178 = vmatpush.msra.mxu0 0.0
        %1179 = vmatpush.msra.mxu0 0.0
        %1180 = vmatpush.msra.mxu0 %v1157
        %1181 = vmatpush.msra.mxu0 %v1156
        %1182 = vmatpush.msra.mxu0 %v1155
        %1183 = vmatpush.msra.mxu0 %v1154
        %1184 = vmatmul.f32.gmra.mxu0 %v1163
        %v1185 = vpop.f32.mrf.mxu0
        %v1186 = vadd.f32 %v1160, %v1185
        %1187 = vmatmul.f32.gmra.mxu0 %v1166
        %v1188 = vpop.f32.mrf.mxu0
        %v1189 = vadd.f32 %v1160, %v1188
        %1190 = vdwg.mxu0
        %v1191 = vld [vmem:[%s878] sm:$0xff]
        %v1192 = vld [vmem:[%s878 + $0x8] sm:$0xff]
        %v1193 = vld [vmem:[%s878 + $0x10] sm:$0xff]
        %v1194 = vld [vmem:[%s878 + $0x18] sm:$0xff]
        %v1195 = vld [vmem:[%s1021] sm:$0x1]
        %v1197 = vperm.slane %v1195, 0
        %1199 = vmatpush.msra.mxu0 0.0
        %1200 = vmatpush.msra.mxu0 0.0
        %1201 = vmatpush.msra.mxu0 0.0
        %1202 = vmatpush.msra.mxu0 0.0
        %1203 = vmatpush.msra.mxu0 0.0
        %1204 = vmatpush.msra.mxu0 0.0
        %1205 = vmatpush.msra.mxu0 0.0
        %1206 = vmatpush.msra.mxu0 0.0
        %1207 = vmatpush.msra.mxu0 0.0
        %1208 = vmatpush.msra.mxu0 0.0
        %1209 = vmatpush.msra.mxu0 0.0
        %1210 = vmatpush.msra.mxu0 0.0
        %1211 = vmatpush.msra.mxu0 %v1194
        %1212 = vmatpush.msra.mxu0 %v1193
        %1213 = vmatpush.msra.mxu0 %v1192
        %1214 = vmatpush.msra.mxu0 %v1191
        %1215 = vmatmul.f32.gmra.mxu0 %v1163
        %v1216 = vpop.f32.mrf.mxu0
        %v1217 = vadd.f32 %v1197, %v1216
        %1218 = vmatmul.f32.gmra.mxu0 %v1166
        %v1219 = vpop.f32.mrf.mxu0
        %v1220 = vadd.f32 %v1197, %v1219
        %1221 = vdwg.mxu0
        %v1224 = vperm.slane %v1045, 0
        %v1225 = vperm.slane %v1046, 0
        %vm1228 = vcmask 31744
        %v1230 = vsel %vm1228, %v1152, 0
        %v1233 = vsel %vm1228, %v1186, 0
        %1235 = vmatpush.xpose.msra.mxu0 0.0
        %1236 = vmatpush.xpose.msra.mxu0 0.0
        %1237 = vmatpush.xpose.msra.mxu0 0.0
        %1238 = vmatpush.xpose.msra.mxu0 0.0
        %1239 = vmatpush.xpose.msra.mxu0 0.0
        %1240 = vmatpush.xpose.msra.mxu0 0.0
        %1241 = vmatpush.xpose.msra.mxu0 0.0
        %1242 = vmatpush.xpose.msra.mxu0 0.0
        %1243 = vmatpush.xpose.msra.mxu0 0.0
        %1244 = vmatpush.xpose.msra.mxu0 0.0
        %1245 = vmatpush.xpose.msra.mxu0 0.0
        %1246 = vmatpush.xpose.msra.mxu0 0.0
        %1247 = vmatpush.xpose.msra.mxu0 0.0
        %1248 = vmatpush.xpose.msra.mxu0 0.0
        %1249 = vmatpush.xpose.msra.mxu0 0.0
        %1250 = vmatpush.xpose.msra.mxu0 %v1233
        %1251 = vmatmul.f32.gmra.mxu0 %v1230
        %v1252 = vpop.f32.mrf.mxu0
        %v1253 = vadd.f32 %v1224, %v1252
        %1254 = vdwg.mxu0
        %v1256 = vsel %vm1228, %v1153, 0
        %v1259 = vsel %vm1228, %v1189, 0
        %1261 = vmatpush.xpose.msra.mxu0 0.0
        %1262 = vmatpush.xpose.msra.mxu0 0.0
        %1263 = vmatpush.xpose.msra.mxu0 0.0
        %1264 = vmatpush.xpose.msra.mxu0 0.0
        %1265 = vmatpush.xpose.msra.mxu0 0.0
        %1266 = vmatpush.xpose.msra.mxu0 0.0
        %1267 = vmatpush.xpose.msra.mxu0 0.0
        %1268 = vmatpush.xpose.msra.mxu0 0.0
        %1269 = vmatpush.xpose.msra.mxu0 0.0
        %1270 = vmatpush.xpose.msra.mxu0 0.0
        %1271 = vmatpush.xpose.msra.mxu0 0.0
        %1272 = vmatpush.xpose.msra.mxu0 0.0
        %1273 = vmatpush.xpose.msra.mxu0 0.0
        %1274 = vmatpush.xpose.msra.mxu0 0.0
        %1275 = vmatpush.xpose.msra.mxu0 0.0
        %1276 = vmatpush.xpose.msra.mxu0 %v1259
        %1277 = vmatmul.f32.gmra.mxu0 %v1256
        %v1278 = vpop.f32.mrf.mxu0
        %v1279 = vadd.f32 %v1225, %v1278
        %1280 = vdwg.mxu0
        %vm1281 = vcmask 64512
        %v1282 = vsel %vm1281, %v1253, -inf
        %1283 = vmax.xlane.f32.xlu0 %v1282
        %v1284 = vpop.xlane.xlu0 %1283
        %v1285 = vsel %vm1281, %v1279, -inf
        %1286 = vmax.xlane.f32.xlu0 %v1285
        %v1287 = vpop.xlane.xlu0 %1286
        %v1288 = vsub.f32 %v1253, %v1284
        %v1289 = vsub.f32 %v1279, %v1287
        %v1290 = vmul.f32 %v1288, 1.442695
        %v1291 = vpow.pop %v1290
        %v1292 = vmul.f32 %v1289, 1.442695
        %v1293 = vpow.pop %v1292
        %v1294 = vsel %vm1281, %v1291, 0.0
        %1295 = vadd.xlane.f32.xlu0 %v1294
        %v1296 = vpop.xlane.xlu0 %1295
        %v1297 = vsel %vm1281, %v1293, 0.0
        %1298 = vadd.xlane.f32.xlu0 %v1297
        %v1299 = vpop.xlane.xlu0 %1298
        %v1300 = vrcp.pop %v1296
        %v1301 = vrcp.pop %v1299
        %v1303 = vsel %vm1281, %v1291, 0
        %1305 = vmatpush.msra.mxu0 0.0
        %1306 = vmatpush.msra.mxu0 0.0
        %1307 = vmatpush.msra.mxu0 0.0
        %1308 = vmatpush.msra.mxu0 0.0
        %1309 = vmatpush.msra.mxu0 0.0
        %1310 = vmatpush.msra.mxu0 0.0
        %1311 = vmatpush.msra.mxu0 0.0
        %1312 = vmatpush.msra.mxu0 0.0
        %1313 = vmatpush.msra.mxu0 0.0
        %1314 = vmatpush.msra.mxu0 0.0
        %1315 = vmatpush.msra.mxu0 0.0
        %1316 = vmatpush.msra.mxu0 0.0
        %1317 = vmatpush.msra.mxu0 0.0
        %1318 = vmatpush.msra.mxu0 0.0
        %1319 = vmatpush.msra.mxu0 0.0
        %1320 = vmatpush.msra.mxu0 %v1217
        %1321 = vmatmul.f32.gmra.mxu0 %v1303
        %v1322 = vpop.f32.mrf.mxu0
        %v1323 = vadd.f32 0.0, %v1322
        %1324 = vdwg.mxu0
        %v1326 = vsel %vm1281, %v1293, 0
        %1328 = vmatpush.msra.mxu0 0.0
        %1329 = vmatpush.msra.mxu0 0.0
        %1330 = vmatpush.msra.mxu0 0.0
        %1331 = vmatpush.msra.mxu0 0.0
        %1332 = vmatpush.msra.mxu0 0.0
        %1333 = vmatpush.msra.mxu0 0.0
        %1334 = vmatpush.msra.mxu0 0.0
        %1335 = vmatpush.msra.mxu0 0.0
        %1336 = vmatpush.msra.mxu0 0.0
        %1337 = vmatpush.msra.mxu0 0.0
        %1338 = vmatpush.msra.mxu0 0.0
        %1339 = vmatpush.msra.mxu0 0.0
        %1340 = vmatpush.msra.mxu0 0.0
        %1341 = vmatpush.msra.mxu0 0.0
        %1342 = vmatpush.msra.mxu0 0.0
        %1343 = vmatpush.msra.mxu0 %v1220
        %1344 = vmatmul.f32.gmra.mxu0 %v1326
        %v1345 = vpop.f32.mrf.mxu0
        %v1346 = vadd.f32 0.0, %v1345
        %1347 = vdwg.mxu0
        %v1348 = vmul.f32 %v1323, %v1300
        %v1349 = vmul.f32 %v1346, %v1301
        %1350 = vst.msk [vmem:[#allocation3] sm:$0xff] %vm1228, %v1348
        %1351 = vst.msk [vmem:[#allocation3 + $0x8] sm:$0xff] %vm1228, %v1349
        %1352 = vrot.lane.b32.xlu0 %v1152, 124
        %v1353 = vpop.permute.xlu0 %1352
        %1354 = vrot.lane.b32.xlu0 %v1186, 124
        %v1355 = vpop.permute.xlu0 %1354
        %v1356 = vsel %vm1228, %v1353, 0
        %v1358 = vsel %vm1228, %v1355, 0
        %1360 = vmatpush.xpose.msra.mxu0 0.0
        %1361 = vmatpush.xpose.msra.mxu0 0.0
        %1362 = vmatpush.xpose.msra.mxu0 0.0
        %1363 = vmatpush.xpose.msra.mxu0 0.0
        %1364 = vmatpush.xpose.msra.mxu0 0.0
        %1365 = vmatpush.xpose.msra.mxu0 0.0
        %1366 = vmatpush.xpose.msra.mxu0 0.0
        %1367 = vmatpush.xpose.msra.mxu0 0.0
        %1368 = vmatpush.xpose.msra.mxu0 0.0
        %1369 = vmatpush.xpose.msra.mxu0 0.0
        %1370 = vmatpush.xpose.msra.mxu0 0.0
        %1371 = vmatpush.xpose.msra.mxu0 0.0
        %1372 = vmatpush.xpose.msra.mxu0 0.0
        %1373 = vmatpush.xpose.msra.mxu0 0.0
        %1374 = vmatpush.xpose.msra.mxu0 0.0
        %1375 = vmatpush.xpose.msra.mxu0 %v1358
        %1376 = vmatmul.f32.gmra.mxu0 %v1356
        %v1377 = vpop.f32.mrf.mxu0
        %v1378 = vadd.f32 %v1224, %v1377
        %1379 = vdwg.mxu0
        %1380 = vrot.lane.b32.xlu0 %v1153, 124
        %v1381 = vpop.permute.xlu0 %1380
        %1382 = vrot.lane.b32.xlu0 %v1189, 124
        %v1383 = vpop.permute.xlu0 %1382
        %v1384 = vsel %vm1228, %v1381, 0
        %v1386 = vsel %vm1228, %v1383, 0
        %1388 = vmatpush.xpose.msra.mxu0 0.0
        %1389 = vmatpush.xpose.msra.mxu0 0.0
        %1390 = vmatpush.xpose.msra.mxu0 0.0
        %1391 = vmatpush.xpose.msra.mxu0 0.0
        %1392 = vmatpush.xpose.msra.mxu0 0.0
        %1393 = vmatpush.xpose.msra.mxu0 0.0
        %1394 = vmatpush.xpose.msra.mxu0 0.0
        %1395 = vmatpush.xpose.msra.mxu0 0.0
        %1396 = vmatpush.xpose.msra.mxu0 0.0
        %1397 = vmatpush.xpose.msra.mxu0 0.0
        %1398 = vmatpush.xpose.msra.mxu0 0.0
        %1399 = vmatpush.xpose.msra.mxu0 0.0
        %1400 = vmatpush.xpose.msra.mxu0 0.0
        %1401 = vmatpush.xpose.msra.mxu0 0.0
        %1402 = vmatpush.xpose.msra.mxu0 0.0
        %1403 = vmatpush.xpose.msra.mxu0 %v1386
        %1404 = vmatmul.f32.gmra.mxu0 %v1384
        %v1405 = vpop.f32.mrf.mxu0
        %v1406 = vadd.f32 %v1225, %v1405
        %1407 = vdwg.mxu0
        %v1408 = vsel %vm1281, %v1378, -inf
        %1409 = vmax.xlane.f32.xlu0 %v1408
        %v1410 = vpop.xlane.xlu0 %1409
        %v1411 = vsel %vm1281, %v1406, -inf
        %1412 = vmax.xlane.f32.xlu0 %v1411
        %v1413 = vpop.xlane.xlu0 %1412
        %v1414 = vsub.f32 %v1378, %v1410
        %v1415 = vsub.f32 %v1406, %v1413
        %v1416 = vmul.f32 %v1414, 1.442695
        %v1417 = vpow.pop %v1416
        %v1418 = vmul.f32 %v1415, 1.442695
        %v1419 = vpow.pop %v1418
        %v1420 = vsel %vm1281, %v1417, 0.0
        %1421 = vadd.xlane.f32.xlu0 %v1420
        %v1422 = vpop.xlane.xlu0 %1421
        %v1423 = vsel %vm1281, %v1419, 0.0
        %1424 = vadd.xlane.f32.xlu0 %v1423
        %v1425 = vpop.xlane.xlu0 %1424
        %v1426 = vrcp.pop %v1422
        %v1427 = vrcp.pop %v1425
        %1429 = vrot.lane.b32.xlu0 %v1217, 124
        %v1430 = vpop.permute.xlu0 %1429
        %v1433 = vsel %vm1281, %v1417, 0
        %1435 = vmatpush.msra.mxu0 0.0
        %1436 = vmatpush.msra.mxu0 0.0
        %1437 = vmatpush.msra.mxu0 0.0
        %1438 = vmatpush.msra.mxu0 0.0
        %1439 = vmatpush.msra.mxu0 0.0
        %1440 = vmatpush.msra.mxu0 0.0
        %1441 = vmatpush.msra.mxu0 0.0
        %1442 = vmatpush.msra.mxu0 0.0
        %1443 = vmatpush.msra.mxu0 0.0
        %1444 = vmatpush.msra.mxu0 0.0
        %1445 = vmatpush.msra.mxu0 0.0
        %1446 = vmatpush.msra.mxu0 0.0
        %1447 = vmatpush.msra.mxu0 0.0
        %1448 = vmatpush.msra.mxu0 0.0
        %1449 = vmatpush.msra.mxu0 0.0
        %1450 = vmatpush.msra.mxu0 %v1430
        %1451 = vmatmul.f32.gmra.mxu0 %v1433
        %v1452 = vpop.f32.mrf.mxu0
        %v1453 = vadd.f32 0.0, %v1452
        %1454 = vdwg.mxu0
        %1456 = vrot.lane.b32.xlu0 %v1220, 124
        %v1457 = vpop.permute.xlu0 %1456
        %v1460 = vsel %vm1281, %v1419, 0
        %1462 = vmatpush.msra.mxu0 0.0
        %1463 = vmatpush.msra.mxu0 0.0
        %1464 = vmatpush.msra.mxu0 0.0
        %1465 = vmatpush.msra.mxu0 0.0
        %1466 = vmatpush.msra.mxu0 0.0
        %1467 = vmatpush.msra.mxu0 0.0
        %1468 = vmatpush.msra.mxu0 0.0
        %1469 = vmatpush.msra.mxu0 0.0
        %1470 = vmatpush.msra.mxu0 0.0
        %1471 = vmatpush.msra.mxu0 0.0
        %1472 = vmatpush.msra.mxu0 0.0
        %1473 = vmatpush.msra.mxu0 0.0
        %1474 = vmatpush.msra.mxu0 0.0
        %1475 = vmatpush.msra.mxu0 0.0
        %1476 = vmatpush.msra.mxu0 0.0
        %1477 = vmatpush.msra.mxu0 %v1457
        %1478 = vmatmul.f32.gmra.mxu0 %v1460
        %v1479 = vpop.f32.mrf.mxu0
        %v1480 = vadd.f32 0.0, %v1479
        %1481 = vdwg.mxu0
        %v1482 = vmul.f32 %v1453, %v1426
        %v1483 = vmul.f32 %v1480, %v1427
        %1486 = vrot.lane.b32.xlu0 %v1482, 4
        %v1487 = vpop.permute.xlu0 %1486
        %1488 = vrot.lane.b32.xlu0 %v1483, 4
        %v1489 = vpop.permute.xlu0 %1488
        %vm1492 = vcmask 64544
        %1493 = vst.msk [vmem:[#allocation3] sm:$0xff] %vm1492, %v1487
        %1494 = vst.msk [vmem:[#allocation3 + $0x8] sm:$0xff] %vm1492, %v1489
        %1495 = vrot.lane.b32.xlu0 %v1152, 120
        %v1496 = vpop.permute.xlu0 %1495
        %1497 = vrot.lane.b32.xlu0 %v1186, 120
        %v1498 = vpop.permute.xlu0 %1497
        %v1499 = vsel %vm1228, %v1496, 0
        %v1501 = vsel %vm1228, %v1498, 0
        %1503 = vmatpush.xpose.msra.mxu0 0.0
        %1504 = vmatpush.xpose.msra.mxu0 0.0
        %1505 = vmatpush.xpose.msra.mxu0 0.0
        %1506 = vmatpush.xpose.msra.mxu0 0.0
        %1507 = vmatpush.xpose.msra.mxu0 0.0
        %1508 = vmatpush.xpose.msra.mxu0 0.0
        %1509 = vmatpush.xpose.msra.mxu0 0.0
        %1510 = vmatpush.xpose.msra.mxu0 0.0
        %1511 = vmatpush.xpose.msra.mxu0 0.0
        %1512 = vmatpush.xpose.msra.mxu0 0.0
        %1513 = vmatpush.xpose.msra.mxu0 0.0
        %1514 = vmatpush.xpose.msra.mxu0 0.0
        %1515 = vmatpush.xpose.msra.mxu0 0.0
        %1516 = vmatpush.xpose.msra.mxu0 0.0
        %1517 = vmatpush.xpose.msra.mxu0 0.0
        %1518 = vmatpush.xpose.msra.mxu0 %v1501
        %1519 = vmatmul.f32.gmra.mxu0 %v1499
        %v1520 = vpop.f32.mrf.mxu0
        %v1521 = vadd.f32 %v1224, %v1520
        %1522 = vdwg.mxu0
        %1523 = vrot.lane.b32.xlu0 %v1153, 120
        %v1524 = vpop.permute.xlu0 %1523
        %1525 = vrot.lane.b32.xlu0 %v1189, 120
        %v1526 = vpop.permute.xlu0 %1525
        %v1527 = vsel %vm1228, %v1524, 0
        %v1529 = vsel %vm1228, %v1526, 0
        %1531 = vmatpush.xpose.msra.mxu0 0.0
        %1532 = vmatpush.xpose.msra.mxu0 0.0
        %1533 = vmatpush.xpose.msra.mxu0 0.0
        %1534 = vmatpush.xpose.msra.mxu0 0.0
        %1535 = vmatpush.xpose.msra.mxu0 0.0
        %1536 = vmatpush.xpose.msra.mxu0 0.0
        %1537 = vmatpush.xpose.msra.mxu0 0.0
        %1538 = vmatpush.xpose.msra.mxu0 0.0
        %1539 = vmatpush.xpose.msra.mxu0 0.0
        %1540 = vmatpush.xpose.msra.mxu0 0.0
        %1541 = vmatpush.xpose.msra.mxu0 0.0
        %1542 = vmatpush.xpose.msra.mxu0 0.0
        %1543 = vmatpush.xpose.msra.mxu0 0.0
        %1544 = vmatpush.xpose.msra.mxu0 0.0
        %1545 = vmatpush.xpose.msra.mxu0 0.0
        %1546 = vmatpush.xpose.msra.mxu0 %v1529
        %1547 = vmatmul.f32.gmra.mxu0 %v1527
        %v1548 = vpop.f32.mrf.mxu0
        %v1549 = vadd.f32 %v1225, %v1548
        %1550 = vdwg.mxu0
        %v1551 = vsel %vm1281, %v1521, -inf
        %1552 = vmax.xlane.f32.xlu0 %v1551
        %v1553 = vpop.xlane.xlu0 %1552
        %v1554 = vsel %vm1281, %v1549, -inf
        %1555 = vmax.xlane.f32.xlu0 %v1554
        %v1556 = vpop.xlane.xlu0 %1555
        %v1557 = vsub.f32 %v1521, %v1553
        %v1558 = vsub.f32 %v1549, %v1556
        %v1559 = vmul.f32 %v1557, 1.442695
        %v1560 = vpow.pop %v1559
        %v1561 = vmul.f32 %v1558, 1.442695
        %v1562 = vpow.pop %v1561
        %v1563 = vsel %vm1281, %v1560, 0.0
        %1564 = vadd.xlane.f32.xlu0 %v1563
        %v1565 = vpop.xlane.xlu0 %1564
        %v1566 = vsel %vm1281, %v1562, 0.0
        %1567 = vadd.xlane.f32.xlu0 %v1566
        %v1568 = vpop.xlane.xlu0 %1567
        %v1569 = vrcp.pop %v1565
        %v1570 = vrcp.pop %v1568
        %1571 = vrot.lane.b32.xlu0 %v1217, 120
        %v1572 = vpop.permute.xlu0 %1571
        %v1575 = vsel %vm1281, %v1560, 0
        %1577 = vmatpush.msra.mxu0 0.0
        %1578 = vmatpush.msra.mxu0 0.0
        %1579 = vmatpush.msra.mxu0 0.0
        %1580 = vmatpush.msra.mxu0 0.0
        %1581 = vmatpush.msra.mxu0 0.0
        %1582 = vmatpush.msra.mxu0 0.0
        %1583 = vmatpush.msra.mxu0 0.0
        %1584 = vmatpush.msra.mxu0 0.0
        %1585 = vmatpush.msra.mxu0 0.0
        %1586 = vmatpush.msra.mxu0 0.0
        %1587 = vmatpush.msra.mxu0 0.0
        %1588 = vmatpush.msra.mxu0 0.0
        %1589 = vmatpush.msra.mxu0 0.0
        %1590 = vmatpush.msra.mxu0 0.0
        %1591 = vmatpush.msra.mxu0 0.0
        %1592 = vmatpush.msra.mxu0 %v1572
        %1593 = vmatmul.f32.gmra.mxu0 %v1575
        %v1594 = vpop.f32.mrf.mxu0
        %v1595 = vadd.f32 0.0, %v1594
        %1596 = vdwg.mxu0
        %1597 = vrot.lane.b32.xlu0 %v1220, 120
        %v1598 = vpop.permute.xlu0 %1597
        %v1601 = vsel %vm1281, %v1562, 0
        %1603 = vmatpush.msra.mxu0 0.0
        %1604 = vmatpush.msra.mxu0 0.0
        %1605 = vmatpush.msra.mxu0 0.0
        %1606 = vmatpush.msra.mxu0 0.0
        %1607 = vmatpush.msra.mxu0 0.0
        %1608 = vmatpush.msra.mxu0 0.0
        %1609 = vmatpush.msra.mxu0 0.0
        %1610 = vmatpush.msra.mxu0 0.0
        %1611 = vmatpush.msra.mxu0 0.0
        %1612 = vmatpush.msra.mxu0 0.0
        %1613 = vmatpush.msra.mxu0 0.0
        %1614 = vmatpush.msra.mxu0 0.0
        %1615 = vmatpush.msra.mxu0 0.0
        %1616 = vmatpush.msra.mxu0 0.0
        %1617 = vmatpush.msra.mxu0 0.0
        %1618 = vmatpush.msra.mxu0 %v1598
        %1619 = vmatmul.f32.gmra.mxu0 %v1601
        %v1620 = vpop.f32.mrf.mxu0
        %v1621 = vadd.f32 0.0, %v1620
        %1622 = vdwg.mxu0
        %v1623 = vmul.f32 %v1595, %v1569
        %v1624 = vmul.f32 %v1621, %v1570
        %1627 = vrot.lane.b32.xlu0 %v1623, 8
        %v1628 = vpop.permute.xlu0 %1627
        %1629 = vrot.lane.b32.xlu0 %v1624, 8
        %v1630 = vpop.permute.xlu0 %1629
        %vm1633 = vcmask 97344
        %1634 = vst.msk [vmem:[#allocation3] sm:$0xff] %vm1633, %v1628
        %1635 = vst.msk [vmem:[#allocation3 + $0x8] sm:$0xff] %vm1633, %v1630
        %1636 = vrot.lane.b32.xlu0 %v1152, 116
        %v1637 = vpop.permute.xlu0 %1636
        %1638 = vrot.lane.b32.xlu0 %v1186, 116
        %v1639 = vpop.permute.xlu0 %1638
        %v1640 = vsel %vm1228, %v1637, 0
        %v1642 = vsel %vm1228, %v1639, 0
        %1644 = vmatpush.xpose.msra.mxu0 0.0
        %1645 = vmatpush.xpose.msra.mxu0 0.0
        %1646 = vmatpush.xpose.msra.mxu0 0.0
        %1647 = vmatpush.xpose.msra.mxu0 0.0
        %1648 = vmatpush.xpose.msra.mxu0 0.0
        %1649 = vmatpush.xpose.msra.mxu0 0.0
        %1650 = vmatpush.xpose.msra.mxu0 0.0
        %1651 = vmatpush.xpose.msra.mxu0 0.0
        %1652 = vmatpush.xpose.msra.mxu0 0.0
        %1653 = vmatpush.xpose.msra.mxu0 0.0
        %1654 = vmatpush.xpose.msra.mxu0 0.0
        %1655 = vmatpush.xpose.msra.mxu0 0.0
        %1656 = vmatpush.xpose.msra.mxu0 0.0
        %1657 = vmatpush.xpose.msra.mxu0 0.0
        %1658 = vmatpush.xpose.msra.mxu0 0.0
        %1659 = vmatpush.xpose.msra.mxu0 %v1642
        %1660 = vmatmul.f32.gmra.mxu0 %v1640
        %v1661 = vpop.f32.mrf.mxu0
        %v1662 = vadd.f32 %v1224, %v1661
        %1663 = vdwg.mxu0
        %1664 = vrot.lane.b32.xlu0 %v1153, 116
        %v1665 = vpop.permute.xlu0 %1664
        %1666 = vrot.lane.b32.xlu0 %v1189, 116
        %v1667 = vpop.permute.xlu0 %1666
        %v1668 = vsel %vm1228, %v1665, 0
        %v1670 = vsel %vm1228, %v1667, 0
        %1672 = vmatpush.xpose.msra.mxu0 0.0
        %1673 = vmatpush.xpose.msra.mxu0 0.0
        %1674 = vmatpush.xpose.msra.mxu0 0.0
        %1675 = vmatpush.xpose.msra.mxu0 0.0
        %1676 = vmatpush.xpose.msra.mxu0 0.0
        %1677 = vmatpush.xpose.msra.mxu0 0.0
        %1678 = vmatpush.xpose.msra.mxu0 0.0
        %1679 = vmatpush.xpose.msra.mxu0 0.0
        %1680 = vmatpush.xpose.msra.mxu0 0.0
        %1681 = vmatpush.xpose.msra.mxu0 0.0
        %1682 = vmatpush.xpose.msra.mxu0 0.0
        %1683 = vmatpush.xpose.msra.mxu0 0.0
        %1684 = vmatpush.xpose.msra.mxu0 0.0
        %1685 = vmatpush.xpose.msra.mxu0 0.0
        %1686 = vmatpush.xpose.msra.mxu0 0.0
        %1687 = vmatpush.xpose.msra.mxu0 %v1670
        %1688 = vmatmul.f32.gmra.mxu0 %v1668
        %v1689 = vpop.f32.mrf.mxu0
        %v1690 = vadd.f32 %v1225, %v1689
        %1691 = vdwg.mxu0
        %v1692 = vsel %vm1281, %v1662, -inf
        %1693 = vmax.xlane.f32.xlu0 %v1692
        %v1694 = vpop.xlane.xlu0 %1693
        %v1695 = vsel %vm1281, %v1690, -inf
        %1696 = vmax.xlane.f32.xlu0 %v1695
        %v1697 = vpop.xlane.xlu0 %1696
        %v1698 = vsub.f32 %v1662, %v1694
        %v1699 = vsub.f32 %v1690, %v1697
        %v1700 = vmul.f32 %v1698, 1.442695
        %v1701 = vpow.pop %v1700
        %v1702 = vmul.f32 %v1699, 1.442695
        %v1703 = vpow.pop %v1702
        %v1704 = vsel %vm1281, %v1701, 0.0
        %1705 = vadd.xlane.f32.xlu0 %v1704
        %v1706 = vpop.xlane.xlu0 %1705
        %v1707 = vsel %vm1281, %v1703, 0.0
        %1708 = vadd.xlane.f32.xlu0 %v1707
        %v1709 = vpop.xlane.xlu0 %1708
        %v1710 = vrcp.pop %v1706
        %v1711 = vrcp.pop %v1709
        %1712 = vrot.lane.b32.xlu0 %v1217, 116
        %v1713 = vpop.permute.xlu0 %1712
        %v1716 = vsel %vm1281, %v1701, 0
        %1718 = vmatpush.msra.mxu0 0.0
        %1719 = vmatpush.msra.mxu0 0.0
        %1720 = vmatpush.msra.mxu0 0.0
        %1721 = vmatpush.msra.mxu0 0.0
        %1722 = vmatpush.msra.mxu0 0.0
        %1723 = vmatpush.msra.mxu0 0.0
        %1724 = vmatpush.msra.mxu0 0.0
        %1725 = vmatpush.msra.mxu0 0.0
        %1726 = vmatpush.msra.mxu0 0.0
        %1727 = vmatpush.msra.mxu0 0.0
        %1728 = vmatpush.msra.mxu0 0.0
        %1729 = vmatpush.msra.mxu0 0.0
        %1730 = vmatpush.msra.mxu0 0.0
        %1731 = vmatpush.msra.mxu0 0.0
        %1732 = vmatpush.msra.mxu0 0.0
        %1733 = vmatpush.msra.mxu0 %v1713
        %1734 = vmatmul.f32.gmra.mxu0 %v1716
        %v1735 = vpop.f32.mrf.mxu0
        %v1736 = vadd.f32 0.0, %v1735
        %1737 = vdwg.mxu0
        %1738 = vrot.lane.b32.xlu0 %v1220, 116
        %v1739 = vpop.permute.xlu0 %1738
        %v1742 = vsel %vm1281, %v1703, 0
        %1744 = vmatpush.msra.mxu0 0.0
        %1745 = vmatpush.msra.mxu0 0.0
        %1746 = vmatpush.msra.mxu0 0.0
        %1747 = vmatpush.msra.mxu0 0.0
        %1748 = vmatpush.msra.mxu0 0.0
        %1749 = vmatpush.msra.mxu0 0.0
        %1750 = vmatpush.msra.mxu0 0.0
        %1751 = vmatpush.msra.mxu0 0.0
        %1752 = vmatpush.msra.mxu0 0.0
        %1753 = vmatpush.msra.mxu0 0.0
        %1754 = vmatpush.msra.mxu0 0.0
        %1755 = vmatpush.msra.mxu0 0.0
        %1756 = vmatpush.msra.mxu0 0.0
        %1757 = vmatpush.msra.mxu0 0.0
        %1758 = vmatpush.msra.mxu0 0.0
        %1759 = vmatpush.msra.mxu0 %v1739
        %1760 = vmatmul.f32.gmra.mxu0 %v1742
        %v1761 = vpop.f32.mrf.mxu0
        %v1762 = vadd.f32 0.0, %v1761
        %1763 = vdwg.mxu0
        %v1764 = vmul.f32 %v1736, %v1710
        %v1765 = vmul.f32 %v1762, %v1711
        %1768 = vrot.lane.b32.xlu0 %v1764, 12
        %v1769 = vpop.permute.xlu0 %1768
        %1770 = vrot.lane.b32.xlu0 %v1765, 12
        %v1771 = vpop.permute.xlu0 %1770
        %vm1774 = vcmask 130144
        %1775 = vst.msk [vmem:[#allocation3] sm:$0xff] %vm1774, %v1769
        %1776 = vst.msk [vmem:[#allocation3 + $0x8] sm:$0xff] %vm1774, %v1771
        %1777 = vrot.lane.b32.xlu0 %v1152, 112
        %v1778 = vpop.permute.xlu0 %1777
        %1779 = vrot.lane.b32.xlu0 %v1186, 112
        %v1780 = vpop.permute.xlu0 %1779
        %v1781 = vsel %vm1228, %v1778, 0
        %v1783 = vsel %vm1228, %v1780, 0
        %1785 = vmatpush.xpose.msra.mxu0 0.0
        %1786 = vmatpush.xpose.msra.mxu0 0.0
        %1787 = vmatpush.xpose.msra.mxu0 0.0
        %1788 = vmatpush.xpose.msra.mxu0 0.0
        %1789 = vmatpush.xpose.msra.mxu0 0.0
        %1790 = vmatpush.xpose.msra.mxu0 0.0
        %1791 = vmatpush.xpose.msra.mxu0 0.0
        %1792 = vmatpush.xpose.msra.mxu0 0.0
        %1793 = vmatpush.xpose.msra.mxu0 0.0
        %1794 = vmatpush.xpose.msra.mxu0 0.0
        %1795 = vmatpush.xpose.msra.mxu0 0.0
        %1796 = vmatpush.xpose.msra.mxu0 0.0
        %1797 = vmatpush.xpose.msra.mxu0 0.0
        %1798 = vmatpush.xpose.msra.mxu0 0.0
        %1799 = vmatpush.xpose.msra.mxu0 0.0
        %1800 = vmatpush.xpose.msra.mxu0 %v1783
        %1801 = vmatmul.f32.gmra.mxu0 %v1781
        %v1802 = vpop.f32.mrf.mxu0
        %v1803 = vadd.f32 %v1224, %v1802
        %1804 = vdwg.mxu0
        %1805 = vrot.lane.b32.xlu0 %v1153, 112
        %v1806 = vpop.permute.xlu0 %1805
        %1807 = vrot.lane.b32.xlu0 %v1189, 112
        %v1808 = vpop.permute.xlu0 %1807
        %v1809 = vsel %vm1228, %v1806, 0
        %v1811 = vsel %vm1228, %v1808, 0
        %1813 = vmatpush.xpose.msra.mxu0 0.0
        %1814 = vmatpush.xpose.msra.mxu0 0.0
        %1815 = vmatpush.xpose.msra.mxu0 0.0
        %1816 = vmatpush.xpose.msra.mxu0 0.0
        %1817 = vmatpush.xpose.msra.mxu0 0.0
        %1818 = vmatpush.xpose.msra.mxu0 0.0
        %1819 = vmatpush.xpose.msra.mxu0 0.0
        %1820 = vmatpush.xpose.msra.mxu0 0.0
        %1821 = vmatpush.xpose.msra.mxu0 0.0
        %1822 = vmatpush.xpose.msra.mxu0 0.0
        %1823 = vmatpush.xpose.msra.mxu0 0.0
        %1824 = vmatpush.xpose.msra.mxu0 0.0
        %1825 = vmatpush.xpose.msra.mxu0 0.0
        %1826 = vmatpush.xpose.msra.mxu0 0.0
        %1827 = vmatpush.xpose.msra.mxu0 0.0
        %1828 = vmatpush.xpose.msra.mxu0 %v1811
        %1829 = vmatmul.f32.gmra.mxu0 %v1809
        %v1830 = vpop.f32.mrf.mxu0
        %v1831 = vadd.f32 %v1225, %v1830
        %1832 = vdwg.mxu0
        %v1833 = vsel %vm1281, %v1803, -inf
        %1834 = vmax.xlane.f32.xlu0 %v1833
        %v1835 = vpop.xlane.xlu0 %1834
        %v1836 = vsel %vm1281, %v1831, -inf
        %1837 = vmax.xlane.f32.xlu0 %v1836
        %v1838 = vpop.xlane.xlu0 %1837
        %v1839 = vsub.f32 %v1803, %v1835
        %v1840 = vsub.f32 %v1831, %v1838
        %v1841 = vmul.f32 %v1839, 1.442695
        %v1842 = vpow.pop %v1841
        %v1843 = vmul.f32 %v1840, 1.442695
        %v1844 = vpow.pop %v1843
        %v1845 = vsel %vm1281, %v1842, 0.0
        %1846 = vadd.xlane.f32.xlu0 %v1845
        %v1847 = vpop.xlane.xlu0 %1846
        %v1848 = vsel %vm1281, %v1844, 0.0
        %1849 = vadd.xlane.f32.xlu0 %v1848
        %v1850 = vpop.xlane.xlu0 %1849
        %v1851 = vrcp.pop %v1847
        %v1852 = vrcp.pop %v1850
        %1853 = vrot.lane.b32.xlu0 %v1217, 112
        %v1854 = vpop.permute.xlu0 %1853
        %v1857 = vsel %vm1281, %v1842, 0
        %1859 = vmatpush.msra.mxu0 0.0
        %1860 = vmatpush.msra.mxu0 0.0
        %1861 = vmatpush.msra.mxu0 0.0
        %1862 = vmatpush.msra.mxu0 0.0
        %1863 = vmatpush.msra.mxu0 0.0
        %1864 = vmatpush.msra.mxu0 0.0
        %1865 = vmatpush.msra.mxu0 0.0
        %1866 = vmatpush.msra.mxu0 0.0
        %1867 = vmatpush.msra.mxu0 0.0
        %1868 = vmatpush.msra.mxu0 0.0
        %1869 = vmatpush.msra.mxu0 0.0
        %1870 = vmatpush.msra.mxu0 0.0
        %1871 = vmatpush.msra.mxu0 0.0
        %1872 = vmatpush.msra.mxu0 0.0
        %1873 = vmatpush.msra.mxu0 0.0
        %1874 = vmatpush.msra.mxu0 %v1854
        %1875 = vmatmul.f32.gmra.mxu0 %v1857
        %v1876 = vpop.f32.mrf.mxu0
        %v1877 = vadd.f32 0.0, %v1876
        %1878 = vdwg.mxu0
        %1879 = vrot.lane.b32.xlu0 %v1220, 112
        %v1880 = vpop.permute.xlu0 %1879
        %v1883 = vsel %vm1281, %v1844, 0
        %1885 = vmatpush.msra.mxu0 0.0
        %1886 = vmatpush.msra.mxu0 0.0
        %1887 = vmatpush.msra.mxu0 0.0
        %1888 = vmatpush.msra.mxu0 0.0
        %1889 = vmatpush.msra.mxu0 0.0
        %1890 = vmatpush.msra.mxu0 0.0
        %1891 = vmatpush.msra.mxu0 0.0
        %1892 = vmatpush.msra.mxu0 0.0
        %1893 = vmatpush.msra.mxu0 0.0
        %1894 = vmatpush.msra.mxu0 0.0
        %1895 = vmatpush.msra.mxu0 0.0
        %1896 = vmatpush.msra.mxu0 0.0
        %1897 = vmatpush.msra.mxu0 0.0
        %1898 = vmatpush.msra.mxu0 0.0
        %1899 = vmatpush.msra.mxu0 0.0
        %1900 = vmatpush.msra.mxu0 %v1880
        %1901 = vmatmul.f32.gmra.mxu0 %v1883
        %v1902 = vpop.f32.mrf.mxu0
        %v1903 = vadd.f32 0.0, %v1902
        %1904 = vdwg.mxu0
        %v1905 = vmul.f32 %v1877, %v1851
        %v1906 = vmul.f32 %v1903, %v1852
        %1909 = vrot.lane.b32.xlu0 %v1905, 16
        %v1910 = vpop.permute.xlu0 %1909
        %1911 = vrot.lane.b32.xlu0 %v1906, 16
        %v1912 = vpop.permute.xlu0 %1911
        %vm1915 = vcmask 162944
        %1916 = vst.msk [vmem:[#allocation3] sm:$0xff] %vm1915, %v1910
        %1917 = vst.msk [vmem:[#allocation3 + $0x8] sm:$0xff] %vm1915, %v1912
        %1918 = vrot.lane.b32.xlu0 %v1152, 108
        %v1919 = vpop.permute.xlu0 %1918
        %1920 = vrot.lane.b32.xlu0 %v1186, 108
        %v1921 = vpop.permute.xlu0 %1920
        %v1922 = vsel %vm1228, %v1919, 0
        %v1924 = vsel %vm1228, %v1921, 0
        %1926 = vmatpush.xpose.msra.mxu0 0.0
        %1927 = vmatpush.xpose.msra.mxu0 0.0
        %1928 = vmatpush.xpose.msra.mxu0 0.0
        %1929 = vmatpush.xpose.msra.mxu0 0.0
        %1930 = vmatpush.xpose.msra.mxu0 0.0
        %1931 = vmatpush.xpose.msra.mxu0 0.0
        %1932 = vmatpush.xpose.msra.mxu0 0.0
        %1933 = vmatpush.xpose.msra.mxu0 0.0
        %1934 = vmatpush.xpose.msra.mxu0 0.0
        %1935 = vmatpush.xpose.msra.mxu0 0.0
        %1936 = vmatpush.xpose.msra.mxu0 0.0
        %1937 = vmatpush.xpose.msra.mxu0 0.0
        %1938 = vmatpush.xpose.msra.mxu0 0.0
        %1939 = vmatpush.xpose.msra.mxu0 0.0
        %1940 = vmatpush.xpose.msra.mxu0 0.0
        %1941 = vmatpush.xpose.msra.mxu0 %v1924
        %1942 = vmatmul.f32.gmra.mxu0 %v1922
        %v1943 = vpop.f32.mrf.mxu0
        %v1944 = vadd.f32 %v1224, %v1943
        %1945 = vdwg.mxu0
        %1946 = vrot.lane.b32.xlu0 %v1153, 108
        %v1947 = vpop.permute.xlu0 %1946
        %1948 = vrot.lane.b32.xlu0 %v1189, 108
        %v1949 = vpop.permute.xlu0 %1948
        %v1950 = vsel %vm1228, %v1947, 0
        %v1952 = vsel %vm1228, %v1949, 0
        %1954 = vmatpush.xpose.msra.mxu0 0.0
        %1955 = vmatpush.xpose.msra.mxu0 0.0
        %1956 = vmatpush.xpose.msra.mxu0 0.0
        %1957 = vmatpush.xpose.msra.mxu0 0.0
        %1958 = vmatpush.xpose.msra.mxu0 0.0
        %1959 = vmatpush.xpose.msra.mxu0 0.0
        %1960 = vmatpush.xpose.msra.mxu0 0.0
        %1961 = vmatpush.xpose.msra.mxu0 0.0
        %1962 = vmatpush.xpose.msra.mxu0 0.0
        %1963 = vmatpush.xpose.msra.mxu0 0.0
        %1964 = vmatpush.xpose.msra.mxu0 0.0
        %1965 = vmatpush.xpose.msra.mxu0 0.0
        %1966 = vmatpush.xpose.msra.mxu0 0.0
        %1967 = vmatpush.xpose.msra.mxu0 0.0
        %1968 = vmatpush.xpose.msra.mxu0 0.0
        %1969 = vmatpush.xpose.msra.mxu0 %v1952
        %1970 = vmatmul.f32.gmra.mxu0 %v1950
        %v1971 = vpop.f32.mrf.mxu0
        %v1972 = vadd.f32 %v1225, %v1971
        %1973 = vdwg.mxu0
        %v1974 = vsel %vm1281, %v1944, -inf
        %1975 = vmax.xlane.f32.xlu0 %v1974
        %v1976 = vpop.xlane.xlu0 %1975
        %v1977 = vsel %vm1281, %v1972, -inf
        %1978 = vmax.xlane.f32.xlu0 %v1977
        %v1979 = vpop.xlane.xlu0 %1978
        %v1980 = vsub.f32 %v1944, %v1976
        %v1981 = vsub.f32 %v1972, %v1979
        %v1982 = vmul.f32 %v1980, 1.442695
        %v1983 = vpow.pop %v1982
        %v1984 = vmul.f32 %v1981, 1.442695
        %v1985 = vpow.pop %v1984
        %v1986 = vsel %vm1281, %v1983, 0.0
        %1987 = vadd.xlane.f32.xlu0 %v1986
        %v1988 = vpop.xlane.xlu0 %1987
        %v1989 = vsel %vm1281, %v1985, 0.0
        %1990 = vadd.xlane.f32.xlu0 %v1989
        %v1991 = vpop.xlane.xlu0 %1990
        %v1992 = vrcp.pop %v1988
        %v1993 = vrcp.pop %v1991
        %1994 = vrot.lane.b32.xlu0 %v1217, 108
        %v1995 = vpop.permute.xlu0 %1994
        %v1998 = vsel %vm1281, %v1983, 0
        %2000 = vmatpush.msra.mxu0 0.0
        %2001 = vmatpush.msra.mxu0 0.0
        %2002 = vmatpush.msra.mxu0 0.0
        %2003 = vmatpush.msra.mxu0 0.0
        %2004 = vmatpush.msra.mxu0 0.0
        %2005 = vmatpush.msra.mxu0 0.0
        %2006 = vmatpush.msra.mxu0 0.0
        %2007 = vmatpush.msra.mxu0 0.0
        %2008 = vmatpush.msra.mxu0 0.0
        %2009 = vmatpush.msra.mxu0 0.0
        %2010 = vmatpush.msra.mxu0 0.0
        %2011 = vmatpush.msra.mxu0 0.0
        %2012 = vmatpush.msra.mxu0 0.0
        %2013 = vmatpush.msra.mxu0 0.0
        %2014 = vmatpush.msra.mxu0 0.0
        %2015 = vmatpush.msra.mxu0 %v1995
        %2016 = vmatmul.f32.gmra.mxu0 %v1998
        %v2017 = vpop.f32.mrf.mxu0
        %v2018 = vadd.f32 0.0, %v2017
        %2019 = vdwg.mxu0
        %2020 = vrot.lane.b32.xlu0 %v1220, 108
        %v2021 = vpop.permute.xlu0 %2020
        %v2024 = vsel %vm1281, %v1985, 0
        %2026 = vmatpush.msra.mxu0 0.0
        %2027 = vmatpush.msra.mxu0 0.0
        %2028 = vmatpush.msra.mxu0 0.0
        %2029 = vmatpush.msra.mxu0 0.0
        %2030 = vmatpush.msra.mxu0 0.0
        %2031 = vmatpush.msra.mxu0 0.0
        %2032 = vmatpush.msra.mxu0 0.0
        %2033 = vmatpush.msra.mxu0 0.0
        %2034 = vmatpush.msra.mxu0 0.0
        %2035 = vmatpush.msra.mxu0 0.0
        %2036 = vmatpush.msra.mxu0 0.0
        %2037 = vmatpush.msra.mxu0 0.0
        %2038 = vmatpush.msra.mxu0 0.0
        %2039 = vmatpush.msra.mxu0 0.0
        %2040 = vmatpush.msra.mxu0 0.0
        %2041 = vmatpush.msra.mxu0 %v2021
        %2042 = vmatmul.f32.gmra.mxu0 %v2024
        %v2043 = vpop.f32.mrf.mxu0
        %v2044 = vadd.f32 0.0, %v2043
        %2045 = vdwg.mxu0
        %v2046 = vmul.f32 %v2018, %v1992
        %v2047 = vmul.f32 %v2044, %v1993
        %2050 = vrot.lane.b32.xlu0 %v2046, 20
        %v2051 = vpop.permute.xlu0 %2050
        %2052 = vrot.lane.b32.xlu0 %v2047, 20
        %v2053 = vpop.permute.xlu0 %2052
        %vm2056 = vcmask 195744
        %2057 = vst.msk [vmem:[#allocation3] sm:$0xff] %vm2056, %v2051
        %2058 = vst.msk [vmem:[#allocation3 + $0x8] sm:$0xff] %vm2056, %v2053
        %2059 = vrot.lane.b32.xlu0 %v1152, 104
        %v2060 = vpop.permute.xlu0 %2059
        %2061 = vrot.lane.b32.xlu0 %v1186, 104
        %v2062 = vpop.permute.xlu0 %2061
        %v2063 = vsel %vm1228, %v2060, 0
        %v2065 = vsel %vm1228, %v2062, 0
        %2067 = vmatpush.xpose.msra.mxu0 0.0
        %2068 = vmatpush.xpose.msra.mxu0 0.0
        %2069 = vmatpush.xpose.msra.mxu0 0.0
        %2070 = vmatpush.xpose.msra.mxu0 0.0
        %2071 = vmatpush.xpose.msra.mxu0 0.0
        %2072 = vmatpush.xpose.msra.mxu0 0.0
        %2073 = vmatpush.xpose.msra.mxu0 0.0
        %2074 = vmatpush.xpose.msra.mxu0 0.0
        %2075 = vmatpush.xpose.msra.mxu0 0.0
        %2076 = vmatpush.xpose.msra.mxu0 0.0
        %2077 = vmatpush.xpose.msra.mxu0 0.0
        %2078 = vmatpush.xpose.msra.mxu0 0.0
        %2079 = vmatpush.xpose.msra.mxu0 0.0
        %2080 = vmatpush.xpose.msra.mxu0 0.0
        %2081 = vmatpush.xpose.msra.mxu0 0.0
        %2082 = vmatpush.xpose.msra.mxu0 %v2065
        %2083 = vmatmul.f32.gmra.mxu0 %v2063
        %v2084 = vpop.f32.mrf.mxu0
        %v2085 = vadd.f32 %v1224, %v2084
        %2086 = vdwg.mxu0
        %2087 = vrot.lane.b32.xlu0 %v1153, 104
        %v2088 = vpop.permute.xlu0 %2087
        %2089 = vrot.lane.b32.xlu0 %v1189, 104
        %v2090 = vpop.permute.xlu0 %2089
        %v2091 = vsel %vm1228, %v2088, 0
        %v2093 = vsel %vm1228, %v2090, 0
        %2095 = vmatpush.xpose.msra.mxu0 0.0
        %2096 = vmatpush.xpose.msra.mxu0 0.0
        %2097 = vmatpush.xpose.msra.mxu0 0.0
        %2098 = vmatpush.xpose.msra.mxu0 0.0
        %2099 = vmatpush.xpose.msra.mxu0 0.0
        %2100 = vmatpush.xpose.msra.mxu0 0.0
        %2101 = vmatpush.xpose.msra.mxu0 0.0
        %2102 = vmatpush.xpose.msra.mxu0 0.0
        %2103 = vmatpush.xpose.msra.mxu0 0.0
        %2104 = vmatpush.xpose.msra.mxu0 0.0
        %2105 = vmatpush.xpose.msra.mxu0 0.0
        %2106 = vmatpush.xpose.msra.mxu0 0.0
        %2107 = vmatpush.xpose.msra.mxu0 0.0
        %2108 = vmatpush.xpose.msra.mxu0 0.0
        %2109 = vmatpush.xpose.msra.mxu0 0.0
        %2110 = vmatpush.xpose.msra.mxu0 %v2093
        %2111 = vmatmul.f32.gmra.mxu0 %v2091
        %v2112 = vpop.f32.mrf.mxu0
        %v2113 = vadd.f32 %v1225, %v2112
        %2114 = vdwg.mxu0
        %v2115 = vsel %vm1281, %v2085, -inf
        %2116 = vmax.xlane.f32.xlu0 %v2115
        %v2117 = vpop.xlane.xlu0 %2116
        %v2118 = vsel %vm1281, %v2113, -inf
        %2119 = vmax.xlane.f32.xlu0 %v2118
        %v2120 = vpop.xlane.xlu0 %2119
        %v2121 = vsub.f32 %v2085, %v2117
        %v2122 = vsub.f32 %v2113, %v2120
        %v2123 = vmul.f32 %v2121, 1.442695
        %v2124 = vpow.pop %v2123
        %v2125 = vmul.f32 %v2122, 1.442695
        %v2126 = vpow.pop %v2125
        %v2127 = vsel %vm1281, %v2124, 0.0
        %2128 = vadd.xlane.f32.xlu0 %v2127
        %v2129 = vpop.xlane.xlu0 %2128
        %v2130 = vsel %vm1281, %v2126, 0.0
        %2131 = vadd.xlane.f32.xlu0 %v2130
        %v2132 = vpop.xlane.xlu0 %2131
        %v2133 = vrcp.pop %v2129
        %v2134 = vrcp.pop %v2132
        %2135 = vrot.lane.b32.xlu0 %v1217, 104
        %v2136 = vpop.permute.xlu0 %2135
        %v2139 = vsel %vm1281, %v2124, 0
        %2141 = vmatpush.msra.mxu0 0.0
        %2142 = vmatpush.msra.mxu0 0.0
        %2143 = vmatpush.msra.mxu0 0.0
        %2144 = vmatpush.msra.mxu0 0.0
        %2145 = vmatpush.msra.mxu0 0.0
        %2146 = vmatpush.msra.mxu0 0.0
        %2147 = vmatpush.msra.mxu0 0.0
        %2148 = vmatpush.msra.mxu0 0.0
        %2149 = vmatpush.msra.mxu0 0.0
        %2150 = vmatpush.msra.mxu0 0.0
        %2151 = vmatpush.msra.mxu0 0.0
        %2152 = vmatpush.msra.mxu0 0.0
        %2153 = vmatpush.msra.mxu0 0.0
        %2154 = vmatpush.msra.mxu0 0.0
        %2155 = vmatpush.msra.mxu0 0.0
        %2156 = vmatpush.msra.mxu0 %v2136
        %2157 = vmatmul.f32.gmra.mxu0 %v2139
        %v2158 = vpop.f32.mrf.mxu0
        %v2159 = vadd.f32 0.0, %v2158
        %2160 = vdwg.mxu0
        %2161 = vrot.lane.b32.xlu0 %v1220, 104
        %v2162 = vpop.permute.xlu0 %2161
        %v2165 = vsel %vm1281, %v2126, 0
        %2167 = vmatpush.msra.mxu0 0.0
        %2168 = vmatpush.msra.mxu0 0.0
        %2169 = vmatpush.msra.mxu0 0.0
        %2170 = vmatpush.msra.mxu0 0.0
        %2171 = vmatpush.msra.mxu0 0.0
        %2172 = vmatpush.msra.mxu0 0.0
        %2173 = vmatpush.msra.mxu0 0.0
        %2174 = vmatpush.msra.mxu0 0.0
        %2175 = vmatpush.msra.mxu0 0.0
        %2176 = vmatpush.msra.mxu0 0.0
        %2177 = vmatpush.msra.mxu0 0.0
        %2178 = vmatpush.msra.mxu0 0.0
        %2179 = vmatpush.msra.mxu0 0.0
        %2180 = vmatpush.msra.mxu0 0.0
        %2181 = vmatpush.msra.mxu0 0.0
        %2182 = vmatpush.msra.mxu0 %v2162
        %2183 = vmatmul.f32.gmra.mxu0 %v2165
        %v2184 = vpop.f32.mrf.mxu0
        %v2185 = vadd.f32 0.0, %v2184
        %2186 = vdwg.mxu0
        %v2187 = vmul.f32 %v2159, %v2133
        %v2188 = vmul.f32 %v2185, %v2134
        %2191 = vrot.lane.b32.xlu0 %v2187, 24
        %v2192 = vpop.permute.xlu0 %2191
        %2193 = vrot.lane.b32.xlu0 %v2188, 24
        %v2194 = vpop.permute.xlu0 %2193
        %vm2197 = vcmask 228544
        %2198 = vst.msk [vmem:[#allocation3] sm:$0xff] %vm2197, %v2192
        %2199 = vst.msk [vmem:[#allocation3 + $0x8] sm:$0xff] %vm2197, %v2194
        %2200 = vrot.lane.b32.xlu0 %v1152, 100
        %v2201 = vpop.permute.xlu0 %2200
        %2202 = vrot.lane.b32.xlu0 %v1186, 100
        %v2203 = vpop.permute.xlu0 %2202
        %v2204 = vsel %vm1228, %v2201, 0
        %v2206 = vsel %vm1228, %v2203, 0
        %2208 = vmatpush.xpose.msra.mxu0 0.0
        %2209 = vmatpush.xpose.msra.mxu0 0.0
        %2210 = vmatpush.xpose.msra.mxu0 0.0
        %2211 = vmatpush.xpose.msra.mxu0 0.0
        %2212 = vmatpush.xpose.msra.mxu0 0.0
        %2213 = vmatpush.xpose.msra.mxu0 0.0
        %2214 = vmatpush.xpose.msra.mxu0 0.0
        %2215 = vmatpush.xpose.msra.mxu0 0.0
        %2216 = vmatpush.xpose.msra.mxu0 0.0
        %2217 = vmatpush.xpose.msra.mxu0 0.0
        %2218 = vmatpush.xpose.msra.mxu0 0.0
        %2219 = vmatpush.xpose.msra.mxu0 0.0
        %2220 = vmatpush.xpose.msra.mxu0 0.0
        %2221 = vmatpush.xpose.msra.mxu0 0.0
        %2222 = vmatpush.xpose.msra.mxu0 0.0
        %2223 = vmatpush.xpose.msra.mxu0 %v2206
        %2224 = vmatmul.f32.gmra.mxu0 %v2204
        %v2225 = vpop.f32.mrf.mxu0
        %v2226 = vadd.f32 %v1224, %v2225
        %2227 = vdwg.mxu0
        %2228 = vrot.lane.b32.xlu0 %v1153, 100
        %v2229 = vpop.permute.xlu0 %2228
        %2230 = vrot.lane.b32.xlu0 %v1189, 100
        %v2231 = vpop.permute.xlu0 %2230
        %v2232 = vsel %vm1228, %v2229, 0
        %v2234 = vsel %vm1228, %v2231, 0
        %2236 = vmatpush.xpose.msra.mxu0 0.0
        %2237 = vmatpush.xpose.msra.mxu0 0.0
        %2238 = vmatpush.xpose.msra.mxu0 0.0
        %2239 = vmatpush.xpose.msra.mxu0 0.0
        %2240 = vmatpush.xpose.msra.mxu0 0.0
        %2241 = vmatpush.xpose.msra.mxu0 0.0
        %2242 = vmatpush.xpose.msra.mxu0 0.0
        %2243 = vmatpush.xpose.msra.mxu0 0.0
        %2244 = vmatpush.xpose.msra.mxu0 0.0
        %2245 = vmatpush.xpose.msra.mxu0 0.0
        %2246 = vmatpush.xpose.msra.mxu0 0.0
        %2247 = vmatpush.xpose.msra.mxu0 0.0
        %2248 = vmatpush.xpose.msra.mxu0 0.0
        %2249 = vmatpush.xpose.msra.mxu0 0.0
        %2250 = vmatpush.xpose.msra.mxu0 0.0
        %2251 = vmatpush.xpose.msra.mxu0 %v2234
        %2252 = vmatmul.f32.gmra.mxu0 %v2232
        %v2253 = vpop.f32.mrf.mxu0
        %v2254 = vadd.f32 %v1225, %v2253
        %2255 = vdwg.mxu0
        %v2256 = vsel %vm1281, %v2226, -inf
        %2257 = vmax.xlane.f32.xlu0 %v2256
        %v2258 = vpop.xlane.xlu0 %2257
        %v2259 = vsel %vm1281, %v2254, -inf
        %2260 = vmax.xlane.f32.xlu0 %v2259
        %v2261 = vpop.xlane.xlu0 %2260
        %v2262 = vsub.f32 %v2226, %v2258
        %v2263 = vsub.f32 %v2254, %v2261
        %v2264 = vmul.f32 %v2262, 1.442695
        %v2265 = vpow.pop %v2264
        %v2266 = vmul.f32 %v2263, 1.442695
        %v2267 = vpow.pop %v2266
        %v2268 = vsel %vm1281, %v2265, 0.0
        %2269 = vadd.xlane.f32.xlu0 %v2268
        %v2270 = vpop.xlane.xlu0 %2269
        %v2271 = vsel %vm1281, %v2267, 0.0
        %2272 = vadd.xlane.f32.xlu0 %v2271
        %v2273 = vpop.xlane.xlu0 %2272
        %v2274 = vrcp.pop %v2270
        %v2275 = vrcp.pop %v2273
        %2276 = vrot.lane.b32.xlu0 %v1217, 100
        %v2277 = vpop.permute.xlu0 %2276
        %v2280 = vsel %vm1281, %v2265, 0
        %2282 = vmatpush.msra.mxu0 0.0
        %2283 = vmatpush.msra.mxu0 0.0
        %2284 = vmatpush.msra.mxu0 0.0
        %2285 = vmatpush.msra.mxu0 0.0
        %2286 = vmatpush.msra.mxu0 0.0
        %2287 = vmatpush.msra.mxu0 0.0
        %2288 = vmatpush.msra.mxu0 0.0
        %2289 = vmatpush.msra.mxu0 0.0
        %2290 = vmatpush.msra.mxu0 0.0
        %2291 = vmatpush.msra.mxu0 0.0
        %2292 = vmatpush.msra.mxu0 0.0
        %2293 = vmatpush.msra.mxu0 0.0
        %2294 = vmatpush.msra.mxu0 0.0
        %2295 = vmatpush.msra.mxu0 0.0
        %2296 = vmatpush.msra.mxu0 0.0
        %2297 = vmatpush.msra.mxu0 %v2277
        %2298 = vmatmul.f32.gmra.mxu0 %v2280
        %v2299 = vpop.f32.mrf.mxu0
        %v2300 = vadd.f32 0.0, %v2299
        %2301 = vdwg.mxu0
        %2302 = vrot.lane.b32.xlu0 %v1220, 100
        %v2303 = vpop.permute.xlu0 %2302
        %v2306 = vsel %vm1281, %v2267, 0
        %2308 = vmatpush.msra.mxu0 0.0
        %2309 = vmatpush.msra.mxu0 0.0
        %2310 = vmatpush.msra.mxu0 0.0
        %2311 = vmatpush.msra.mxu0 0.0
        %2312 = vmatpush.msra.mxu0 0.0
        %2313 = vmatpush.msra.mxu0 0.0
        %2314 = vmatpush.msra.mxu0 0.0
        %2315 = vmatpush.msra.mxu0 0.0
        %2316 = vmatpush.msra.mxu0 0.0
        %2317 = vmatpush.msra.mxu0 0.0
        %2318 = vmatpush.msra.mxu0 0.0
        %2319 = vmatpush.msra.mxu0 0.0
        %2320 = vmatpush.msra.mxu0 0.0
        %2321 = vmatpush.msra.mxu0 0.0
        %2322 = vmatpush.msra.mxu0 0.0
        %2323 = vmatpush.msra.mxu0 %v2303
        %2324 = vmatmul.f32.gmra.mxu0 %v2306
        %v2325 = vpop.f32.mrf.mxu0
        %v2326 = vadd.f32 0.0, %v2325
        %2327 = vdwg.mxu0
        %v2328 = vmul.f32 %v2300, %v2274
        %v2329 = vmul.f32 %v2326, %v2275
        %2332 = vrot.lane.b32.xlu0 %v2328, 28
        %v2333 = vpop.permute.xlu0 %2332
        %2334 = vrot.lane.b32.xlu0 %v2329, 28
        %v2335 = vpop.permute.xlu0 %2334
        %vm2338 = vcmask 261344
        %2339 = vst.msk [vmem:[#allocation3] sm:$0xff] %vm2338, %v2333
        %2340 = vst.msk [vmem:[#allocation3 + $0x8] sm:$0xff] %vm2338, %v2335
        %v2341 = vld [vmem:[#allocation3] sm:$0xff]
        %v2342 = vld [vmem:[#allocation3 + $0x8] sm:$0xff]
        %v2343 = vld [vmem:[%s888] sm:$0xff]
        %v2344 = vld [vmem:[%s888 + $0x8] sm:$0xff]
        %v2345 = vld [vmem:[%s888 + $0x10] sm:$0xff]
        %v2346 = vld [vmem:[%s888 + $0x18] sm:$0xff]
        %v2347 = vld [vmem:[%s1024] sm:$0x1]
        %v2349 = vperm.slane %v2347, 0
        %v2352 = vsel %vm1053, %v2341, 0
        %v2355 = vsel %vm1053, %v2342, 0
        %2357 = vmatpush.msra.mxu0 0.0
        %2358 = vmatpush.msra.mxu0 0.0
        %2359 = vmatpush.msra.mxu0 0.0
        %2360 = vmatpush.msra.mxu0 0.0
        %2361 = vmatpush.msra.mxu0 0.0
        %2362 = vmatpush.msra.mxu0 0.0
        %2363 = vmatpush.msra.mxu0 0.0
        %2364 = vmatpush.msra.mxu0 0.0
        %2365 = vmatpush.msra.mxu0 0.0
        %2366 = vmatpush.msra.mxu0 0.0
        %2367 = vmatpush.msra.mxu0 0.0
        %2368 = vmatpush.msra.mxu0 0.0
        %2369 = vmatpush.msra.mxu0 %v2346
        %2370 = vmatpush.msra.mxu0 %v2345
        %2371 = vmatpush.msra.mxu0 %v2344
        %2372 = vmatpush.msra.mxu0 %v2343
        %2373 = vmatmul.f32.gmra.mxu0 %v2352
        %v2374 = vpop.f32.mrf.mxu0
        %v2375 = vadd.f32 %v2349, %v2374
        %2376 = vmatmul.f32.gmra.mxu0 %v2355
        %v2377 = vpop.f32.mrf.mxu0
        %v2378 = vadd.f32 %v2349, %v2377
        %2379 = vdwg.mxu0
        %v2380 = vadd.f32 %v2375, %v1047
        %v2381 = vadd.f32 %v2378, %v1048
        %v2382 = vld [vmem:[%s1030] sm:$0x1]
        %v2383 = vld [vmem:[%s907] sm:$0x1]
        %v2384 = vsel %vm1053, %v2380, 0.0
        %2385 = vadd.xlane.f32.xlu0 %v2384
        %v2386 = vpop.xlane.xlu0 %2385
        %v2387 = vsel %vm1053, %v2381, 0.0
        %2388 = vadd.xlane.f32.xlu0 %v2387
        %v2389 = vpop.xlane.xlu0 %2388
        %v2390 = vmul.f32 %v2386, %v1066
        %v2391 = vmul.f32 %v2389, %v1066
        %v2392 = vsub.f32 %v2380, %v2390
        %v2393 = vsub.f32 %v2381, %v2391
        %v2394 = vmul.f32 %v2392, %v2392
        %v2395 = vmul.f32 %v2393, %v2393
        %v2396 = vsel %vm1053, %v2394, 0.0
        %2397 = vadd.xlane.f32.xlu0 %v2396
        %v2398 = vpop.xlane.xlu0 %2397
        %v2399 = vsel %vm1053, %v2395, 0.0
        %2400 = vadd.xlane.f32.xlu0 %v2399
        %v2401 = vpop.xlane.xlu0 %2400
        %v2402 = vmul.f32 %v2398, %v1066
        %v2403 = vmul.f32 %v2401, %v1066
        %v2404 = vadd.f32 %v2402, 1e-05
        %v2405 = vadd.f32 %v2403, 1e-05
        %v2406 = vrsqrt.pop %v2404
        %v2407 = vmul.f32 %v2406, %v2404
        %v2408 = vmul.f32 %v2407, %v2406
        %v2409 = vmul.f32 0.5, %v2408
        %v2410 = vsub.f32 1.5, %v2409
        %v2411 = vmul.f32 %v2406, %v2410
        %vm2412 = vweird.f32 %v2404
        %vm2413 = vweird.f32 %v2406
        %vm2414 = vmor %vm2412, %vm2413
        %v2415 = vsel %vm2414, %v2406, %v2411
        %v2416 = vrsqrt.pop %v2405
        %v2417 = vmul.f32 %v2416, %v2405
        %v2418 = vmul.f32 %v2417, %v2416
        %v2419 = vmul.f32 0.5, %v2418
        %v2420 = vsub.f32 1.5, %v2419
        %v2421 = vmul.f32 %v2416, %v2420
        %vm2422 = vweird.f32 %v2405
        %vm2423 = vweird.f32 %v2416
        %vm2424 = vmor %vm2422, %vm2423
        %v2425 = vsel %vm2424, %v2416, %v2421
        %v2426 = vmul.f32 %v2392, %v2415
        %v2427 = vmul.f32 %v2393, %v2425
        %v2429 = vperm.slane %v2382, 0
        %v2431 = vmul.f32 %v2426, %v2429
        %v2432 = vmul.f32 %v2427, %v2429
        %v2434 = vperm.slane %v2383, 0
        %v2436 = vadd.f32 %v2431, %v2434
        %v2437 = vadd.f32 %v2432, %v2434
        %v2438 = vld [vmem:[%s898] sm:$0xff]
        %v2439 = vld [vmem:[%s898 + $0x8] sm:$0xff]
        %v2440 = vld [vmem:[%s898 + $0x10] sm:$0xff]
        %v2441 = vld [vmem:[%s898 + $0x18] sm:$0xff]
        %v2442 = vld [vmem:[%s1027] sm:$0x1]
        %v2444 = vperm.slane %v2442, 0
        %v2447 = vsel %vm1053, %v2436, 0
        %v2450 = vsel %vm1053, %v2437, 0
        %2452 = vmatpush.msra.mxu0 0.0
        %2453 = vmatpush.msra.mxu0 0.0
        %2454 = vmatpush.msra.mxu0 0.0
        %2455 = vmatpush.msra.mxu0 0.0
        %2456 = vmatpush.msra.mxu0 0.0
        %2457 = vmatpush.msra.mxu0 0.0
        %2458 = vmatpush.msra.mxu0 0.0
        %2459 = vmatpush.msra.mxu0 0.0
        %2460 = vmatpush.msra.mxu0 0.0
        %2461 = vmatpush.msra.mxu0 0.0
        %2462 = vmatpush.msra.mxu0 0.0
        %2463 = vmatpush.msra.mxu0 0.0
        %2464 = vmatpush.msra.mxu0 %v2441
        %2465 = vmatpush.msra.mxu0 %v2440
        %2466 = vmatpush.msra.mxu0 %v2439
        %2467 = vmatpush.msra.mxu0 %v2438
        %2468 = vmatmul.f32.gmra.mxu0 %v2447
        %v2469 = vpop.f32.mrf.mxu0
        %v2470 = vadd.f32 %v2444, %v2469
        %2471 = vmatmul.f32.gmra.mxu0 %v2450
        %v2472 = vpop.f32.mrf.mxu0
        %v2473 = vadd.f32 %v2444, %v2472
        %2474 = vdwg.mxu0
        %v2475 = vmax.f32 %v2470, 0.0
        %v2476 = vmax.f32 %v2473, 0.0
        %v2477 = vadd.f32 %v2475, %v2380
        %v2478 = vadd.f32 %v2476, %v2381
        %2479 = vst.msk [vmem:[#allocation2] sm:$0xff] %vm1053, %v2477
        %2480 = vst.msk [vmem:[#allocation2 + $0x8] sm:$0xff] %vm1053, %v2478
        %p2481 = scmp.eq.s32.totalorder %s50, 1
        // Predicated region
        $region141: #{tpu_custom_call.1} parent=95 // pred_check
          %p2482 = pneg %p2481
        $region142: #{tpu_custom_call.1} parent=95 // pred_check_branch
          %2484 = sbr.rel (%p2482) target = $region144
        $region143: #{tpu_custom_call.1} parent=95 // pred_region
          %v2485 = vld [vmem:[%s17] sm:$0x1]
          %v2486 = vld [vmem:[%s18] sm:$0x1]
          %v2487 = vsel %vm1053, %v2477, 0.0
          %2488 = vadd.xlane.f32.xlu0 %v2487
          %v2489 = vpop.xlane.xlu0 %2488
          %v2490 = vsel %vm1053, %v2478, 0.0
          %2491 = vadd.xlane.f32.xlu0 %v2490
          %v2492 = vpop.xlane.xlu0 %2491
          %v2493 = vmul.f32 %v2489, %v1066
          %v2494 = vmul.f32 %v2492, %v1066
          %v2495 = vsub.f32 %v2477, %v2493
          %v2496 = vsub.f32 %v2478, %v2494
          %v2497 = vmul.f32 %v2495, %v2495
          %v2498 = vmul.f32 %v2496, %v2496
          %v2499 = vsel %vm1053, %v2497, 0.0
          %2500 = vadd.xlane.f32.xlu0 %v2499
          %v2501 = vpop.xlane.xlu0 %2500
          %v2502 = vsel %vm1053, %v2498, 0.0
          %2503 = vadd.xlane.f32.xlu0 %v2502
          %v2504 = vpop.xlane.xlu0 %2503
          %v2505 = vmul.f32 %v2501, %v1066
          %v2506 = vmul.f32 %v2504, %v1066
          %v2507 = vadd.f32 %v2505, 1e-05
          %v2508 = vadd.f32 %v2506, 1e-05
          %v2509 = vrsqrt.pop %v2507
          %v2510 = vmul.f32 %v2509, %v2507
          %v2511 = vmul.f32 %v2510, %v2509
          %v2512 = vmul.f32 0.5, %v2511
          %v2513 = vsub.f32 1.5, %v2512
          %v2514 = vmul.f32 %v2509, %v2513
          %vm2515 = vweird.f32 %v2507
          %vm2516 = vweird.f32 %v2509
          %vm2517 = vmor %vm2515, %vm2516
          %v2518 = vsel %vm2517, %v2509, %v2514
          %v2519 = vrsqrt.pop %v2508
          %v2520 = vmul.f32 %v2519, %v2508
          %v2521 = vmul.f32 %v2520, %v2519
          %v2522 = vmul.f32 0.5, %v2521
          %v2523 = vsub.f32 1.5, %v2522
          %v2524 = vmul.f32 %v2519, %v2523
          %vm2525 = vweird.f32 %v2508
          %vm2526 = vweird.f32 %v2519
          %vm2527 = vmor %vm2525, %vm2526
          %v2528 = vsel %vm2527, %v2519, %v2524
          %v2529 = vmul.f32 %v2495, %v2518
          %v2530 = vmul.f32 %v2496, %v2528
          %v2532 = vperm.slane %v2485, 0
          %v2534 = vmul.f32 %v2529, %v2532
          %v2535 = vmul.f32 %v2530, %v2532
          %v2537 = vperm.slane %v2486, 0
          %v2539 = vadd.f32 %v2534, %v2537
          %v2540 = vadd.f32 %v2535, %v2537
          %2541 = vst.msk [vmem:[#allocation21] sm:$0xff] %vm1053, %v2539
          %2542 = vst.msk [vmem:[#allocation21 + $0x8] sm:$0xff] %vm1053, %v2540
        $region144: #{tpu_custom_call.1} parent=95 // pred_fallthru
          _
        // Predicated region
        $region145: #{tpu_custom_call.1} parent=95 // pred_check
          %p2543 = pneg %p559
        $region146: #{tpu_custom_call.1} parent=95 // pred_check_branch
          %2545 = sbr.rel (%p2543) target = $region148
        $region147: #{tpu_custom_call.1} parent=95 // pred_region
          %s2546 = smul.u32 2, %s49
          %2548 = vsyncadd [#allocation6], 0
          %s2549 = smul.addr %s2546, 8
          %s2550 = scalar_lea.hbm %s19, %s2549
          %s2551 = sshll.u32 [#allocation21], 4
          %s2552 = int_to_ptr.vmem [resolvable:$true] %s2551
          %s2553 = sshll.u32 %s2550, 4
          %s2554 = int_to_ptr.hbm [resolvable:$true] %s2553
          %2559 = dma.vmem_to_hbm [thread:$0]  %s2552, 256, %s2554, [#allocation6], 128, 128, 8
        $region148: #{tpu_custom_call.1} parent=95 // pred_fallthru
          _
        // Predicated region
        $region149: #{tpu_custom_call.1} parent=95 // pred_check
          %p2560 = pneg %p559
        $region150: #{tpu_custom_call.1} parent=95 // pred_check_branch
          %2562 = sbr.rel (%p2560) target = $region152
        $region151: #{tpu_custom_call.1} parent=95 // pred_region
          %2564 = dma.done [#allocation6], 256
        $region152: #{tpu_custom_call.1} parent=95 // pred_fallthru
          _
      $region96: #{tpu_custom_call.1} parent=5 // pred_fallthru
        _
      %p2565 = scmp.le.s32.totalorder 2, %s40
      // Predicated region
      $region153: #{tpu_custom_call.1} parent=5 // pred_check
        %p2566 = pneg %p2565
      $region154: #{tpu_custom_call.1} parent=5 // pred_check_branch
        %2568 = sbr.rel (%p2566) target = $region156
      $region155: #{tpu_custom_call.1} parent=5 // pred_region
        %s2569 = ssub.s32 %s40, 2
      $region156: #{tpu_custom_call.1} parent=5 // pred_fallthru
        _
    $region6: #{tpu_custom_call.1} parent=1 // loop_footer
      %s44 = sadd.s32 1, %s40
    $region7: #{tpu_custom_call.1} parent=1 // loop_footer_branch
      %39 = sbr.rel target = $region3
    $region8: #{tpu_custom_call.1} parent=1 // loop_exit
      _
    %2570 = vsyncpa [#allocation5], 1
    %s2571 = scalar_lea.sflag [#allocation5], 1
    %2572 = vsyncpa %s2571, 1
    %2573 = vsyncpa [#allocation8], 1
    %2574 = vsyncpa [#allocation11], 1
    %s2575 = scalar_lea.sflag [#allocation11], 1
    %2576 = vsyncpa %s2575, 1
    %2577 = vsyncpa [#allocation14], 1
    %s2578 = scalar_lea.sflag [#allocation14], 1
    %2579 = vsyncpa %s2578, 1
    %2580 = vsyncpa [#allocation17], 1
    %s2581 = scalar_lea.sflag [#allocation17], 1
    %2582 = vsyncpa %s2581, 1
    %2583 = vsyncpa [#allocation20], 1
    %s2584 = scalar_lea.sflag [#allocation20], 1
    %2585 = vsyncpa %s2584, 1
    %2586 = vsyncpa [#allocation6], 1
    %s2587 = scalar_lea.sflag [#allocation6], 1
    %2588 = vsyncpa %s2587, 1

</llo_original>
